<compile_context>
chip_gen: v6e
topology: v6e:2x2x1
jax: 0.10.0
libtpu: 0.0.40
codegen_flags: <defaults>
</compile_context>

<pallas_src>
import functools

import jax
import jax.numpy as jnp
from jax.experimental import pallas as pl
from jax.experimental.pallas import tpu as pltpu


def _round_up(x, m):
    return ((x + m - 1) // m) * m


def _ffn_kernel(x_ref, w1_ref, b1_ref, w2_ref, b2_ref, g_ref, bt_ref, out_ref,
                *, eps, norm_before):
    # (TM, C) row tile of the flattened (B*N, C) input, kept in f32 for the
    # residual / LayerNorm path (v5e has no bf16 VPU/EUP).
    x = x_ref[...].astype(jnp.float32)

    def layernorm(v):
        mu = jnp.mean(v, axis=-1, keepdims=True)
        var = jnp.mean((v - mu) ** 2, axis=-1, keepdims=True)
        return (v - mu) * jax.lax.rsqrt(var + eps) * g_ref[...] + bt_ref[...]

    ff_in = layernorm(x) if norm_before else x

    # ---- linear_1 + ReLU (MXU, bf16 operands, f32 accumulation) -------------
    h = jnp.dot(ff_in.astype(jnp.bfloat16), w1_ref[...],
                preferred_element_type=jnp.float32) + b1_ref[...]
    h = jnp.maximum(h, 0.0)                                   # ReLU (VPU, f32)

    # ---- linear_2 (MXU) ------------------------------------------------------
    y = jnp.dot(h.astype(jnp.bfloat16), w2_ref[...],
                preferred_element_type=jnp.float32) + b2_ref[...]

    # ---- dropout (identity) + residual + (post-)LayerNorm --------------------
    res = y + x
    out = res if norm_before else layernorm(res)
    out_ref[...] = out.astype(out_ref.dtype)


def _vmem_limit_bytes():
    """~3/4 of physical VMEM, capped at 96 MiB, floored at 32 MiB (v5e default
    scoped limit is only 16 MiB so an explicit value is load-bearing there)."""
    try:
        cap = int(pltpu.get_tpu_info().vmem_capacity_bytes)
    except Exception:
        cap = 64 * 1024 * 1024          # conservative (v7x-sized) fallback
    return max(32 * 1024 * 1024, min(cap * 3 // 4, 96 * 1024 * 1024))


def _default_tile_m(vmem_limit_bytes):
    # 128-MiB chips (v5e/v6e): 512 rows/step; 64-MiB v7x: 256 rows/step.
    return 512 if vmem_limit_bytes >= 96 * 1024 * 1024 else 256


def feed_forward_forward(feature, params, *, norm_before=False, tile_m=None,
                         eps=1e-5, out_dtype=jnp.float32):
    """feature: (B, N, C) f32.  params: dict of f32 weights (see init_params)."""
    B, N, C = feature.shape
    H = params["w1"].shape[1]
    if params["w2"].shape != (H, C):
        raise ValueError(
            "kernel assumes in_ch == out_ch (linear_skip path unsupported)")
    if C % 128 != 0 or H % 128 != 0:
        raise ValueError(
            "in_ch/out_ch and hidden_ch must be multiples of 128 for "
            "lane-dense, unmasked stores")

    M = B * N
    x = feature.reshape(M, C)

    vmem_limit = _vmem_limit_bytes()
    if tile_m is None:
        tile_m = _default_tile_m(vmem_limit)
    # Row tile aligned to sublane granularity (16 when the output is 16-bit so
    # the stored block stays on a packed (16,128) tile boundary).
    row_align = 16 if jnp.dtype(out_dtype).itemsize == 2 else 8
    tm = max(row_align,
             min((tile_m // row_align) * row_align, _round_up(M, row_align)))
    grid = (pl.cdiv(M, tm),)            # partial trailing block handled by Pallas

    # Cast matmul weights to bf16 once (halves weight DMA, native MXU rate);
    # biases / LN affine stay f32.
    w1 = params["w1"].astype(jnp.bfloat16)
    w2 = params["w2"].astype(jnp.bfloat16)
    b1, b2 = params["b1"], params["b2"]
    gamma, beta = params["gamma"], params["beta"]

    kernel = functools.partial(_ffn_kernel, eps=eps, norm_before=norm_before)

    flops = 4 * M * C * H                              # two M x C x H matmuls
    out_bytes = jnp.dtype(out_dtype).itemsize
    bytes_accessed = (M * C * (4 + out_bytes)          # x in, out
                      + (C * H + H * C) * 2            # bf16 weights
                      + (H + 3 * C) * 4)               # biases + gamma/beta

    def build_and_run(single_buffer_consts):
        # Constant-index operands are revisited every grid step; single-buffer
        # them so resident-weight VMEM is halved (what lets tile_m grow on v7x).
        const = (dict(pipeline_mode=pl.Buffered(buffer_count=1))
                 if single_buffer_consts else {})
        in_specs = [
            pl.BlockSpec((tm, C), lambda i: (i, 0)),             # x rows
            pl.BlockSpec((C, H), lambda i: (0, 0), **const),     # w1 (bf16)
            pl.BlockSpec((1, H), lambda i: (0, 0), **const),     # b1
            pl.BlockSpec((H, C), lambda i: (0, 0), **const),     # w2 (bf16)
            pl.BlockSpec((1, C), lambda i: (0, 0), **const),     # b2
            pl.BlockSpec((1, C), lambda i: (0, 0), **const),     # ln gamma
            pl.BlockSpec((1, C), lambda i: (0, 0), **const),     # ln beta
        ]
        call = pl.pallas_call(
            kernel,
            out_shape=jax.ShapeDtypeStruct((M, C), out_dtype),
            grid_spec=pltpu.PrefetchScalarGridSpec(
                num_scalar_prefetch=0,
                grid=grid,
                in_specs=in_specs,
                out_specs=pl.BlockSpec((tm, C), lambda i: (i, 0)),
            ),
            compiler_params=pltpu.CompilerParams(
                dimension_semantics=("parallel",),
                vmem_limit_bytes=vmem_limit,
            ),
            cost_estimate=pl.CostEstimate(flops=flops, transcendentals=0,
                                          bytes_accessed=bytes_accessed),
        )
        return jax.block_until_ready(call(x, w1, b1, w2, b2, gamma, beta))

    try:
        out = build_and_run(True)
    except Exception:
        # TODO(synk): pipeline_mode=pl.Buffered(1) not supported on this jax
        # build; fall back to default double-buffered constant operands.
        out = build_and_run(False)

    return out.reshape(B, N, C)


def feed_forward_reference(feature, params, *, norm_before=False, eps=1e-5):
    """Pure-JAX f32 reference mirroring the PyTorch forward."""
    def ln(v):
        mu = jnp.mean(v, axis=-1, keepdims=True)
        var = jnp.mean((v - mu) ** 2, axis=-1, keepdims=True)
        return (v - mu) / jnp.sqrt(var + eps) * params["gamma"] + params["beta"]

    if norm_before:
        h = ln(feature)
        h = jax.nn.relu(h @ params["w1"] + params["b1"])
        h = h @ params["w2"] + params["b2"]
        return h + feature
    h = jax.nn.relu(feature @ params["w1"] + params["b1"])
    h = h @ params["w2"] + params["b2"]
    return ln(h + feature)


def init_params(key, in_ch, hidden_ch, out_ch):
    assert in_ch == out_ch, "reference forward requires in_ch == out_ch"
    ks = jax.random.split(key, 4)

    def u(k, shape, fan_in):
        bound = 1.0 / jnp.sqrt(jnp.float32(fan_in))
        return jax.random.uniform(k, shape, jnp.float32, -bound, bound)

    return {
        "w1": u(ks[0], (in_ch, hidden_ch), in_ch),
        "b1": u(ks[1], (1, hidden_ch), in_ch),
        "w2": u(ks[2], (hidden_ch, out_ch), hidden_ch),
        "b2": u(ks[3], (1, out_ch), hidden_ch),
        "gamma": jnp.ones((1, out_ch), jnp.float32),
        "beta": jnp.zeros((1, out_ch), jnp.float32),
    }


if __name__ == "__main__":
    # Lane-dense shapes (C, H multiples of 128); enough rows for several grid
    # steps per TensorCore, but still small.
    B, N = 2, 512
    in_ch = out_ch = 256
    hidden_ch = 512

    key = jax.random.PRNGKey(0)
    k_x, k_p = jax.random.split(key)
    feature = jax.random.normal(k_x, (B, N, in_ch), jnp.float32)
    params = init_params(k_p, in_ch, hidden_ch, out_ch)

    # post-LN (module default, norm_before=False)
    out_post = feed_forward_forward(feature, params, norm_before=False)
    ref_post = feed_forward_reference(feature, params, norm_before=False)
    assert out_post.shape == (B, N, out_ch)
    # bf16 MXU operands vs. f32 reference -> loosened tolerance.
    assert jnp.allclose(out_post, ref_post, atol=3e-2, rtol=3e-2), \
        "post-LN mismatch vs reference"

    # pre-LN path (norm_before=True)
    out_pre = feed_forward_forward(feature, params, norm_before=True)
    ref_pre = feed_forward_reference(feature, params, norm_before=True)
    assert jnp.allclose(out_pre, ref_pre, atol=3e-2, rtol=3e-2), \
        "pre-LN mismatch vs reference"

    # Non-divisible row count -> partial trailing block (no host pad / slice).
    feat_odd = feature[:, :500, :]
    out_odd = feed_forward_forward(feat_odd, params, norm_before=False,
                                   tile_m=256)
    ref_odd = feed_forward_reference(feat_odd, params, norm_before=False)
    assert bool(jnp.all(jnp.isfinite(out_odd))), "partial block produced NaN/Inf"
    assert jnp.allclose(out_odd, ref_odd, atol=3e-2, rtol=3e-2), \
        "partial trailing block mismatch vs reference"

    # bf16 output path (HBM-traffic win on v6e/v7x when downstream accepts it).
    out_bf16 = feed_forward_forward(feature, params, norm_before=False,
                                    out_dtype=jnp.bfloat16)
    assert out_bf16.dtype == jnp.bfloat16
    assert jnp.allclose(out_bf16.astype(jnp.float32), ref_post,
                        atol=1e-1, rtol=1e-1), "bf16-output mismatch vs reference"

    print("KERNEL_OK")
</pallas_src>

<mosaic_0001>
module attributes {stable_mosaic.version = 11 : i64} {
  func.func @_ffn_kernel(%arg0: i32, %arg1: memref<256x256xf32, #tpu.memory_space<vmem>>, %arg2: memref<256x512xbf16, #tpu.memory_space<vmem>>, %arg3: memref<1x512xf32, #tpu.memory_space<vmem>>, %arg4: memref<512x256xbf16, #tpu.memory_space<vmem>>, %arg5: memref<1x256xf32, #tpu.memory_space<vmem>>, %arg6: memref<1x256xf32, #tpu.memory_space<vmem>>, %arg7: memref<1x256xf32, #tpu.memory_space<vmem>>, %arg8: memref<256x256xf32, #tpu.memory_space<vmem>>) attributes {dimension_semantics = [#tpu.dimension_semantics<parallel>], iteration_bounds = array<i64: 4>, scalar_prefetch = 0 : i64, scratch_operands = 0 : i64, tpu.core_type = #tpu.core_type<tc>, window_params = [{transform_indices = @transform_0, window_bounds = array<i64: 256, 256>}, {pipeline_mode = #tpu.pipeline_mode<synchronous>, transform_indices = @transform_1, window_bounds = array<i64: 256, 512>}, {pipeline_mode = #tpu.pipeline_mode<synchronous>, transform_indices = @transform_2, window_bounds = array<i64: 1, 512>}, {pipeline_mode = #tpu.pipeline_mode<synchronous>, transform_indices = @transform_3, window_bounds = array<i64: 512, 256>}, {pipeline_mode = #tpu.pipeline_mode<synchronous>, transform_indices = @transform_4, window_bounds = array<i64: 1, 256>}, {pipeline_mode = #tpu.pipeline_mode<synchronous>, transform_indices = @transform_5, window_bounds = array<i64: 1, 256>}, {pipeline_mode = #tpu.pipeline_mode<synchronous>, transform_indices = @transform_6, window_bounds = array<i64: 1, 256>}, {transform_indices = @transform_7, window_bounds = array<i64: 256, 256>}]} {
    %c0 = arith.constant 0 : index
    %c0_0 = arith.constant 0 : index
    %0 = vector.load %arg1[%c0, %c0_0] : memref<256x256xf32, #tpu.memory_space<vmem>>, vector<256x256xf32>
    %1 = arith.truncf %0 : vector<256x256xf32> to vector<256x256xbf16>
    %c0_1 = arith.constant 0 : index
    %c0_2 = arith.constant 0 : index
    %2 = vector.load %arg2[%c0_1, %c0_2] : memref<256x512xbf16, #tpu.memory_space<vmem>>, vector<256x512xbf16>
    %cst = arith.constant dense<0.000000e+00> : vector<256x512xf32>
    %3 = tpu.matmul %1, %2, %cst {dimension_numbers = #tpu.dot_dimension_numbers<[1], [0], [0], [1], [0, 0, 1, 1], [], []>} : vector<256x256xbf16>, vector<256x512xbf16>, vector<256x512xf32> -> vector<256x512xf32>
    %c0_3 = arith.constant 0 : index
    %c0_4 = arith.constant 0 : index
    %4 = vector.load %arg3[%c0_3, %c0_4] : memref<1x512xf32, #tpu.memory_space<vmem>>, vector<1x512xf32>
    %5 = vector.broadcast %4 : vector<1x512xf32> to vector<256x512xf32>
    %6 = arith.addf %3, %5 : vector<256x512xf32>
    %cst_5 = arith.constant 0.000000e+00 : f32
    %7 = vector.broadcast %cst_5 : f32 to vector<256x512xf32>
    %8 = arith.maximumf %6, %7 : vector<256x512xf32>
    %9 = arith.truncf %8 : vector<256x512xf32> to vector<256x512xbf16>
    %c0_6 = arith.constant 0 : index
    %c0_7 = arith.constant 0 : index
    %10 = vector.load %arg4[%c0_6, %c0_7] : memref<512x256xbf16, #tpu.memory_space<vmem>>, vector<512x256xbf16>
    %cst_8 = arith.constant dense<0.000000e+00> : vector<256x256xf32>
    %11 = tpu.matmul %9, %10, %cst_8 {dimension_numbers = #tpu.dot_dimension_numbers<[1], [0], [0], [1], [0, 0, 1, 1], [], []>} : vector<256x512xbf16>, vector<512x256xbf16>, vector<256x256xf32> -> vector<256x256xf32>
    %c0_9 = arith.constant 0 : index
    %c0_10 = arith.constant 0 : index
    %12 = vector.load %arg5[%c0_9, %c0_10] : memref<1x256xf32, #tpu.memory_space<vmem>>, vector<1x256xf32>
    %13 = vector.broadcast %12 : vector<1x256xf32> to vector<256x256xf32>
    %14 = arith.addf %11, %13 : vector<256x256xf32>
    %15 = arith.addf %14, %0 : vector<256x256xf32>
    %cst_11 = arith.constant dense<0.000000e+00> : vector<256xf32>
    %16 = vector.multi_reduction <add>, %15, %cst_11 [1] : vector<256x256xf32> to vector<256xf32>
    %17 = vector.shape_cast %16 : vector<256xf32> to vector<256x1xf32>
    %cst_12 = arith.constant 2.560000e+02 : f32
    %18 = vector.broadcast %cst_12 : f32 to vector<256x1xf32>
    %19 = arith.divf %17, %18 : vector<256x1xf32>
    %20 = vector.broadcast %19 : vector<256x1xf32> to vector<256x256xf32>
    %21 = arith.subf %15, %20 : vector<256x256xf32>
    %22 = arith.mulf %21, %21 : vector<256x256xf32>
    %cst_13 = arith.constant dense<0.000000e+00> : vector<256xf32>
    %23 = vector.multi_reduction <add>, %22, %cst_13 [1] : vector<256x256xf32> to vector<256xf32>
    %24 = vector.shape_cast %23 : vector<256xf32> to vector<256x1xf32>
    %cst_14 = arith.constant 2.560000e+02 : f32
    %25 = vector.broadcast %cst_14 : f32 to vector<256x1xf32>
    %26 = arith.divf %24, %25 : vector<256x1xf32>
    %27 = vector.broadcast %19 : vector<256x1xf32> to vector<256x256xf32>
    %28 = arith.subf %15, %27 : vector<256x256xf32>
    %cst_15 = arith.constant 9.99999974E-6 : f32
    %29 = vector.broadcast %cst_15 : f32 to vector<256x1xf32>
    %30 = arith.addf %26, %29 : vector<256x1xf32>
    %31 = math.rsqrt %30 : vector<256x1xf32>
    %32 = vector.broadcast %31 : vector<256x1xf32> to vector<256x256xf32>
    %33 = arith.mulf %28, %32 : vector<256x256xf32>
    %c0_16 = arith.constant 0 : index
    %c0_17 = arith.constant 0 : index
    %34 = vector.load %arg6[%c0_16, %c0_17] : memref<1x256xf32, #tpu.memory_space<vmem>>, vector<1x256xf32>
    %35 = vector.broadcast %34 : vector<1x256xf32> to vector<256x256xf32>
    %36 = arith.mulf %33, %35 : vector<256x256xf32>
    %c0_18 = arith.constant 0 : index
    %c0_19 = arith.constant 0 : index
    %37 = vector.load %arg7[%c0_18, %c0_19] : memref<1x256xf32, #tpu.memory_space<vmem>>, vector<1x256xf32>
    %38 = vector.broadcast %37 : vector<1x256xf32> to vector<256x256xf32>
    %39 = arith.addf %36, %38 : vector<256x256xf32>
    %c0_20 = arith.constant 0 : index
    %c0_21 = arith.constant 0 : index
    %40 = vector.load %arg8[%c0_20, %c0_21] : memref<256x256xf32, #tpu.memory_space<vmem>>, vector<256x256xf32>
    tpu.vector_store %arg8[%c0_20, %c0_21], %39 {strides = array<i32>} : memref<256x256xf32, #tpu.memory_space<vmem>>, vector<256x256xf32>,
    return
  }
  func.func @transform_0(%arg0: i32) -> (i32, i32) {
    %c0_i32 = arith.constant 0 : i32
    %c0_i32_0 = arith.constant 0 : i32
    return %arg0, %c0_i32 : i32, i32
  }
  func.func @transform_1(%arg0: i32) -> (i32, i32) {
    %c0_i32 = arith.constant 0 : i32
    %c0_i32_0 = arith.constant 0 : i32
    %c0_i32_1 = arith.constant 0 : i32
    return %c0_i32, %c0_i32_0 : i32, i32
  }
  func.func @transform_2(%arg0: i32) -> (i32, i32) {
    %c0_i32 = arith.constant 0 : i32
    %c0_i32_0 = arith.constant 0 : i32
    %c0_i32_1 = arith.constant 0 : i32
    return %c0_i32, %c0_i32_0 : i32, i32
  }
  func.func @transform_3(%arg0: i32) -> (i32, i32) {
    %c0_i32 = arith.constant 0 : i32
    %c0_i32_0 = arith.constant 0 : i32
    %c0_i32_1 = arith.constant 0 : i32
    return %c0_i32, %c0_i32_0 : i32, i32
  }
  func.func @transform_4(%arg0: i32) -> (i32, i32) {
    %c0_i32 = arith.constant 0 : i32
    %c0_i32_0 = arith.constant 0 : i32
    %c0_i32_1 = arith.constant 0 : i32
    return %c0_i32, %c0_i32_0 : i32, i32
  }
  func.func @transform_5(%arg0: i32) -> (i32, i32) {
    %c0_i32 = arith.constant 0 : i32
    %c0_i32_0 = arith.constant 0 : i32
    %c0_i32_1 = arith.constant 0 : i32
    return %c0_i32, %c0_i32_0 : i32, i32
  }
  func.func @transform_6(%arg0: i32) -> (i32, i32) {
    %c0_i32 = arith.constant 0 : i32
    %c0_i32_0 = arith.constant 0 : i32
    %c0_i32_1 = arith.constant 0 : i32
    return %c0_i32, %c0_i32_0 : i32, i32
  }
  func.func @transform_7(%arg0: i32) -> (i32, i32) {
    %c0_i32 = arith.constant 0 : i32
    %c0_i32_0 = arith.constant 0 : i32
    return %arg0, %c0_i32 : i32, i32
  }
}

module attributes {stable_mosaic.version = 11 : i64} {
  func.func @_ffn_kernel(%arg0: i32, %arg1: memref<256x256xf32, #tpu.memory_space<vmem>>, %arg2: memref<256x512xbf16, #tpu.memory_space<vmem>>, %arg3: memref<1x512xf32, #tpu.memory_space<vmem>>, %arg4: memref<512x256xbf16, #tpu.memory_space<vmem>>, %arg5: memref<1x256xf32, #tpu.memory_space<vmem>>, %arg6: memref<1x256xf32, #tpu.memory_space<vmem>>, %arg7: memref<1x256xf32, #tpu.memory_space<vmem>>, %arg8: memref<256x256xf32, #tpu.memory_space<vmem>>) attributes {dimension_semantics = [#tpu.dimension_semantics<parallel>], iteration_bounds = array<i64: 4>, scalar_prefetch = 0 : i64, scratch_operands = 0 : i64, tpu.core_type = #tpu.core_type<tc>, window_params = [{transform_indices = @transform_0, window_bounds = array<i64: 256, 256>}, {pipeline_mode = #tpu.pipeline_mode<synchronous>, transform_indices = @transform_1, window_bounds = array<i64: 256, 512>}, {pipeline_mode = #tpu.pipeline_mode<synchronous>, transform_indices = @transform_2, window_bounds = array<i64: 1, 512>}, {pipeline_mode = #tpu.pipeline_mode<synchronous>, transform_indices = @transform_3, window_bounds = array<i64: 512, 256>}, {pipeline_mode = #tpu.pipeline_mode<synchronous>, transform_indices = @transform_4, window_bounds = array<i64: 1, 256>}, {pipeline_mode = #tpu.pipeline_mode<synchronous>, transform_indices = @transform_5, window_bounds = array<i64: 1, 256>}, {pipeline_mode = #tpu.pipeline_mode<synchronous>, transform_indices = @transform_6, window_bounds = array<i64: 1, 256>}, {transform_indices = @transform_7, window_bounds = array<i64: 256, 256>}]} {
    %c0 = arith.constant 0 : index
    %c0_0 = arith.constant 0 : index
    %0 = vector.load %arg1[%c0, %c0_0] : memref<256x256xf32, #tpu.memory_space<vmem>>, vector<256x256xf32>
    %1 = arith.truncf %0 : vector<256x256xf32> to vector<256x256xbf16>
    %c0_1 = arith.constant 0 : index
    %c0_2 = arith.constant 0 : index
    %2 = vector.load %arg2[%c0_1, %c0_2] : memref<256x512xbf16, #tpu.memory_space<vmem>>, vector<256x512xbf16>
    %cst = arith.constant dense<0.000000e+00> : vector<256x512xf32>
    %3 = tpu.matmul %1, %2, %cst {dimension_numbers = #tpu.dot_dimension_numbers<[1], [0], [0], [1], [0, 0, 1, 1], [], []>} : vector<256x256xbf16>, vector<256x512xbf16>, vector<256x512xf32> -> vector<256x512xf32>
    %c0_3 = arith.constant 0 : index
    %c0_4 = arith.constant 0 : index
    %4 = vector.load %arg3[%c0_3, %c0_4] : memref<1x512xf32, #tpu.memory_space<vmem>>, vector<1x512xf32>
    %5 = vector.broadcast %4 : vector<1x512xf32> to vector<256x512xf32>
    %6 = arith.addf %3, %5 : vector<256x512xf32>
    %cst_5 = arith.constant 0.000000e+00 : f32
    %7 = vector.broadcast %cst_5 : f32 to vector<256x512xf32>
    %8 = arith.maximumf %6, %7 : vector<256x512xf32>
    %9 = arith.truncf %8 : vector<256x512xf32> to vector<256x512xbf16>
    %c0_6 = arith.constant 0 : index
    %c0_7 = arith.constant 0 : index
    %10 = vector.load %arg4[%c0_6, %c0_7] : memref<512x256xbf16, #tpu.memory_space<vmem>>, vector<512x256xbf16>
    %cst_8 = arith.constant dense<0.000000e+00> : vector<256x256xf32>
    %11 = tpu.matmul %9, %10, %cst_8 {dimension_numbers = #tpu.dot_dimension_numbers<[1], [0], [0], [1], [0, 0, 1, 1], [], []>} : vector<256x512xbf16>, vector<512x256xbf16>, vector<256x256xf32> -> vector<256x256xf32>
    %c0_9 = arith.constant 0 : index
    %c0_10 = arith.constant 0 : index
    %12 = vector.load %arg5[%c0_9, %c0_10] : memref<1x256xf32, #tpu.memory_space<vmem>>, vector<1x256xf32>
    %13 = vector.broadcast %12 : vector<1x256xf32> to vector<256x256xf32>
    %14 = arith.addf %11, %13 : vector<256x256xf32>
    %15 = arith.addf %14, %0 : vector<256x256xf32>
    %cst_11 = arith.constant dense<0.000000e+00> : vector<256xf32>
    %16 = vector.multi_reduction <add>, %15, %cst_11 [1] : vector<256x256xf32> to vector<256xf32>
    %17 = vector.shape_cast %16 : vector<256xf32> to vector<256x1xf32>
    %cst_12 = arith.constant 2.560000e+02 : f32
    %18 = vector.broadcast %cst_12 : f32 to vector<256x1xf32>
    %19 = arith.divf %17, %18 : vector<256x1xf32>
    %20 = vector.broadcast %19 : vector<256x1xf32> to vector<256x256xf32>
    %21 = arith.subf %15, %20 : vector<256x256xf32>
    %22 = arith.mulf %21, %21 : vector<256x256xf32>
    %cst_13 = arith.constant dense<0.000000e+00> : vector<256xf32>
    %23 = vector.multi_reduction <add>, %22, %cst_13 [1] : vector<256x256xf32> to vector<256xf32>
    %24 = vector.shape_cast %23 : vector<256xf32> to vector<256x1xf32>
    %cst_14 = arith.constant 2.560000e+02 : f32
    %25 = vector.broadcast %cst_14 : f32 to vector<256x1xf32>
    %26 = arith.divf %24, %25 : vector<256x1xf32>
    %27 = vector.broadcast %19 : vector<256x1xf32> to vector<256x256xf32>
    %28 = arith.subf %15, %27 : vector<256x256xf32>
    %cst_15 = arith.constant 9.99999974E-6 : f32
    %29 = vector.broadcast %cst_15 : f32 to vector<256x1xf32>
    %30 = arith.addf %26, %29 : vector<256x1xf32>
    %31 = math.rsqrt %30 : vector<256x1xf32>
    %32 = vector.broadcast %31 : vector<256x1xf32> to vector<256x256xf32>
    %33 = arith.mulf %28, %32 : vector<256x256xf32>
    %c0_16 = arith.constant 0 : index
    %c0_17 = arith.constant 0 : index
    %34 = vector.load %arg6[%c0_16, %c0_17] : memref<1x256xf32, #tpu.memory_space<vmem>>, vector<1x256xf32>
    %35 = vector.broadcast %34 : vector<1x256xf32> to vector<256x256xf32>
    %36 = arith.mulf %33, %35 : vector<256x256xf32>
    %c0_18 = arith.constant 0 : index
    %c0_19 = arith.constant 0 : index
    %37 = vector.load %arg7[%c0_18, %c0_19] : memref<1x256xf32, #tpu.memory_space<vmem>>, vector<1x256xf32>
    %38 = vector.broadcast %37 : vector<1x256xf32> to vector<256x256xf32>
    %39 = arith.addf %36, %38 : vector<256x256xf32>
    %c0_20 = arith.constant 0 : index
    %c0_21 = arith.constant 0 : index
    %40 = vector.load %arg8[%c0_20, %c0_21] : memref<256x256xf32, #tpu.memory_space<vmem>>, vector<256x256xf32>
    tpu.vector_store %arg8[%c0_20, %c0_21], %39 {strides = array<i32>} : memref<256x256xf32, #tpu.memory_space<vmem>>, vector<256x256xf32>,
    return
  }
  func.func @transform_0(%arg0: i32) -> (i32, i32) {
    %c0_i32 = arith.constant 0 : i32
    %c0_i32_0 = arith.constant 0 : i32
    return %arg0, %c0_i32 : i32, i32
  }
  func.func @transform_1(%arg0: i32) -> (i32, i32) {
    %c0_i32 = arith.constant 0 : i32
    %c0_i32_0 = arith.constant 0 : i32
    %c0_i32_1 = arith.constant 0 : i32
    return %c0_i32, %c0_i32_0 : i32, i32
  }
  func.func @transform_2(%arg0: i32) -> (i32, i32) {
    %c0_i32 = arith.constant 0 : i32
    %c0_i32_0 = arith.constant 0 : i32
    %c0_i32_1 = arith.constant 0 : i32
    return %c0_i32, %c0_i32_0 : i32, i32
  }
  func.func @transform_3(%arg0: i32) -> (i32, i32) {
    %c0_i32 = arith.constant 0 : i32
    %c0_i32_0 = arith.constant 0 : i32
    %c0_i32_1 = arith.constant 0 : i32
    return %c0_i32, %c0_i32_0 : i32, i32
  }
  func.func @transform_4(%arg0: i32) -> (i32, i32) {
    %c0_i32 = arith.constant 0 : i32
    %c0_i32_0 = arith.constant 0 : i32
    %c0_i32_1 = arith.constant 0 : i32
    return %c0_i32, %c0_i32_0 : i32, i32
  }
  func.func @transform_5(%arg0: i32) -> (i32, i32) {
    %c0_i32 = arith.constant 0 : i32
    %c0_i32_0 = arith.constant 0 : i32
    %c0_i32_1 = arith.constant 0 : i32
    return %c0_i32, %c0_i32_0 : i32, i32
  }
  func.func @transform_6(%arg0: i32) -> (i32, i32) {
    %c0_i32 = arith.constant 0 : i32
    %c0_i32_0 = arith.constant 0 : i32
    %c0_i32_1 = arith.constant 0 : i32
    return %c0_i32, %c0_i32_0 : i32, i32
  }
  func.func @transform_7(%arg0: i32) -> (i32, i32) {
    %c0_i32 = arith.constant 0 : i32
    %c0_i32_0 = arith.constant 0 : i32
    return %arg0, %c0_i32 : i32, i32
  }
}

</mosaic_0001>

<llo_original>
// kernel: tpu_custom_call.1
$region0: #{tpu_custom_call.1}
  #allocation0 [shape = 'u32[]', space=smem, size = 0x4, offset = 0x4, fixed_abs, tag = 'smem constant byte address 0x4 - core index']
  #allocation1 [shape = 'u32[144,128]{1,0:T(1,128)}', space=vmem, size = 0x12000, scoped, tag = 'internal scratch']
  %s0 = inlined_call_operand.hbm [shape: f32[1024,256], index: 0, kind: input, shape index: {}]
  %s1 = inlined_call_operand.hbm [shape: bf16[256,512], index: 1, kind: input, shape index: {}]
  %s2 = inlined_call_operand.hbm [shape: f32[1,512], index: 2, kind: input, shape index: {}]
  %s3 = inlined_call_operand.hbm [shape: bf16[512,256], index: 3, kind: input, shape index: {}]
  %s4 = inlined_call_operand.vmem [shape: f32[1,256], index: 4, kind: input, shape index: {}]
  %s5 = inlined_call_operand.vmem [shape: f32[1,256], index: 5, kind: input, shape index: {}]
  %s6 = inlined_call_operand.vmem [shape: f32[1,256], index: 6, kind: input, shape index: {}]
  %s7 = inlined_call_operand.hbm [shape: f32[1024,256], index: 7, kind: output, shape index: {}]
  %s8 = sld [smem:[#allocation0]]
  $region77: #{tpu_custom_call.1} parent=0
    _
  %s10 = ssub.s32 1, %s8
  %s11 = scalar_select 0, %s10, %s8
  $region1: #{tpu_custom_call.1} parent=0
    #allocation2 [shape = 'u8[524288]{0}', space=vmem, size = 0x80000, scoped, tag = 'input window, operand 0']
    #allocation3 [shape = 's32[2]{0}', space=sflag, size = 0x8, scoped, tag = 'scoped memory for tpu_custom_call.1']
    #allocation4 [shape = 's32[2]{0}', space=sflag, size = 0x8, scoped, tag = 'scoped memory for tpu_custom_call.1']
    #allocation5 [shape = 'u8[262144]{0}', space=vmem, size = 0x40000, scoped, tag = 'input window, operand 1, single buffered']
    #allocation6 [shape = 's32[1]{0}', space=sflag, size = 0x4, scoped, tag = 'scoped memory for tpu_custom_call.1']
    #allocation7 [shape = 'u8[2048]{0}', space=vmem, size = 0x800, scoped, tag = 'input window, operand 2, single buffered']
    #allocation8 [shape = 'u8[262144]{0}', space=vmem, size = 0x40000, scoped, tag = 'input window, operand 3, single buffered']
    #allocation9 [shape = 's32[1]{0}', space=sflag, size = 0x4, scoped, tag = 'scoped memory for tpu_custom_call.1']
    #allocation10 [shape = 'u8[524288]{0}', space=vmem, size = 0x80000, scoped, tag = 'output window, operand 0']
    %12 = vsyncpa [#allocation3], 0
    %s13 = scalar_lea.sflag [#allocation3], 1
    %14 = vsyncpa %s13, 0
    %15 = vsyncpa [#allocation6], 0
    %16 = vsyncpa [#allocation9], 0
    %17 = vsyncpa [#allocation4], 0
    %s18 = scalar_lea.sflag [#allocation4], 1
    %19 = vsyncpa %s18, 0
    loop: start=0, step=1, limit=6
    $region2: #{tpu_custom_call.1} parent=1 // loop_pre_header
      _
    $region3: #{tpu_custom_call.1} parent=1 // loop_header
      %s21 = sphi 0, %s25
      %p22 = scmp.ge.s32.totalorder %s21, 6
      %s31 = sphi 0, %s33
      %s34 = sphi 0, %s31
      %s35 = sphi 0, %s34
      %s51 = sphi 0, %s35
      %s55 = sphi 0, %s55
      %s57 = sphi 0, %s55
      %s58 = sphi 0, %s57
      %s72 = sphi 0, %s58
      %s76 = sphi 0, %s76
      %s78 = sphi 0, %s76
      %s79 = sphi 0, %s78
      %s93 = sphi 0, %s79
      %s97 = sphi 0, %s97
      %s99 = sphi 0, %s97
      %s100 = sphi 0, %s99
      %s114 = sphi 0, %s100
      %s118 = sphi 0, %s118
      %s120 = sphi 0, %s118
      %s121 = sphi 0, %s120
      %s135 = sphi 0, %s121
      %s139 = sphi 0, %s139
      %s141 = sphi 0, %s139
      %s142 = sphi 0, %s141
      %s156 = sphi 0, %s142
      %s160 = sphi 0, %s160
      %s162 = sphi 0, %s160
      %s163 = sphi 0, %s162
      %s177 = sphi 0, %s163
      %s183 = sphi 0, %s185
      %s186 = sphi 0, %s183
      %s187 = sphi 0, %s186
      %s203 = sphi 0, %s187
    $region4: #{tpu_custom_call.1} parent=1 // loop_header_branch
      %24 = sbr.rel (%p22) target = $region8
    $region5: #{tpu_custom_call.1} parent=1 // loop_body
      %s26 = ssub.s32 %s21, 1
      %s27 = ssub.s32 %s21, 2
      %s28 = sadd.s32 %s21, 1
      %s29 = ssub.s32 %s21, %s28
      %p30 = scmp.eq.s32.totalorder %s29, 0
      %s32 = sadd.s32 %s31, 1
      %s33 = scalar_select %p30, %s31, %s32
      %p36 = pneg %p30
      %p37 = scmp.eq.s32.totalorder %s21, 3
      %p38 = por %p36, %p37
      %p39 = scmp.ne.s32.totalorder %s31, %s34
      %p40 = scmp.eq.s32.totalorder %s21, 0
      %p41 = por %p39, %p40
      %p42 = scmp.ne.s32.totalorder %s31, %s34
      %p43 = scmp.eq.s32.totalorder %s26, 3
      %p44 = por %p42, %p43
      %p45 = scmp.ne.s32.totalorder %s34, %s35
      %p46 = scmp.eq.s32.totalorder %s26, 0
      %p47 = por %p45, %p46
      %p48 = scmp.ne.s32.totalorder %s34, %s35
      %p49 = scmp.eq.s32.totalorder %s27, 3
      %p50 = por %p48, %p49
      %p52 = scmp.ne.s32.totalorder %s35, %s51
      %p53 = scmp.eq.s32.totalorder %s27, 0
      %p54 = por %p52, %p53
      %s56 = sadd.s32 %s55, 1
      %p59 = scmp.eq.s32.totalorder %s21, 3
      %p60 = scmp.ne.s32.totalorder %s55, %s57
      %p61 = scmp.eq.s32.totalorder %s21, 0
      %p62 = por %p60, %p61
      %p63 = scmp.ne.s32.totalorder %s55, %s57
      %p64 = scmp.eq.s32.totalorder %s26, 3
      %p65 = por %p63, %p64
      %p66 = scmp.ne.s32.totalorder %s57, %s58
      %p67 = scmp.eq.s32.totalorder %s26, 0
      %p68 = por %p66, %p67
      %p69 = scmp.ne.s32.totalorder %s57, %s58
      %p70 = scmp.eq.s32.totalorder %s27, 3
      %p71 = por %p69, %p70
      %p73 = scmp.ne.s32.totalorder %s58, %s72
      %p74 = scmp.eq.s32.totalorder %s27, 0
      %p75 = por %p73, %p74
      %s77 = sadd.s32 %s76, 1
      %p80 = scmp.eq.s32.totalorder %s21, 3
      %p81 = scmp.ne.s32.totalorder %s76, %s78
      %p82 = scmp.eq.s32.totalorder %s21, 0
      %p83 = por %p81, %p82
      %p84 = scmp.ne.s32.totalorder %s76, %s78
      %p85 = scmp.eq.s32.totalorder %s26, 3
      %p86 = por %p84, %p85
      %p87 = scmp.ne.s32.totalorder %s78, %s79
      %p88 = scmp.eq.s32.totalorder %s26, 0
      %p89 = por %p87, %p88
      %p90 = scmp.ne.s32.totalorder %s78, %s79
      %p91 = scmp.eq.s32.totalorder %s27, 3
      %p92 = por %p90, %p91
      %p94 = scmp.ne.s32.totalorder %s79, %s93
      %p95 = scmp.eq.s32.totalorder %s27, 0
      %p96 = por %p94, %p95
      %s98 = sadd.s32 %s97, 1
      %p101 = scmp.eq.s32.totalorder %s21, 3
      %p102 = scmp.ne.s32.totalorder %s97, %s99
      %p103 = scmp.eq.s32.totalorder %s21, 0
      %p104 = por %p102, %p103
      %p105 = scmp.ne.s32.totalorder %s97, %s99
      %p106 = scmp.eq.s32.totalorder %s26, 3
      %p107 = por %p105, %p106
      %p108 = scmp.ne.s32.totalorder %s99, %s100
      %p109 = scmp.eq.s32.totalorder %s26, 0
      %p110 = por %p108, %p109
      %p111 = scmp.ne.s32.totalorder %s99, %s100
      %p112 = scmp.eq.s32.totalorder %s27, 3
      %p113 = por %p111, %p112
      %p115 = scmp.ne.s32.totalorder %s100, %s114
      %p116 = scmp.eq.s32.totalorder %s27, 0
      %p117 = por %p115, %p116
      %s119 = sadd.s32 %s118, 1
      %p122 = scmp.eq.s32.totalorder %s21, 3
      %p123 = scmp.ne.s32.totalorder %s118, %s120
      %p124 = scmp.eq.s32.totalorder %s21, 0
      %p125 = por %p123, %p124
      %p126 = scmp.ne.s32.totalorder %s118, %s120
      %p127 = scmp.eq.s32.totalorder %s26, 3
      %p128 = por %p126, %p127
      %p129 = scmp.ne.s32.totalorder %s120, %s121
      %p130 = scmp.eq.s32.totalorder %s26, 0
      %p131 = por %p129, %p130
      %p132 = scmp.ne.s32.totalorder %s120, %s121
      %p133 = scmp.eq.s32.totalorder %s27, 3
      %p134 = por %p132, %p133
      %p136 = scmp.ne.s32.totalorder %s121, %s135
      %p137 = scmp.eq.s32.totalorder %s27, 0
      %p138 = por %p136, %p137
      %s140 = sadd.s32 %s139, 1
      %p143 = scmp.eq.s32.totalorder %s21, 3
      %p144 = scmp.ne.s32.totalorder %s139, %s141
      %p145 = scmp.eq.s32.totalorder %s21, 0
      %p146 = por %p144, %p145
      %p147 = scmp.ne.s32.totalorder %s139, %s141
      %p148 = scmp.eq.s32.totalorder %s26, 3
      %p149 = por %p147, %p148
      %p150 = scmp.ne.s32.totalorder %s141, %s142
      %p151 = scmp.eq.s32.totalorder %s26, 0
      %p152 = por %p150, %p151
      %p153 = scmp.ne.s32.totalorder %s141, %s142
      %p154 = scmp.eq.s32.totalorder %s27, 3
      %p155 = por %p153, %p154
      %p157 = scmp.ne.s32.totalorder %s142, %s156
      %p158 = scmp.eq.s32.totalorder %s27, 0
      %p159 = por %p157, %p158
      %s161 = sadd.s32 %s160, 1
      %p164 = scmp.eq.s32.totalorder %s21, 3
      %p165 = scmp.ne.s32.totalorder %s160, %s162
      %p166 = scmp.eq.s32.totalorder %s21, 0
      %p167 = por %p165, %p166
      %p168 = scmp.ne.s32.totalorder %s160, %s162
      %p169 = scmp.eq.s32.totalorder %s26, 3
      %p170 = por %p168, %p169
      %p171 = scmp.ne.s32.totalorder %s162, %s163
      %p172 = scmp.eq.s32.totalorder %s26, 0
      %p173 = por %p171, %p172
      %p174 = scmp.ne.s32.totalorder %s162, %s163
      %p175 = scmp.eq.s32.totalorder %s27, 3
      %p176 = por %p174, %p175
      %p178 = scmp.ne.s32.totalorder %s163, %s177
      %p179 = scmp.eq.s32.totalorder %s27, 0
      %p180 = por %p178, %p179
      %s181 = ssub.s32 %s21, %s28
      %p182 = scmp.eq.s32.totalorder %s181, 0
      %s184 = sadd.s32 %s183, 1
      %s185 = scalar_select %p182, %s183, %s184
      %p188 = pneg %p182
      %p189 = scmp.eq.s32.totalorder %s21, 3
      %p190 = por %p188, %p189
      %p191 = scmp.ne.s32.totalorder %s183, %s186
      %p192 = scmp.eq.s32.totalorder %s21, 0
      %p193 = por %p191, %p192
      %p194 = scmp.ne.s32.totalorder %s183, %s186
      %p195 = scmp.eq.s32.totalorder %s26, 3
      %p196 = por %p194, %p195
      %p197 = scmp.ne.s32.totalorder %s186, %s187
      %p198 = scmp.eq.s32.totalorder %s26, 0
      %p199 = por %p197, %p198
      %p200 = scmp.ne.s32.totalorder %s186, %s187
      %p201 = scmp.eq.s32.totalorder %s27, 3
      %p202 = por %p200, %p201
      %p204 = scmp.ne.s32.totalorder %s187, %s203
      %p205 = scmp.eq.s32.totalorder %s27, 0
      %p206 = por %p204, %p205
      %p207 = scmp.le.s32.totalorder 1, %s21
      %p208 = scmp.lt.s32.totalorder %s21, 5
      %p209 = pnand %p207, %p208
      %p210 = pneg %p209
      // Predicated region
      $region9: #{tpu_custom_call.1} parent=5 // pred_check
        _
      $region10: #{tpu_custom_call.1} parent=5 // pred_check_branch
        %212 = sbr.rel (%p209) target = $region12
      $region11: #{tpu_custom_call.1} parent=5 // pred_region
        %s213 = ssub.s32 %s21, 1
        // Predicated region
        $region13: #{tpu_custom_call.1} parent=11 // pred_check
          %p214 = pneg %p68
        $region14: #{tpu_custom_call.1} parent=11 // pred_check_branch
          %216 = sbr.rel (%p214) target = $region16
        $region15: #{tpu_custom_call.1} parent=11 // pred_region
          %s218 = ssub.s32 8192, 8192
          %219 = vsyncadd [#allocation6], %s218
          %s220 = sshll.u32 [#allocation5], 4
          %s221 = int_to_ptr.vmem [resolvable:$true] %s220
          %226 = dma.hbm_to_vmem [thread:$0]  %s1, 8192, %s221, [#allocation6], 256, 256, 16
        $region16: #{tpu_custom_call.1} parent=11 // pred_fallthru
          _
        // Predicated region
        $region17: #{tpu_custom_call.1} parent=11 // pred_check
          %p227 = pneg %p89
        $region18: #{tpu_custom_call.1} parent=11 // pred_check_branch
          %229 = sbr.rel (%p227) target = $region20
        $region19: #{tpu_custom_call.1} parent=11 // pred_region
          %s231 = ssub.s32 64, 64
          %232 = vsyncadd [#allocation6], %s231
          %s234 = sshll.u32 [#allocation7], 4
          %s235 = int_to_ptr.vmem [resolvable:$true] %s234
          %237 = dma.hbm_to_vmem [thread:$0]  %s2, 64, %s235, [#allocation6]
        $region20: #{tpu_custom_call.1} parent=11 // pred_fallthru
          _
        // Predicated region
        $region21: #{tpu_custom_call.1} parent=11 // pred_check
          %p238 = pneg %p110
        $region22: #{tpu_custom_call.1} parent=11 // pred_check_branch
          %240 = sbr.rel (%p238) target = $region24
        $region23: #{tpu_custom_call.1} parent=11 // pred_region
          %s242 = ssub.s32 8192, 8192
          %243 = vsyncadd [#allocation9], %s242
          %s244 = sshll.u32 [#allocation8], 4
          %s245 = int_to_ptr.vmem [resolvable:$true] %s244
          %250 = dma.hbm_to_vmem [thread:$0]  %s3, 8192, %s245, [#allocation9], 128, 128, 8
        $region24: #{tpu_custom_call.1} parent=11 // pred_fallthru
          _
        // Predicated region
        $region25: #{tpu_custom_call.1} parent=11 // pred_check
          %p251 = pneg %p131
        $region26: #{tpu_custom_call.1} parent=11 // pred_check_branch
          %253 = sbr.rel (%p251) target = $region28
        $region27: #{tpu_custom_call.1} parent=11 // pred_region
          _
        $region28: #{tpu_custom_call.1} parent=11 // pred_fallthru
          _
        // Predicated region
        $region29: #{tpu_custom_call.1} parent=11 // pred_check
          %p254 = pneg %p152
        $region30: #{tpu_custom_call.1} parent=11 // pred_check_branch
          %256 = sbr.rel (%p254) target = $region32
        $region31: #{tpu_custom_call.1} parent=11 // pred_region
          _
        $region32: #{tpu_custom_call.1} parent=11 // pred_fallthru
          _
        // Predicated region
        $region33: #{tpu_custom_call.1} parent=11 // pred_check
          %p257 = pneg %p173
        $region34: #{tpu_custom_call.1} parent=11 // pred_check_branch
          %259 = sbr.rel (%p257) target = $region36
        $region35: #{tpu_custom_call.1} parent=11 // pred_region
          _
        $region36: #{tpu_custom_call.1} parent=11 // pred_fallthru
          _
      $region12: #{tpu_custom_call.1} parent=5 // pred_fallthru
        _
      %p260 = scmp.lt.s32.totalorder %s21, 4
      // Predicated region
      $region37: #{tpu_custom_call.1} parent=5 // pred_check
        %p261 = pneg %p260
      $region38: #{tpu_custom_call.1} parent=5 // pred_check_branch
        %263 = sbr.rel (%p261) target = $region40
      $region39: #{tpu_custom_call.1} parent=5 // pred_region
        // Predicated region
        $region41: #{tpu_custom_call.1} parent=39 // pred_check
          %p264 = pneg %p41
        $region42: #{tpu_custom_call.1} parent=39 // pred_check_branch
          %266 = sbr.rel (%p264) target = $region44
        $region43: #{tpu_custom_call.1} parent=39 // pred_region
          %s267 = sand.u32 %s31, 1
          %s268 = scalar_lea.sflag [#allocation3], %s267
          %s269 = sand.u32 %s31, 1
          %s270 = smul.addr %s269, 512
          %s271 = scalar_lea.vmem [#allocation2], %s270
          %s272 = smul.u32 32, %s21
          %s274 = ssub.s32 8192, 8192
          %275 = vsyncadd %s268, %s274
          %s276 = smul.addr %s272, 2
          %s277 = smul.addr %s276, 128
          %s278 = scalar_lea.hbm %s0, %s277
          %s279 = sshll.u32 %s271, 4
          %s280 = int_to_ptr.vmem [resolvable:$true] %s279
          %285 = dma.hbm_to_vmem [thread:$0]  %s278, 8192, %s280, %s268, 256, 256, 16
        $region44: #{tpu_custom_call.1} parent=39 // pred_fallthru
          _
      $region40: #{tpu_custom_call.1} parent=5 // pred_fallthru
        _
      %p286 = scmp.le.s32.totalorder 1, %s21
      %p287 = scmp.lt.s32.totalorder %s21, 5
      %p288 = pnand %p286, %p287
      %p289 = pneg %p288
      // Predicated region
      $region45: #{tpu_custom_call.1} parent=5 // pred_check
        _
      $region46: #{tpu_custom_call.1} parent=5 // pred_check_branch
        %291 = sbr.rel (%p288) target = $region48
      $region47: #{tpu_custom_call.1} parent=5 // pred_region
        %s292 = ssub.s32 %s21, 1
        %s293 = sand.u32 %s34, 1
        %s294 = scalar_lea.sflag [#allocation3], %s293
        %s295 = sand.u32 %s34, 1
        %s296 = smul.addr %s295, 512
        %s297 = scalar_lea.vmem [#allocation2], %s296
        // Predicated region
        $region49: #{tpu_custom_call.1} parent=47 // pred_check
          %p298 = pneg %p47
        $region50: #{tpu_custom_call.1} parent=47 // pred_check_branch
          %300 = sbr.rel (%p298) target = $region52
        $region51: #{tpu_custom_call.1} parent=47 // pred_region
          %301 = dma.done %s294, 8192
        $region52: #{tpu_custom_call.1} parent=47 // pred_fallthru
          _
        // Predicated region
        $region53: #{tpu_custom_call.1} parent=47 // pred_check
          %p302 = pneg %p68
        $region54: #{tpu_custom_call.1} parent=47 // pred_check_branch
          %304 = sbr.rel (%p302) target = $region56
        $region55: #{tpu_custom_call.1} parent=47 // pred_region
          %305 = dma.done [#allocation6], 8192
        $region56: #{tpu_custom_call.1} parent=47 // pred_fallthru
          _
        // Predicated region
        $region57: #{tpu_custom_call.1} parent=47 // pred_check
          %p306 = pneg %p89
        $region58: #{tpu_custom_call.1} parent=47 // pred_check_branch
          %308 = sbr.rel (%p306) target = $region60
        $region59: #{tpu_custom_call.1} parent=47 // pred_region
          %309 = dma.done [#allocation6], 64
        $region60: #{tpu_custom_call.1} parent=47 // pred_fallthru
          _
        // Predicated region
        $region61: #{tpu_custom_call.1} parent=47 // pred_check
          %p310 = pneg %p110
        $region62: #{tpu_custom_call.1} parent=47 // pred_check_branch
          %312 = sbr.rel (%p310) target = $region64
        $region63: #{tpu_custom_call.1} parent=47 // pred_region
          %313 = dma.done [#allocation9], 8192
        $region64: #{tpu_custom_call.1} parent=47 // pred_fallthru
          _
        %s314 = sand.u32 %s34, 1
        %s315 = scalar_lea.sflag [#allocation3], %s314
        %s316 = sand.u32 %s34, 1
        %s317 = smul.addr %s316, 512
        %s318 = scalar_lea.vmem [#allocation2], %s317
        %p319 = pneg %p47
        %p320 = pneg %p44
        %p321 = pneg %p68
        %p322 = pneg %p65
        %p323 = pneg %p89
        %p324 = pneg %p86
        %p325 = pneg %p110
        %p326 = pneg %p107
        %p327 = pneg %p131
        %p328 = pneg %p128
        %p329 = pneg %p152
        %p330 = pneg %p149
        %p331 = pneg %p173
        %p332 = pneg %p170
        %p333 = pneg %p199
        %p334 = pneg %p196
        %s335 = sand.u32 %s186, 1
        %s336 = scalar_lea.sflag [#allocation4], %s335
        %s337 = sand.u32 %s186, 1
        %s338 = smul.addr %s337, 512
        %s339 = scalar_lea.vmem [#allocation10], %s338
        %s340 = smul.u32 32, %s26
        %s341 = smul.u32 32, %s26
        %v342 = vld [vmem:[%s297] sm:$0xff]
        %v343 = vld [vmem:[%s297 + $0x8] sm:$0xff]
        %v344 = vld [vmem:[%s297 + $0x10] sm:$0xff]
        %v345 = vld [vmem:[%s297 + $0x18] sm:$0xff]
        %v346 = vld [vmem:[%s297 + $0x20] sm:$0xff]
        %v347 = vld [vmem:[%s297 + $0x28] sm:$0xff]
        %v348 = vld [vmem:[%s297 + $0x30] sm:$0xff]
        %v349 = vld [vmem:[%s297 + $0x38] sm:$0xff]
        %v350 = vld [vmem:[%s297 + $0x40] sm:$0xff]
        %v351 = vld [vmem:[%s297 + $0x48] sm:$0xff]
        %v352 = vld [vmem:[%s297 + $0x50] sm:$0xff]
        %v353 = vld [vmem:[%s297 + $0x58] sm:$0xff]
        %v354 = vld [vmem:[%s297 + $0x60] sm:$0xff]
        %v355 = vld [vmem:[%s297 + $0x68] sm:$0xff]
        %v356 = vld [vmem:[%s297 + $0x70] sm:$0xff]
        %v357 = vld [vmem:[%s297 + $0x78] sm:$0xff]
        %v358 = vld [vmem:[%s297 + $0x80] sm:$0xff]
        %v359 = vld [vmem:[%s297 + $0x88] sm:$0xff]
        %v360 = vld [vmem:[%s297 + $0x90] sm:$0xff]
        %v361 = vld [vmem:[%s297 + $0x98] sm:$0xff]
        %v362 = vld [vmem:[%s297 + $0xa0] sm:$0xff]
        %v363 = vld [vmem:[%s297 + $0xa8] sm:$0xff]
        %v364 = vld [vmem:[%s297 + $0xb0] sm:$0xff]
        %v365 = vld [vmem:[%s297 + $0xb8] sm:$0xff]
        %v366 = vld [vmem:[%s297 + $0xc0] sm:$0xff]
        %v367 = vld [vmem:[%s297 + $0xc8] sm:$0xff]
        %v368 = vld [vmem:[%s297 + $0xd0] sm:$0xff]
        %v369 = vld [vmem:[%s297 + $0xd8] sm:$0xff]
        %v370 = vld [vmem:[%s297 + $0xe0] sm:$0xff]
        %v371 = vld [vmem:[%s297 + $0xe8] sm:$0xff]
        %v372 = vld [vmem:[%s297 + $0xf0] sm:$0xff]
        %v373 = vld [vmem:[%s297 + $0xf8] sm:$0xff]
        %v374 = vld [vmem:[%s297 + $0x100] sm:$0xff]
        %v375 = vld [vmem:[%s297 + $0x108] sm:$0xff]
        %v376 = vld [vmem:[%s297 + $0x110] sm:$0xff]
        %v377 = vld [vmem:[%s297 + $0x118] sm:$0xff]
        %v378 = vld [vmem:[%s297 + $0x120] sm:$0xff]
        %v379 = vld [vmem:[%s297 + $0x128] sm:$0xff]
        %v380 = vld [vmem:[%s297 + $0x130] sm:$0xff]
        %v381 = vld [vmem:[%s297 + $0x138] sm:$0xff]
        %v382 = vld [vmem:[%s297 + $0x140] sm:$0xff]
        %v383 = vld [vmem:[%s297 + $0x148] sm:$0xff]
        %v384 = vld [vmem:[%s297 + $0x150] sm:$0xff]
        %v385 = vld [vmem:[%s297 + $0x158] sm:$0xff]
        %v386 = vld [vmem:[%s297 + $0x160] sm:$0xff]
        %v387 = vld [vmem:[%s297 + $0x168] sm:$0xff]
        %v388 = vld [vmem:[%s297 + $0x170] sm:$0xff]
        %v389 = vld [vmem:[%s297 + $0x178] sm:$0xff]
        %v390 = vld [vmem:[%s297 + $0x180] sm:$0xff]
        %v391 = vld [vmem:[%s297 + $0x188] sm:$0xff]
        %v392 = vld [vmem:[%s297 + $0x190] sm:$0xff]
        %v393 = vld [vmem:[%s297 + $0x198] sm:$0xff]
        %v394 = vld [vmem:[%s297 + $0x1a0] sm:$0xff]
        %v395 = vld [vmem:[%s297 + $0x1a8] sm:$0xff]
        %v396 = vld [vmem:[%s297 + $0x1b0] sm:$0xff]
        %v397 = vld [vmem:[%s297 + $0x1b8] sm:$0xff]
        %v398 = vld [vmem:[%s297 + $0x1c0] sm:$0xff]
        %v399 = vld [vmem:[%s297 + $0x1c8] sm:$0xff]
        %v400 = vld [vmem:[%s297 + $0x1d0] sm:$0xff]
        %v401 = vld [vmem:[%s297 + $0x1d8] sm:$0xff]
        %v402 = vld [vmem:[%s297 + $0x1e0] sm:$0xff]
        %v403 = vld [vmem:[%s297 + $0x1e8] sm:$0xff]
        %v404 = vld [vmem:[%s297 + $0x1f0] sm:$0xff]
        %v405 = vld [vmem:[%s297 + $0x1f8] sm:$0xff]
        %v406 = vpack.c.bf16 %v344, %v342
        %v407 = vpack.c.bf16 %v345, %v343
        %v408 = vpack.c.bf16 %v348, %v346
        %v409 = vpack.c.bf16 %v349, %v347
        %v410 = vpack.c.bf16 %v352, %v350
        %v411 = vpack.c.bf16 %v353, %v351
        %v412 = vpack.c.bf16 %v356, %v354
        %v413 = vpack.c.bf16 %v357, %v355
        %v414 = vpack.c.bf16 %v360, %v358
        %v415 = vpack.c.bf16 %v361, %v359
        %v416 = vpack.c.bf16 %v364, %v362
        %v417 = vpack.c.bf16 %v365, %v363
        %v418 = vpack.c.bf16 %v368, %v366
        %v419 = vpack.c.bf16 %v369, %v367
        %v420 = vpack.c.bf16 %v372, %v370
        %v421 = vpack.c.bf16 %v373, %v371
        %v422 = vpack.c.bf16 %v376, %v374
        %v423 = vpack.c.bf16 %v377, %v375
        %v424 = vpack.c.bf16 %v380, %v378
        %v425 = vpack.c.bf16 %v381, %v379
        %v426 = vpack.c.bf16 %v384, %v382
        %v427 = vpack.c.bf16 %v385, %v383
        %v428 = vpack.c.bf16 %v388, %v386
        %v429 = vpack.c.bf16 %v389, %v387
        %v430 = vpack.c.bf16 %v392, %v390
        %v431 = vpack.c.bf16 %v393, %v391
        %v432 = vpack.c.bf16 %v396, %v394
        %v433 = vpack.c.bf16 %v397, %v395
        %v434 = vpack.c.bf16 %v400, %v398
        %v435 = vpack.c.bf16 %v401, %v399
        %v436 = vpack.c.bf16 %v404, %v402
        %v437 = vpack.c.bf16 %v405, %v403
        %v438 = vld [vmem:[#allocation5] sm:$0xff]
        %v439 = vld [vmem:[#allocation5 + $0x8] sm:$0xff]
        %v440 = vld [vmem:[#allocation5 + $0x10] sm:$0xff]
        %v441 = vld [vmem:[#allocation5 + $0x18] sm:$0xff]
        %v442 = vld [vmem:[#allocation5 + $0x20] sm:$0xff]
        %v443 = vld [vmem:[#allocation5 + $0x28] sm:$0xff]
        %v444 = vld [vmem:[#allocation5 + $0x30] sm:$0xff]
        %v445 = vld [vmem:[#allocation5 + $0x38] sm:$0xff]
        %v446 = vld [vmem:[#allocation5 + $0x40] sm:$0xff]
        %v447 = vld [vmem:[#allocation5 + $0x48] sm:$0xff]
        %v448 = vld [vmem:[#allocation5 + $0x50] sm:$0xff]
        %v449 = vld [vmem:[#allocation5 + $0x58] sm:$0xff]
        %v450 = vld [vmem:[#allocation5 + $0x60] sm:$0xff]
        %v451 = vld [vmem:[#allocation5 + $0x68] sm:$0xff]
        %v452 = vld [vmem:[#allocation5 + $0x70] sm:$0xff]
        %v453 = vld [vmem:[#allocation5 + $0x78] sm:$0xff]
        %v454 = vld [vmem:[#allocation5 + $0x80] sm:$0xff]
        %v455 = vld [vmem:[#allocation5 + $0x88] sm:$0xff]
        %v456 = vld [vmem:[#allocation5 + $0x90] sm:$0xff]
        %v457 = vld [vmem:[#allocation5 + $0x98] sm:$0xff]
        %v458 = vld [vmem:[#allocation5 + $0xa0] sm:$0xff]
        %v459 = vld [vmem:[#allocation5 + $0xa8] sm:$0xff]
        %v460 = vld [vmem:[#allocation5 + $0xb0] sm:$0xff]
        %v461 = vld [vmem:[#allocation5 + $0xb8] sm:$0xff]
        %v462 = vld [vmem:[#allocation5 + $0xc0] sm:$0xff]
        %v463 = vld [vmem:[#allocation5 + $0xc8] sm:$0xff]
        %v464 = vld [vmem:[#allocation5 + $0xd0] sm:$0xff]
        %v465 = vld [vmem:[#allocation5 + $0xd8] sm:$0xff]
        %v466 = vld [vmem:[#allocation5 + $0xe0] sm:$0xff]
        %v467 = vld [vmem:[#allocation5 + $0xe8] sm:$0xff]
        %v468 = vld [vmem:[#allocation5 + $0xf0] sm:$0xff]
        %v469 = vld [vmem:[#allocation5 + $0xf8] sm:$0xff]
        %v470 = vld [vmem:[#allocation5 + $0x100] sm:$0xff]
        %v471 = vld [vmem:[#allocation5 + $0x108] sm:$0xff]
        %v472 = vld [vmem:[#allocation5 + $0x110] sm:$0xff]
        %v473 = vld [vmem:[#allocation5 + $0x118] sm:$0xff]
        %v474 = vld [vmem:[#allocation5 + $0x120] sm:$0xff]
        %v475 = vld [vmem:[#allocation5 + $0x128] sm:$0xff]
        %v476 = vld [vmem:[#allocation5 + $0x130] sm:$0xff]
        %v477 = vld [vmem:[#allocation5 + $0x138] sm:$0xff]
        %v478 = vld [vmem:[#allocation5 + $0x140] sm:$0xff]
        %v479 = vld [vmem:[#allocation5 + $0x148] sm:$0xff]
        %v480 = vld [vmem:[#allocation5 + $0x150] sm:$0xff]
        %v481 = vld [vmem:[#allocation5 + $0x158] sm:$0xff]
        %v482 = vld [vmem:[#allocation5 + $0x160] sm:$0xff]
        %v483 = vld [vmem:[#allocation5 + $0x168] sm:$0xff]
        %v484 = vld [vmem:[#allocation5 + $0x170] sm:$0xff]
        %v485 = vld [vmem:[#allocation5 + $0x178] sm:$0xff]
        %v486 = vld [vmem:[#allocation5 + $0x180] sm:$0xff]
        %v487 = vld [vmem:[#allocation5 + $0x188] sm:$0xff]
        %v488 = vld [vmem:[#allocation5 + $0x190] sm:$0xff]
        %v489 = vld [vmem:[#allocation5 + $0x198] sm:$0xff]
        %v490 = vld [vmem:[#allocation5 + $0x1a0] sm:$0xff]
        %v491 = vld [vmem:[#allocation5 + $0x1a8] sm:$0xff]
        %v492 = vld [vmem:[#allocation5 + $0x1b0] sm:$0xff]
        %v493 = vld [vmem:[#allocation5 + $0x1b8] sm:$0xff]
        %v494 = vld [vmem:[#allocation5 + $0x1c0] sm:$0xff]
        %v495 = vld [vmem:[#allocation5 + $0x1c8] sm:$0xff]
        %v496 = vld [vmem:[#allocation5 + $0x1d0] sm:$0xff]
        %v497 = vld [vmem:[#allocation5 + $0x1d8] sm:$0xff]
        %v498 = vld [vmem:[#allocation5 + $0x1e0] sm:$0xff]
        %v499 = vld [vmem:[#allocation5 + $0x1e8] sm:$0xff]
        %v500 = vld [vmem:[#allocation5 + $0x1f0] sm:$0xff]
        %v501 = vld [vmem:[#allocation5 + $0x1f8] sm:$0xff]
        %v502 = vld [vmem:[#allocation7] sm:$0xf]
        %v504 = vlaneseq
        %v505 = vshrl.u32 %v504, 7
        %v506 = vsub.s32 0, %v505
        %v507 = vrot.slane %v502, %v506
        %v508 = vlaneseq
        %v509 = vshrl.u32 %v508, 7
        %v510 = vsub.s32 1, %v509
        %v511 = vrot.slane %v502, %v510
        %v512 = vlaneseq
        %v513 = vshrl.u32 %v512, 7
        %v514 = vsub.s32 2, %v513
        %v515 = vrot.slane %v502, %v514
        %v516 = vlaneseq
        %v517 = vshrl.u32 %v516, 7
        %v518 = vsub.s32 3, %v517
        %v519 = vrot.slane %v502, %v518
        %v588 = vunpack.c.l.b16 %v438
        %v589 = vunpack.c.h.b16 %v438
        %v590 = vunpack.c.l.b16 %v439
        %v591 = vunpack.c.h.b16 %v439
        %v592 = vunpack.c.l.b16 %v440
        %v593 = vunpack.c.h.b16 %v440
        %v594 = vunpack.c.l.b16 %v441
        %v595 = vunpack.c.h.b16 %v441
        %v596 = vunpack.c.l.b16 %v442
        %v597 = vunpack.c.h.b16 %v442
        %v598 = vunpack.c.l.b16 %v443
        %v599 = vunpack.c.h.b16 %v443
        %v600 = vunpack.c.l.b16 %v444
        %v601 = vunpack.c.h.b16 %v444
        %v602 = vunpack.c.l.b16 %v445
        %v603 = vunpack.c.h.b16 %v445
        %v604 = vunpack.c.l.b16 %v446
        %v605 = vunpack.c.h.b16 %v446
        %v606 = vunpack.c.l.b16 %v447
        %v607 = vunpack.c.h.b16 %v447
        %v608 = vunpack.c.l.b16 %v448
        %v609 = vunpack.c.h.b16 %v448
        %v610 = vunpack.c.l.b16 %v449
        %v611 = vunpack.c.h.b16 %v449
        %v612 = vunpack.c.l.b16 %v450
        %v613 = vunpack.c.h.b16 %v450
        %v614 = vunpack.c.l.b16 %v451
        %v615 = vunpack.c.h.b16 %v451
        %v616 = vunpack.c.l.b16 %v452
        %v617 = vunpack.c.h.b16 %v452
        %v618 = vunpack.c.l.b16 %v453
        %v619 = vunpack.c.h.b16 %v453
        %v620 = vunpack.c.l.b16 %v454
        %v621 = vunpack.c.h.b16 %v454
        %v622 = vunpack.c.l.b16 %v455
        %v623 = vunpack.c.h.b16 %v455
        %v624 = vunpack.c.l.b16 %v456
        %v625 = vunpack.c.h.b16 %v456
        %v626 = vunpack.c.l.b16 %v457
        %v627 = vunpack.c.h.b16 %v457
        %v628 = vunpack.c.l.b16 %v458
        %v629 = vunpack.c.h.b16 %v458
        %v630 = vunpack.c.l.b16 %v459
        %v631 = vunpack.c.h.b16 %v459
        %v632 = vunpack.c.l.b16 %v460
        %v633 = vunpack.c.h.b16 %v460
        %v634 = vunpack.c.l.b16 %v461
        %v635 = vunpack.c.h.b16 %v461
        %v636 = vunpack.c.l.b16 %v462
        %v637 = vunpack.c.h.b16 %v462
        %v638 = vunpack.c.l.b16 %v463
        %v639 = vunpack.c.h.b16 %v463
        %v640 = vunpack.c.l.b16 %v464
        %v641 = vunpack.c.h.b16 %v464
        %v642 = vunpack.c.l.b16 %v465
        %v643 = vunpack.c.h.b16 %v465
        %v644 = vunpack.c.l.b16 %v466
        %v645 = vunpack.c.h.b16 %v466
        %v646 = vunpack.c.l.b16 %v467
        %v647 = vunpack.c.h.b16 %v467
        %v648 = vunpack.c.l.b16 %v468
        %v649 = vunpack.c.h.b16 %v468
        %v650 = vunpack.c.l.b16 %v469
        %v651 = vunpack.c.h.b16 %v469
        %v652 = vunpack.c.l.b16 %v470
        %v653 = vunpack.c.h.b16 %v470
        %v654 = vunpack.c.l.b16 %v471
        %v655 = vunpack.c.h.b16 %v471
        %v656 = vunpack.c.l.b16 %v472
        %v657 = vunpack.c.h.b16 %v472
        %v658 = vunpack.c.l.b16 %v473
        %v659 = vunpack.c.h.b16 %v473
        %v660 = vunpack.c.l.b16 %v474
        %v661 = vunpack.c.h.b16 %v474
        %v662 = vunpack.c.l.b16 %v475
        %v663 = vunpack.c.h.b16 %v475
        %v664 = vunpack.c.l.b16 %v476
        %v665 = vunpack.c.h.b16 %v476
        %v666 = vunpack.c.l.b16 %v477
        %v667 = vunpack.c.h.b16 %v477
        %v668 = vunpack.c.l.b16 %v478
        %v669 = vunpack.c.h.b16 %v478
        %v670 = vunpack.c.l.b16 %v479
        %v671 = vunpack.c.h.b16 %v479
        %v672 = vunpack.c.l.b16 %v480
        %v673 = vunpack.c.h.b16 %v480
        %v674 = vunpack.c.l.b16 %v481
        %v675 = vunpack.c.h.b16 %v481
        %v676 = vunpack.c.l.b16 %v482
        %v677 = vunpack.c.h.b16 %v482
        %v678 = vunpack.c.l.b16 %v483
        %v679 = vunpack.c.h.b16 %v483
        %v680 = vunpack.c.l.b16 %v484
        %v681 = vunpack.c.h.b16 %v484
        %v682 = vunpack.c.l.b16 %v485
        %v683 = vunpack.c.h.b16 %v485
        %v684 = vunpack.c.l.b16 %v486
        %v685 = vunpack.c.h.b16 %v486
        %v686 = vunpack.c.l.b16 %v487
        %v687 = vunpack.c.h.b16 %v487
        %v688 = vunpack.c.l.b16 %v488
        %v689 = vunpack.c.h.b16 %v488
        %v690 = vunpack.c.l.b16 %v489
        %v691 = vunpack.c.h.b16 %v489
        %v692 = vunpack.c.l.b16 %v490
        %v693 = vunpack.c.h.b16 %v490
        %v694 = vunpack.c.l.b16 %v491
        %v695 = vunpack.c.h.b16 %v491
        %v696 = vunpack.c.l.b16 %v492
        %v697 = vunpack.c.h.b16 %v492
        %v698 = vunpack.c.l.b16 %v493
        %v699 = vunpack.c.h.b16 %v493
        %v700 = vunpack.c.l.b16 %v494
        %v701 = vunpack.c.h.b16 %v494
        %v702 = vunpack.c.l.b16 %v495
        %v703 = vunpack.c.h.b16 %v495
        %v704 = vunpack.c.l.b16 %v496
        %v705 = vunpack.c.h.b16 %v496
        %v706 = vunpack.c.l.b16 %v497
        %v707 = vunpack.c.h.b16 %v497
        %v708 = vunpack.c.l.b16 %v498
        %v709 = vunpack.c.h.b16 %v498
        %v710 = vunpack.c.l.b16 %v499
        %v711 = vunpack.c.h.b16 %v499
        %v712 = vunpack.c.l.b16 %v500
        %v713 = vunpack.c.h.b16 %v500
        %v714 = vunpack.c.l.b16 %v501
        %v715 = vunpack.c.h.b16 %v501
        %v716 = vpack.c.b16 %v592, %v588
        %v717 = vpack.c.b16 %v593, %v589
        %v718 = vpack.c.b16 %v594, %v590
        %v719 = vpack.c.b16 %v595, %v591
        %v720 = vpack.c.b16 %v600, %v596
        %v721 = vpack.c.b16 %v601, %v597
        %v722 = vpack.c.b16 %v602, %v598
        %v723 = vpack.c.b16 %v603, %v599
        %v724 = vpack.c.b16 %v608, %v604
        %v725 = vpack.c.b16 %v609, %v605
        %v726 = vpack.c.b16 %v610, %v606
        %v727 = vpack.c.b16 %v611, %v607
        %v728 = vpack.c.b16 %v616, %v612
        %v729 = vpack.c.b16 %v617, %v613
        %v730 = vpack.c.b16 %v618, %v614
        %v731 = vpack.c.b16 %v619, %v615
        %v732 = vpack.c.b16 %v624, %v620
        %v733 = vpack.c.b16 %v625, %v621
        %v734 = vpack.c.b16 %v626, %v622
        %v735 = vpack.c.b16 %v627, %v623
        %v736 = vpack.c.b16 %v632, %v628
        %v737 = vpack.c.b16 %v633, %v629
        %v738 = vpack.c.b16 %v634, %v630
        %v739 = vpack.c.b16 %v635, %v631
        %v740 = vpack.c.b16 %v640, %v636
        %v741 = vpack.c.b16 %v641, %v637
        %v742 = vpack.c.b16 %v642, %v638
        %v743 = vpack.c.b16 %v643, %v639
        %v744 = vpack.c.b16 %v648, %v644
        %v745 = vpack.c.b16 %v649, %v645
        %v746 = vpack.c.b16 %v650, %v646
        %v747 = vpack.c.b16 %v651, %v647
        %v748 = vpack.c.b16 %v656, %v652
        %v749 = vpack.c.b16 %v657, %v653
        %v750 = vpack.c.b16 %v658, %v654
        %v751 = vpack.c.b16 %v659, %v655
        %v752 = vpack.c.b16 %v664, %v660
        %v753 = vpack.c.b16 %v665, %v661
        %v754 = vpack.c.b16 %v666, %v662
        %v755 = vpack.c.b16 %v667, %v663
        %v756 = vpack.c.b16 %v672, %v668
        %v757 = vpack.c.b16 %v673, %v669
        %v758 = vpack.c.b16 %v674, %v670
        %v759 = vpack.c.b16 %v675, %v671
        %v760 = vpack.c.b16 %v680, %v676
        %v761 = vpack.c.b16 %v681, %v677
        %v762 = vpack.c.b16 %v682, %v678
        %v763 = vpack.c.b16 %v683, %v679
        %v764 = vpack.c.b16 %v688, %v684
        %v765 = vpack.c.b16 %v689, %v685
        %v766 = vpack.c.b16 %v690, %v686
        %v767 = vpack.c.b16 %v691, %v687
        %v768 = vpack.c.b16 %v696, %v692
        %v769 = vpack.c.b16 %v697, %v693
        %v770 = vpack.c.b16 %v698, %v694
        %v771 = vpack.c.b16 %v699, %v695
        %v772 = vpack.c.b16 %v704, %v700
        %v773 = vpack.c.b16 %v705, %v701
        %v774 = vpack.c.b16 %v706, %v702
        %v775 = vpack.c.b16 %v707, %v703
        %v776 = vpack.c.b16 %v712, %v708
        %v777 = vpack.c.b16 %v713, %v709
        %v778 = vpack.c.b16 %v714, %v710
        %v779 = vpack.c.b16 %v715, %v711
        %844 = vmatprep.subr.bf16.mxu0 %v745
        %845 = vmatpush1.bf16.msra.mxu0 %v744
        %846 = vmatprep.subr.bf16.mxu0 %v741
        %847 = vmatpush1.bf16.msra.mxu0 %v740
        %848 = vmatprep.subr.bf16.mxu0 %v737
        %849 = vmatpush1.bf16.msra.mxu0 %v736
        %850 = vmatprep.subr.bf16.mxu0 %v733
        %851 = vmatpush1.bf16.msra.mxu0 %v732
        %852 = vmatprep.subr.bf16.mxu0 %v729
        %853 = vmatpush1.bf16.msra.mxu0 %v728
        %854 = vmatprep.subr.bf16.mxu0 %v725
        %855 = vmatpush1.bf16.msra.mxu0 %v724
        %856 = vmatprep.subr.bf16.mxu0 %v721
        %857 = vmatpush1.bf16.msra.mxu0 %v720
        %858 = vmatprep.subr.bf16.mxu0 %v717
        %859 = vmatpush1.bf16.msra.mxu0 %v716
        %860 = vmatprep.subr.bf16.mxu0 %v777
        %861 = vmatpush2.bf16.msra.mxu0 %v776
        %862 = vmatprep.subr.bf16.mxu0 %v773
        %863 = vmatpush2.bf16.msra.mxu0 %v772
        %864 = vmatprep.subr.bf16.mxu0 %v769
        %865 = vmatpush2.bf16.msra.mxu0 %v768
        %866 = vmatprep.subr.bf16.mxu0 %v765
        %867 = vmatpush2.bf16.msra.mxu0 %v764
        %868 = vmatprep.subr.bf16.mxu0 %v761
        %869 = vmatpush2.bf16.msra.mxu0 %v760
        %870 = vmatprep.subr.bf16.mxu0 %v757
        %871 = vmatpush2.bf16.msra.mxu0 %v756
        %872 = vmatprep.subr.bf16.mxu0 %v753
        %873 = vmatpush2.bf16.msra.mxu0 %v752
        %874 = vmatprep.subr.bf16.mxu0 %v749
        %875 = vmatpush2.bf16.msra.mxu0 %v748
        %876 = vmatprep.mubr.bf16.mxu0 %v407
        %877 = vmatmul.mubr.bf16.gmra.mxu0 %v406
        %v878 = vpop.f32.mrf.mxu0
        %v879 = vadd.f32 %v507, %v878
        %v880 = vpop.f32.mrf.mxu0
        %v881 = vadd.f32 %v511, %v880
        %v882 = vpop.f32.mrf.mxu0
        %v883 = vadd.f32 %v507, %v882
        %v884 = vpop.f32.mrf.mxu0
        %v885 = vadd.f32 %v511, %v884
        %886 = vmatprep.mubr.bf16.mxu0 %v409
        %887 = vmatmul.mubr.bf16.gmra.mxu0 %v408
        %v888 = vpop.f32.mrf.mxu0
        %v889 = vadd.f32 %v507, %v888
        %v890 = vpop.f32.mrf.mxu0
        %v891 = vadd.f32 %v511, %v890
        %v892 = vpop.f32.mrf.mxu0
        %v893 = vadd.f32 %v507, %v892
        %v894 = vpop.f32.mrf.mxu0
        %v895 = vadd.f32 %v511, %v894
        %896 = vmatprep.mubr.bf16.mxu0 %v411
        %897 = vmatmul.mubr.bf16.gmra.mxu0 %v410
        %v898 = vpop.f32.mrf.mxu0
        %v899 = vadd.f32 %v507, %v898
        %v900 = vpop.f32.mrf.mxu0
        %v901 = vadd.f32 %v511, %v900
        %v902 = vpop.f32.mrf.mxu0
        %v903 = vadd.f32 %v507, %v902
        %v904 = vpop.f32.mrf.mxu0
        %v905 = vadd.f32 %v511, %v904
        %906 = vmatprep.mubr.bf16.mxu0 %v413
        %907 = vmatmul.mubr.bf16.gmra.mxu0 %v412
        %v908 = vpop.f32.mrf.mxu0
        %v909 = vadd.f32 %v507, %v908
        %v910 = vpop.f32.mrf.mxu0
        %v911 = vadd.f32 %v511, %v910
        %v912 = vpop.f32.mrf.mxu0
        %v913 = vadd.f32 %v507, %v912
        %v914 = vpop.f32.mrf.mxu0
        %v915 = vadd.f32 %v511, %v914
        %916 = vmatprep.mubr.bf16.mxu0 %v415
        %917 = vmatmul.mubr.bf16.gmra.mxu0 %v414
        %v918 = vpop.f32.mrf.mxu0
        %v919 = vadd.f32 %v507, %v918
        %v920 = vpop.f32.mrf.mxu0
        %v921 = vadd.f32 %v511, %v920
        %v922 = vpop.f32.mrf.mxu0
        %v923 = vadd.f32 %v507, %v922
        %v924 = vpop.f32.mrf.mxu0
        %v925 = vadd.f32 %v511, %v924
        %926 = vmatprep.mubr.bf16.mxu0 %v417
        %927 = vmatmul.mubr.bf16.gmra.mxu0 %v416
        %v928 = vpop.f32.mrf.mxu0
        %v929 = vadd.f32 %v507, %v928
        %v930 = vpop.f32.mrf.mxu0
        %v931 = vadd.f32 %v511, %v930
        %v932 = vpop.f32.mrf.mxu0
        %v933 = vadd.f32 %v507, %v932
        %v934 = vpop.f32.mrf.mxu0
        %v935 = vadd.f32 %v511, %v934
        %936 = vmatprep.mubr.bf16.mxu0 %v419
        %937 = vmatmul.mubr.bf16.gmra.mxu0 %v418
        %v938 = vpop.f32.mrf.mxu0
        %v939 = vadd.f32 %v507, %v938
        %v940 = vpop.f32.mrf.mxu0
        %v941 = vadd.f32 %v511, %v940
        %v942 = vpop.f32.mrf.mxu0
        %v943 = vadd.f32 %v507, %v942
        %v944 = vpop.f32.mrf.mxu0
        %v945 = vadd.f32 %v511, %v944
        %946 = vmatprep.mubr.bf16.mxu0 %v421
        %947 = vmatmul.mubr.bf16.gmra.mxu0 %v420
        %v948 = vpop.f32.mrf.mxu0
        %v949 = vadd.f32 %v507, %v948
        %v950 = vpop.f32.mrf.mxu0
        %v951 = vadd.f32 %v511, %v950
        %v952 = vpop.f32.mrf.mxu0
        %v953 = vadd.f32 %v507, %v952
        %v954 = vpop.f32.mrf.mxu0
        %v955 = vadd.f32 %v511, %v954
        %956 = vmatprep.mubr.bf16.mxu0 %v423
        %957 = vmatmul.mubr.bf16.gmra.mxu0 %v422
        %v958 = vpop.f32.mrf.mxu0
        %v959 = vadd.f32 %v507, %v958
        %v960 = vpop.f32.mrf.mxu0
        %v961 = vadd.f32 %v511, %v960
        %v962 = vpop.f32.mrf.mxu0
        %v963 = vadd.f32 %v507, %v962
        %v964 = vpop.f32.mrf.mxu0
        %v965 = vadd.f32 %v511, %v964
        %966 = vmatprep.mubr.bf16.mxu0 %v425
        %967 = vmatmul.mubr.bf16.gmra.mxu0 %v424
        %v968 = vpop.f32.mrf.mxu0
        %v969 = vadd.f32 %v507, %v968
        %v970 = vpop.f32.mrf.mxu0
        %v971 = vadd.f32 %v511, %v970
        %v972 = vpop.f32.mrf.mxu0
        %v973 = vadd.f32 %v507, %v972
        %v974 = vpop.f32.mrf.mxu0
        %v975 = vadd.f32 %v511, %v974
        %976 = vmatprep.mubr.bf16.mxu0 %v427
        %977 = vmatmul.mubr.bf16.gmra.mxu0 %v426
        %v978 = vpop.f32.mrf.mxu0
        %v979 = vadd.f32 %v507, %v978
        %v980 = vpop.f32.mrf.mxu0
        %v981 = vadd.f32 %v511, %v980
        %v982 = vpop.f32.mrf.mxu0
        %v983 = vadd.f32 %v507, %v982
        %v984 = vpop.f32.mrf.mxu0
        %v985 = vadd.f32 %v511, %v984
        %986 = vmatprep.mubr.bf16.mxu0 %v429
        %987 = vmatmul.mubr.bf16.gmra.mxu0 %v428
        %v988 = vpop.f32.mrf.mxu0
        %v989 = vadd.f32 %v507, %v988
        %v990 = vpop.f32.mrf.mxu0
        %v991 = vadd.f32 %v511, %v990
        %v992 = vpop.f32.mrf.mxu0
        %v993 = vadd.f32 %v507, %v992
        %v994 = vpop.f32.mrf.mxu0
        %v995 = vadd.f32 %v511, %v994
        %996 = vmatprep.mubr.bf16.mxu0 %v431
        %997 = vmatmul.mubr.bf16.gmra.mxu0 %v430
        %v998 = vpop.f32.mrf.mxu0
        %v999 = vadd.f32 %v507, %v998
        %v1000 = vpop.f32.mrf.mxu0
        %v1001 = vadd.f32 %v511, %v1000
        %v1002 = vpop.f32.mrf.mxu0
        %v1003 = vadd.f32 %v507, %v1002
        %v1004 = vpop.f32.mrf.mxu0
        %v1005 = vadd.f32 %v511, %v1004
        %1006 = vmatprep.mubr.bf16.mxu0 %v433
        %1007 = vmatmul.mubr.bf16.gmra.mxu0 %v432
        %v1008 = vpop.f32.mrf.mxu0
        %v1009 = vadd.f32 %v507, %v1008
        %v1010 = vpop.f32.mrf.mxu0
        %v1011 = vadd.f32 %v511, %v1010
        %v1012 = vpop.f32.mrf.mxu0
        %v1013 = vadd.f32 %v507, %v1012
        %v1014 = vpop.f32.mrf.mxu0
        %v1015 = vadd.f32 %v511, %v1014
        %1016 = vmatprep.mubr.bf16.mxu0 %v435
        %1017 = vmatmul.mubr.bf16.gmra.mxu0 %v434
        %v1018 = vpop.f32.mrf.mxu0
        %v1019 = vadd.f32 %v507, %v1018
        %v1020 = vpop.f32.mrf.mxu0
        %v1021 = vadd.f32 %v511, %v1020
        %v1022 = vpop.f32.mrf.mxu0
        %v1023 = vadd.f32 %v507, %v1022
        %v1024 = vpop.f32.mrf.mxu0
        %v1025 = vadd.f32 %v511, %v1024
        %1026 = vmatprep.mubr.bf16.mxu0 %v437
        %1027 = vmatmul.mubr.bf16.gmra.mxu0 %v436
        %v1028 = vpop.f32.mrf.mxu0
        %v1029 = vadd.f32 %v507, %v1028
        %v1030 = vpop.f32.mrf.mxu0
        %v1031 = vadd.f32 %v511, %v1030
        %v1032 = vpop.f32.mrf.mxu0
        %v1033 = vadd.f32 %v507, %v1032
        %v1034 = vpop.f32.mrf.mxu0
        %v1035 = vadd.f32 %v511, %v1034
        %1036 = vdwg.mxu0
        %1037 = vmatprep.subr.bf16.mxu0 %v747
        %1038 = vmatpush1.bf16.msra.mxu0 %v746
        %1039 = vmatprep.subr.bf16.mxu0 %v743
        %1040 = vmatpush1.bf16.msra.mxu0 %v742
        %1041 = vmatprep.subr.bf16.mxu0 %v739
        %1042 = vmatpush1.bf16.msra.mxu0 %v738
        %1043 = vmatprep.subr.bf16.mxu0 %v735
        %1044 = vmatpush1.bf16.msra.mxu0 %v734
        %1045 = vmatprep.subr.bf16.mxu0 %v731
        %1046 = vmatpush1.bf16.msra.mxu0 %v730
        %1047 = vmatprep.subr.bf16.mxu0 %v727
        %1048 = vmatpush1.bf16.msra.mxu0 %v726
        %1049 = vmatprep.subr.bf16.mxu0 %v723
        %1050 = vmatpush1.bf16.msra.mxu0 %v722
        %1051 = vmatprep.subr.bf16.mxu0 %v719
        %1052 = vmatpush1.bf16.msra.mxu0 %v718
        %1053 = vmatprep.subr.bf16.mxu0 %v779
        %1054 = vmatpush2.bf16.msra.mxu0 %v778
        %1055 = vmatprep.subr.bf16.mxu0 %v775
        %1056 = vmatpush2.bf16.msra.mxu0 %v774
        %1057 = vmatprep.subr.bf16.mxu0 %v771
        %1058 = vmatpush2.bf16.msra.mxu0 %v770
        %1059 = vmatprep.subr.bf16.mxu0 %v767
        %1060 = vmatpush2.bf16.msra.mxu0 %v766
        %1061 = vmatprep.subr.bf16.mxu0 %v763
        %1062 = vmatpush2.bf16.msra.mxu0 %v762
        %1063 = vmatprep.subr.bf16.mxu0 %v759
        %1064 = vmatpush2.bf16.msra.mxu0 %v758
        %1065 = vmatprep.subr.bf16.mxu0 %v755
        %1066 = vmatpush2.bf16.msra.mxu0 %v754
        %1067 = vmatprep.subr.bf16.mxu0 %v751
        %1068 = vmatpush2.bf16.msra.mxu0 %v750
        %1069 = vmatprep.mubr.bf16.mxu0 %v407
        %1070 = vmatmul.mubr.bf16.gmra.mxu0 %v406
        %v1071 = vpop.f32.mrf.mxu0
        %v1072 = vadd.f32 %v515, %v1071
        %v1073 = vpop.f32.mrf.mxu0
        %v1074 = vadd.f32 %v519, %v1073
        %v1075 = vpop.f32.mrf.mxu0
        %v1076 = vadd.f32 %v515, %v1075
        %v1077 = vpop.f32.mrf.mxu0
        %v1078 = vadd.f32 %v519, %v1077
        %1079 = vmatprep.mubr.bf16.mxu0 %v409
        %1080 = vmatmul.mubr.bf16.gmra.mxu0 %v408
        %v1081 = vpop.f32.mrf.mxu0
        %v1082 = vadd.f32 %v515, %v1081
        %v1083 = vpop.f32.mrf.mxu0
        %v1084 = vadd.f32 %v519, %v1083
        %v1085 = vpop.f32.mrf.mxu0
        %v1086 = vadd.f32 %v515, %v1085
        %v1087 = vpop.f32.mrf.mxu0
        %v1088 = vadd.f32 %v519, %v1087
        %1089 = vmatprep.mubr.bf16.mxu0 %v411
        %1090 = vmatmul.mubr.bf16.gmra.mxu0 %v410
        %v1091 = vpop.f32.mrf.mxu0
        %v1092 = vadd.f32 %v515, %v1091
        %v1093 = vpop.f32.mrf.mxu0
        %v1094 = vadd.f32 %v519, %v1093
        %v1095 = vpop.f32.mrf.mxu0
        %v1096 = vadd.f32 %v515, %v1095
        %v1097 = vpop.f32.mrf.mxu0
        %v1098 = vadd.f32 %v519, %v1097
        %1099 = vmatprep.mubr.bf16.mxu0 %v413
        %1100 = vmatmul.mubr.bf16.gmra.mxu0 %v412
        %v1101 = vpop.f32.mrf.mxu0
        %v1102 = vadd.f32 %v515, %v1101
        %v1103 = vpop.f32.mrf.mxu0
        %v1104 = vadd.f32 %v519, %v1103
        %v1105 = vpop.f32.mrf.mxu0
        %v1106 = vadd.f32 %v515, %v1105
        %v1107 = vpop.f32.mrf.mxu0
        %v1108 = vadd.f32 %v519, %v1107
        %1109 = vmatprep.mubr.bf16.mxu0 %v415
        %1110 = vmatmul.mubr.bf16.gmra.mxu0 %v414
        %v1111 = vpop.f32.mrf.mxu0
        %v1112 = vadd.f32 %v515, %v1111
        %v1113 = vpop.f32.mrf.mxu0
        %v1114 = vadd.f32 %v519, %v1113
        %v1115 = vpop.f32.mrf.mxu0
        %v1116 = vadd.f32 %v515, %v1115
        %v1117 = vpop.f32.mrf.mxu0
        %v1118 = vadd.f32 %v519, %v1117
        %1119 = vmatprep.mubr.bf16.mxu0 %v417
        %1120 = vmatmul.mubr.bf16.gmra.mxu0 %v416
        %v1121 = vpop.f32.mrf.mxu0
        %v1122 = vadd.f32 %v515, %v1121
        %v1123 = vpop.f32.mrf.mxu0
        %v1124 = vadd.f32 %v519, %v1123
        %v1125 = vpop.f32.mrf.mxu0
        %v1126 = vadd.f32 %v515, %v1125
        %v1127 = vpop.f32.mrf.mxu0
        %v1128 = vadd.f32 %v519, %v1127
        %1129 = vmatprep.mubr.bf16.mxu0 %v419
        %1130 = vmatmul.mubr.bf16.gmra.mxu0 %v418
        %v1131 = vpop.f32.mrf.mxu0
        %v1132 = vadd.f32 %v515, %v1131
        %v1133 = vpop.f32.mrf.mxu0
        %v1134 = vadd.f32 %v519, %v1133
        %v1135 = vpop.f32.mrf.mxu0
        %v1136 = vadd.f32 %v515, %v1135
        %v1137 = vpop.f32.mrf.mxu0
        %v1138 = vadd.f32 %v519, %v1137
        %1139 = vmatprep.mubr.bf16.mxu0 %v421
        %1140 = vmatmul.mubr.bf16.gmra.mxu0 %v420
        %v1141 = vpop.f32.mrf.mxu0
        %v1142 = vadd.f32 %v515, %v1141
        %v1143 = vpop.f32.mrf.mxu0
        %v1144 = vadd.f32 %v519, %v1143
        %v1145 = vpop.f32.mrf.mxu0
        %v1146 = vadd.f32 %v515, %v1145
        %v1147 = vpop.f32.mrf.mxu0
        %v1148 = vadd.f32 %v519, %v1147
        %1149 = vmatprep.mubr.bf16.mxu0 %v423
        %1150 = vmatmul.mubr.bf16.gmra.mxu0 %v422
        %v1151 = vpop.f32.mrf.mxu0
        %v1152 = vadd.f32 %v515, %v1151
        %v1153 = vpop.f32.mrf.mxu0
        %v1154 = vadd.f32 %v519, %v1153
        %v1155 = vpop.f32.mrf.mxu0
        %v1156 = vadd.f32 %v515, %v1155
        %v1157 = vpop.f32.mrf.mxu0
        %v1158 = vadd.f32 %v519, %v1157
        %1159 = vmatprep.mubr.bf16.mxu0 %v425
        %1160 = vmatmul.mubr.bf16.gmra.mxu0 %v424
        %v1161 = vpop.f32.mrf.mxu0
        %v1162 = vadd.f32 %v515, %v1161
        %v1163 = vpop.f32.mrf.mxu0
        %v1164 = vadd.f32 %v519, %v1163
        %v1165 = vpop.f32.mrf.mxu0
        %v1166 = vadd.f32 %v515, %v1165
        %v1167 = vpop.f32.mrf.mxu0
        %v1168 = vadd.f32 %v519, %v1167
        %1169 = vmatprep.mubr.bf16.mxu0 %v427
        %1170 = vmatmul.mubr.bf16.gmra.mxu0 %v426
        %v1171 = vpop.f32.mrf.mxu0
        %v1172 = vadd.f32 %v515, %v1171
        %v1173 = vpop.f32.mrf.mxu0
        %v1174 = vadd.f32 %v519, %v1173
        %v1175 = vpop.f32.mrf.mxu0
        %v1176 = vadd.f32 %v515, %v1175
        %v1177 = vpop.f32.mrf.mxu0
        %v1178 = vadd.f32 %v519, %v1177
        %1179 = vmatprep.mubr.bf16.mxu0 %v429
        %1180 = vmatmul.mubr.bf16.gmra.mxu0 %v428
        %v1181 = vpop.f32.mrf.mxu0
        %v1182 = vadd.f32 %v515, %v1181
        %v1183 = vpop.f32.mrf.mxu0
        %v1184 = vadd.f32 %v519, %v1183
        %v1185 = vpop.f32.mrf.mxu0
        %v1186 = vadd.f32 %v515, %v1185
        %v1187 = vpop.f32.mrf.mxu0
        %v1188 = vadd.f32 %v519, %v1187
        %1189 = vmatprep.mubr.bf16.mxu0 %v431
        %1190 = vmatmul.mubr.bf16.gmra.mxu0 %v430
        %v1191 = vpop.f32.mrf.mxu0
        %v1192 = vadd.f32 %v515, %v1191
        %v1193 = vpop.f32.mrf.mxu0
        %v1194 = vadd.f32 %v519, %v1193
        %v1195 = vpop.f32.mrf.mxu0
        %v1196 = vadd.f32 %v515, %v1195
        %v1197 = vpop.f32.mrf.mxu0
        %v1198 = vadd.f32 %v519, %v1197
        %1199 = vmatprep.mubr.bf16.mxu0 %v433
        %1200 = vmatmul.mubr.bf16.gmra.mxu0 %v432
        %v1201 = vpop.f32.mrf.mxu0
        %v1202 = vadd.f32 %v515, %v1201
        %v1203 = vpop.f32.mrf.mxu0
        %v1204 = vadd.f32 %v519, %v1203
        %v1205 = vpop.f32.mrf.mxu0
        %v1206 = vadd.f32 %v515, %v1205
        %v1207 = vpop.f32.mrf.mxu0
        %v1208 = vadd.f32 %v519, %v1207
        %1209 = vmatprep.mubr.bf16.mxu0 %v435
        %1210 = vmatmul.mubr.bf16.gmra.mxu0 %v434
        %v1211 = vpop.f32.mrf.mxu0
        %v1212 = vadd.f32 %v515, %v1211
        %v1213 = vpop.f32.mrf.mxu0
        %v1214 = vadd.f32 %v519, %v1213
        %v1215 = vpop.f32.mrf.mxu0
        %v1216 = vadd.f32 %v515, %v1215
        %v1217 = vpop.f32.mrf.mxu0
        %v1218 = vadd.f32 %v519, %v1217
        %1219 = vmatprep.mubr.bf16.mxu0 %v437
        %1220 = vmatmul.mubr.bf16.gmra.mxu0 %v436
        %v1221 = vpop.f32.mrf.mxu0
        %v1222 = vadd.f32 %v515, %v1221
        %v1223 = vpop.f32.mrf.mxu0
        %v1224 = vadd.f32 %v519, %v1223
        %v1225 = vpop.f32.mrf.mxu0
        %v1226 = vadd.f32 %v515, %v1225
        %v1227 = vpop.f32.mrf.mxu0
        %v1228 = vadd.f32 %v519, %v1227
        %1229 = vdwg.mxu0
        %v1230 = vmax.f32 %v879, 0.0
        %v1231 = vmax.f32 %v881, 0.0
        %v1232 = vmax.f32 %v1072, 0.0
        %v1233 = vmax.f32 %v1074, 0.0
        %v1234 = vmax.f32 %v883, 0.0
        %v1235 = vmax.f32 %v885, 0.0
        %v1236 = vmax.f32 %v1076, 0.0
        %v1237 = vmax.f32 %v1078, 0.0
        %v1238 = vmax.f32 %v889, 0.0
        %v1239 = vmax.f32 %v891, 0.0
        %v1240 = vmax.f32 %v1082, 0.0
        %v1241 = vmax.f32 %v1084, 0.0
        %v1242 = vmax.f32 %v893, 0.0
        %v1243 = vmax.f32 %v895, 0.0
        %v1244 = vmax.f32 %v1086, 0.0
        %v1245 = vmax.f32 %v1088, 0.0
        %v1246 = vmax.f32 %v899, 0.0
        %v1247 = vmax.f32 %v901, 0.0
        %v1248 = vmax.f32 %v1092, 0.0
        %v1249 = vmax.f32 %v1094, 0.0
        %v1250 = vmax.f32 %v903, 0.0
        %v1251 = vmax.f32 %v905, 0.0
        %v1252 = vmax.f32 %v1096, 0.0
        %v1253 = vmax.f32 %v1098, 0.0
        %v1254 = vmax.f32 %v909, 0.0
        %v1255 = vmax.f32 %v911, 0.0
        %v1256 = vmax.f32 %v1102, 0.0
        %v1257 = vmax.f32 %v1104, 0.0
        %v1258 = vmax.f32 %v913, 0.0
        %v1259 = vmax.f32 %v915, 0.0
        %v1260 = vmax.f32 %v1106, 0.0
        %v1261 = vmax.f32 %v1108, 0.0
        %v1262 = vmax.f32 %v919, 0.0
        %v1263 = vmax.f32 %v921, 0.0
        %v1264 = vmax.f32 %v1112, 0.0
        %v1265 = vmax.f32 %v1114, 0.0
        %v1266 = vmax.f32 %v923, 0.0
        %v1267 = vmax.f32 %v925, 0.0
        %v1268 = vmax.f32 %v1116, 0.0
        %v1269 = vmax.f32 %v1118, 0.0
        %v1270 = vmax.f32 %v929, 0.0
        %v1271 = vmax.f32 %v931, 0.0
        %v1272 = vmax.f32 %v1122, 0.0
        %v1273 = vmax.f32 %v1124, 0.0
        %v1274 = vmax.f32 %v933, 0.0
        %v1275 = vmax.f32 %v935, 0.0
        %v1276 = vmax.f32 %v1126, 0.0
        %v1277 = vmax.f32 %v1128, 0.0
        %v1278 = vmax.f32 %v939, 0.0
        %v1279 = vmax.f32 %v941, 0.0
        %v1280 = vmax.f32 %v1132, 0.0
        %v1281 = vmax.f32 %v1134, 0.0
        %v1282 = vmax.f32 %v943, 0.0
        %v1283 = vmax.f32 %v945, 0.0
        %v1284 = vmax.f32 %v1136, 0.0
        %v1285 = vmax.f32 %v1138, 0.0
        %v1286 = vmax.f32 %v949, 0.0
        %v1287 = vmax.f32 %v951, 0.0
        %v1288 = vmax.f32 %v1142, 0.0
        %v1289 = vmax.f32 %v1144, 0.0
        %v1290 = vmax.f32 %v953, 0.0
        %v1291 = vmax.f32 %v955, 0.0
        %v1292 = vmax.f32 %v1146, 0.0
        %v1293 = vmax.f32 %v1148, 0.0
        %v1294 = vmax.f32 %v959, 0.0
        %v1295 = vmax.f32 %v961, 0.0
        %v1296 = vmax.f32 %v1152, 0.0
        %v1297 = vmax.f32 %v1154, 0.0
        %v1298 = vmax.f32 %v963, 0.0
        %v1299 = vmax.f32 %v965, 0.0
        %v1300 = vmax.f32 %v1156, 0.0
        %v1301 = vmax.f32 %v1158, 0.0
        %v1302 = vmax.f32 %v969, 0.0
        %v1303 = vmax.f32 %v971, 0.0
        %v1304 = vmax.f32 %v1162, 0.0
        %v1305 = vmax.f32 %v1164, 0.0
        %v1306 = vmax.f32 %v973, 0.0
        %v1307 = vmax.f32 %v975, 0.0
        %v1308 = vmax.f32 %v1166, 0.0
        %v1309 = vmax.f32 %v1168, 0.0
        %v1310 = vmax.f32 %v979, 0.0
        %v1311 = vmax.f32 %v981, 0.0
        %v1312 = vmax.f32 %v1172, 0.0
        %v1313 = vmax.f32 %v1174, 0.0
        %v1314 = vmax.f32 %v983, 0.0
        %v1315 = vmax.f32 %v985, 0.0
        %v1316 = vmax.f32 %v1176, 0.0
        %v1317 = vmax.f32 %v1178, 0.0
        %v1318 = vmax.f32 %v989, 0.0
        %v1319 = vmax.f32 %v991, 0.0
        %v1320 = vmax.f32 %v1182, 0.0
        %v1321 = vmax.f32 %v1184, 0.0
        %v1322 = vmax.f32 %v993, 0.0
        %v1323 = vmax.f32 %v995, 0.0
        %v1324 = vmax.f32 %v1186, 0.0
        %v1325 = vmax.f32 %v1188, 0.0
        %v1326 = vmax.f32 %v999, 0.0
        %v1327 = vmax.f32 %v1001, 0.0
        %v1328 = vmax.f32 %v1192, 0.0
        %v1329 = vmax.f32 %v1194, 0.0
        %v1330 = vmax.f32 %v1003, 0.0
        %v1331 = vmax.f32 %v1005, 0.0
        %v1332 = vmax.f32 %v1196, 0.0
        %v1333 = vmax.f32 %v1198, 0.0
        %v1334 = vmax.f32 %v1009, 0.0
        %v1335 = vmax.f32 %v1011, 0.0
        %v1336 = vmax.f32 %v1202, 0.0
        %v1337 = vmax.f32 %v1204, 0.0
        %v1338 = vmax.f32 %v1013, 0.0
        %v1339 = vmax.f32 %v1015, 0.0
        %v1340 = vmax.f32 %v1206, 0.0
        %v1341 = vmax.f32 %v1208, 0.0
        %v1342 = vmax.f32 %v1019, 0.0
        %v1343 = vmax.f32 %v1021, 0.0
        %v1344 = vmax.f32 %v1212, 0.0
        %v1345 = vmax.f32 %v1214, 0.0
        %v1346 = vmax.f32 %v1023, 0.0
        %v1347 = vmax.f32 %v1025, 0.0
        %v1348 = vmax.f32 %v1216, 0.0
        %v1349 = vmax.f32 %v1218, 0.0
        %v1350 = vmax.f32 %v1029, 0.0
        %v1351 = vmax.f32 %v1031, 0.0
        %v1352 = vmax.f32 %v1222, 0.0
        %v1353 = vmax.f32 %v1224, 0.0
        %v1354 = vmax.f32 %v1033, 0.0
        %v1355 = vmax.f32 %v1035, 0.0
        %v1356 = vmax.f32 %v1226, 0.0
        %v1357 = vmax.f32 %v1228, 0.0
        %v1358 = vpack.c.bf16 %v1234, %v1230
        %v1359 = vpack.c.bf16 %v1235, %v1231
        %v1360 = vpack.c.bf16 %v1236, %v1232
        %v1361 = vpack.c.bf16 %v1237, %v1233
        %v1362 = vpack.c.bf16 %v1242, %v1238
        %v1363 = vpack.c.bf16 %v1243, %v1239
        %v1364 = vpack.c.bf16 %v1244, %v1240
        %v1365 = vpack.c.bf16 %v1245, %v1241
        %v1366 = vpack.c.bf16 %v1250, %v1246
        %v1367 = vpack.c.bf16 %v1251, %v1247
        %v1368 = vpack.c.bf16 %v1252, %v1248
        %v1369 = vpack.c.bf16 %v1253, %v1249
        %v1370 = vpack.c.bf16 %v1258, %v1254
        %v1371 = vpack.c.bf16 %v1259, %v1255
        %v1372 = vpack.c.bf16 %v1260, %v1256
        %v1373 = vpack.c.bf16 %v1261, %v1257
        %v1374 = vpack.c.bf16 %v1266, %v1262
        %v1375 = vpack.c.bf16 %v1267, %v1263
        %v1376 = vpack.c.bf16 %v1268, %v1264
        %v1377 = vpack.c.bf16 %v1269, %v1265
        %v1378 = vpack.c.bf16 %v1274, %v1270
        %v1379 = vpack.c.bf16 %v1275, %v1271
        %v1380 = vpack.c.bf16 %v1276, %v1272
        %v1381 = vpack.c.bf16 %v1277, %v1273
        %v1382 = vpack.c.bf16 %v1282, %v1278
        %v1383 = vpack.c.bf16 %v1283, %v1279
        %v1384 = vpack.c.bf16 %v1284, %v1280
        %v1385 = vpack.c.bf16 %v1285, %v1281
        %v1386 = vpack.c.bf16 %v1290, %v1286
        %v1387 = vpack.c.bf16 %v1291, %v1287
        %v1388 = vpack.c.bf16 %v1292, %v1288
        %v1389 = vpack.c.bf16 %v1293, %v1289
        %v1390 = vpack.c.bf16 %v1298, %v1294
        %v1391 = vpack.c.bf16 %v1299, %v1295
        %v1392 = vpack.c.bf16 %v1300, %v1296
        %v1393 = vpack.c.bf16 %v1301, %v1297
        %v1394 = vpack.c.bf16 %v1306, %v1302
        %v1395 = vpack.c.bf16 %v1307, %v1303
        %v1396 = vpack.c.bf16 %v1308, %v1304
        %v1397 = vpack.c.bf16 %v1309, %v1305
        %v1398 = vpack.c.bf16 %v1314, %v1310
        %v1399 = vpack.c.bf16 %v1315, %v1311
        %v1400 = vpack.c.bf16 %v1316, %v1312
        %v1401 = vpack.c.bf16 %v1317, %v1313
        %v1402 = vpack.c.bf16 %v1322, %v1318
        %v1403 = vpack.c.bf16 %v1323, %v1319
        %v1404 = vpack.c.bf16 %v1324, %v1320
        %v1405 = vpack.c.bf16 %v1325, %v1321
        %v1406 = vpack.c.bf16 %v1330, %v1326
        %v1407 = vpack.c.bf16 %v1331, %v1327
        %v1408 = vpack.c.bf16 %v1332, %v1328
        %v1409 = vpack.c.bf16 %v1333, %v1329
        %v1410 = vpack.c.bf16 %v1338, %v1334
        %v1411 = vpack.c.bf16 %v1339, %v1335
        %v1412 = vpack.c.bf16 %v1340, %v1336
        %v1413 = vpack.c.bf16 %v1341, %v1337
        %v1414 = vpack.c.bf16 %v1346, %v1342
        %v1415 = vpack.c.bf16 %v1347, %v1343
        %v1416 = vpack.c.bf16 %v1348, %v1344
        %v1417 = vpack.c.bf16 %v1349, %v1345
        %v1418 = vpack.c.bf16 %v1354, %v1350
        %v1419 = vpack.c.bf16 %v1355, %v1351
        %v1420 = vpack.c.bf16 %v1356, %v1352
        %v1421 = vpack.c.bf16 %v1357, %v1353
        %v1422 = vld [vmem:[#allocation8] sm:$0xff]
        %v1423 = vld [vmem:[#allocation8 + $0x8] sm:$0xff]
        %v1424 = vld [vmem:[#allocation8 + $0x10] sm:$0xff]
        %v1425 = vld [vmem:[#allocation8 + $0x18] sm:$0xff]
        %v1426 = vld [vmem:[#allocation8 + $0x20] sm:$0xff]
        %v1427 = vld [vmem:[#allocation8 + $0x28] sm:$0xff]
        %v1428 = vld [vmem:[#allocation8 + $0x30] sm:$0xff]
        %v1429 = vld [vmem:[#allocation8 + $0x38] sm:$0xff]
        %v1430 = vld [vmem:[#allocation8 + $0x40] sm:$0xff]
        %v1431 = vld [vmem:[#allocation8 + $0x48] sm:$0xff]
        %v1432 = vld [vmem:[#allocation8 + $0x50] sm:$0xff]
        %v1433 = vld [vmem:[#allocation8 + $0x58] sm:$0xff]
        %v1434 = vld [vmem:[#allocation8 + $0x60] sm:$0xff]
        %v1435 = vld [vmem:[#allocation8 + $0x68] sm:$0xff]
        %v1436 = vld [vmem:[#allocation8 + $0x70] sm:$0xff]
        %v1437 = vld [vmem:[#allocation8 + $0x78] sm:$0xff]
        %v1438 = vld [vmem:[#allocation8 + $0x80] sm:$0xff]
        %v1439 = vld [vmem:[#allocation8 + $0x88] sm:$0xff]
        %v1440 = vld [vmem:[#allocation8 + $0x90] sm:$0xff]
        %v1441 = vld [vmem:[#allocation8 + $0x98] sm:$0xff]
        %v1442 = vld [vmem:[#allocation8 + $0xa0] sm:$0xff]
        %v1443 = vld [vmem:[#allocation8 + $0xa8] sm:$0xff]
        %v1444 = vld [vmem:[#allocation8 + $0xb0] sm:$0xff]
        %v1445 = vld [vmem:[#allocation8 + $0xb8] sm:$0xff]
        %v1446 = vld [vmem:[#allocation8 + $0xc0] sm:$0xff]
        %v1447 = vld [vmem:[#allocation8 + $0xc8] sm:$0xff]
        %v1448 = vld [vmem:[#allocation8 + $0xd0] sm:$0xff]
        %v1449 = vld [vmem:[#allocation8 + $0xd8] sm:$0xff]
        %v1450 = vld [vmem:[#allocation8 + $0xe0] sm:$0xff]
        %v1451 = vld [vmem:[#allocation8 + $0xe8] sm:$0xff]
        %v1452 = vld [vmem:[#allocation8 + $0xf0] sm:$0xff]
        %v1453 = vld [vmem:[#allocation8 + $0xf8] sm:$0xff]
        %v1454 = vld [vmem:[#allocation8 + $0x100] sm:$0xff]
        %v1455 = vld [vmem:[#allocation8 + $0x108] sm:$0xff]
        %v1456 = vld [vmem:[#allocation8 + $0x110] sm:$0xff]
        %v1457 = vld [vmem:[#allocation8 + $0x118] sm:$0xff]
        %v1458 = vld [vmem:[#allocation8 + $0x120] sm:$0xff]
        %v1459 = vld [vmem:[#allocation8 + $0x128] sm:$0xff]
        %v1460 = vld [vmem:[#allocation8 + $0x130] sm:$0xff]
        %v1461 = vld [vmem:[#allocation8 + $0x138] sm:$0xff]
        %v1462 = vld [vmem:[#allocation8 + $0x140] sm:$0xff]
        %v1463 = vld [vmem:[#allocation8 + $0x148] sm:$0xff]
        %v1464 = vld [vmem:[#allocation8 + $0x150] sm:$0xff]
        %v1465 = vld [vmem:[#allocation8 + $0x158] sm:$0xff]
        %v1466 = vld [vmem:[#allocation8 + $0x160] sm:$0xff]
        %v1467 = vld [vmem:[#allocation8 + $0x168] sm:$0xff]
        %v1468 = vld [vmem:[#allocation8 + $0x170] sm:$0xff]
        %v1469 = vld [vmem:[#allocation8 + $0x178] sm:$0xff]
        %v1470 = vld [vmem:[#allocation8 + $0x180] sm:$0xff]
        %v1471 = vld [vmem:[#allocation8 + $0x188] sm:$0xff]
        %v1472 = vld [vmem:[#allocation8 + $0x190] sm:$0xff]
        %v1473 = vld [vmem:[#allocation8 + $0x198] sm:$0xff]
        %v1474 = vld [vmem:[#allocation8 + $0x1a0] sm:$0xff]
        %v1475 = vld [vmem:[#allocation8 + $0x1a8] sm:$0xff]
        %v1476 = vld [vmem:[#allocation8 + $0x1b0] sm:$0xff]
        %v1477 = vld [vmem:[#allocation8 + $0x1b8] sm:$0xff]
        %v1478 = vld [vmem:[#allocation8 + $0x1c0] sm:$0xff]
        %v1479 = vld [vmem:[#allocation8 + $0x1c8] sm:$0xff]
        %v1480 = vld [vmem:[#allocation8 + $0x1d0] sm:$0xff]
        %v1481 = vld [vmem:[#allocation8 + $0x1d8] sm:$0xff]
        %v1482 = vld [vmem:[#allocation8 + $0x1e0] sm:$0xff]
        %v1483 = vld [vmem:[#allocation8 + $0x1e8] sm:$0xff]
        %v1484 = vld [vmem:[#allocation8 + $0x1f0] sm:$0xff]
        %v1485 = vld [vmem:[#allocation8 + $0x1f8] sm:$0xff]
        %v1486 = vld [vmem:[%s4] sm:$0x3]
        %v1488 = vlaneseq
        %v1489 = vshrl.u32 %v1488, 7
        %v1490 = vsub.s32 0, %v1489
        %v1491 = vrot.slane %v1486, %v1490
        %v1492 = vlaneseq
        %v1493 = vshrl.u32 %v1492, 7
        %v1494 = vsub.s32 1, %v1493
        %v1495 = vrot.slane %v1486, %v1494
        %v1562 = vunpack.c.l.b16 %v1422
        %v1563 = vunpack.c.h.b16 %v1422
        %v1564 = vunpack.c.l.b16 %v1423
        %v1565 = vunpack.c.h.b16 %v1423
        %v1566 = vunpack.c.l.b16 %v1424
        %v1567 = vunpack.c.h.b16 %v1424
        %v1568 = vunpack.c.l.b16 %v1425
        %v1569 = vunpack.c.h.b16 %v1425
        %v1570 = vunpack.c.l.b16 %v1426
        %v1571 = vunpack.c.h.b16 %v1426
        %v1572 = vunpack.c.l.b16 %v1427
        %v1573 = vunpack.c.h.b16 %v1427
        %v1574 = vunpack.c.l.b16 %v1428
        %v1575 = vunpack.c.h.b16 %v1428
        %v1576 = vunpack.c.l.b16 %v1429
        %v1577 = vunpack.c.h.b16 %v1429
        %v1578 = vunpack.c.l.b16 %v1430
        %v1579 = vunpack.c.h.b16 %v1430
        %v1580 = vunpack.c.l.b16 %v1431
        %v1581 = vunpack.c.h.b16 %v1431
        %v1582 = vunpack.c.l.b16 %v1432
        %v1583 = vunpack.c.h.b16 %v1432
        %v1584 = vunpack.c.l.b16 %v1433
        %v1585 = vunpack.c.h.b16 %v1433
        %v1586 = vunpack.c.l.b16 %v1434
        %v1587 = vunpack.c.h.b16 %v1434
        %v1588 = vunpack.c.l.b16 %v1435
        %v1589 = vunpack.c.h.b16 %v1435
        %v1590 = vunpack.c.l.b16 %v1436
        %v1591 = vunpack.c.h.b16 %v1436
        %v1592 = vunpack.c.l.b16 %v1437
        %v1593 = vunpack.c.h.b16 %v1437
        %v1594 = vunpack.c.l.b16 %v1438
        %v1595 = vunpack.c.h.b16 %v1438
        %v1596 = vunpack.c.l.b16 %v1439
        %v1597 = vunpack.c.h.b16 %v1439
        %v1598 = vunpack.c.l.b16 %v1440
        %v1599 = vunpack.c.h.b16 %v1440
        %v1600 = vunpack.c.l.b16 %v1441
        %v1601 = vunpack.c.h.b16 %v1441
        %v1602 = vunpack.c.l.b16 %v1442
        %v1603 = vunpack.c.h.b16 %v1442
        %v1604 = vunpack.c.l.b16 %v1443
        %v1605 = vunpack.c.h.b16 %v1443
        %v1606 = vunpack.c.l.b16 %v1444
        %v1607 = vunpack.c.h.b16 %v1444
        %v1608 = vunpack.c.l.b16 %v1445
        %v1609 = vunpack.c.h.b16 %v1445
        %v1610 = vunpack.c.l.b16 %v1446
        %v1611 = vunpack.c.h.b16 %v1446
        %v1612 = vunpack.c.l.b16 %v1447
        %v1613 = vunpack.c.h.b16 %v1447
        %v1614 = vunpack.c.l.b16 %v1448
        %v1615 = vunpack.c.h.b16 %v1448
        %v1616 = vunpack.c.l.b16 %v1449
        %v1617 = vunpack.c.h.b16 %v1449
        %v1618 = vunpack.c.l.b16 %v1450
        %v1619 = vunpack.c.h.b16 %v1450
        %v1620 = vunpack.c.l.b16 %v1451
        %v1621 = vunpack.c.h.b16 %v1451
        %v1622 = vunpack.c.l.b16 %v1452
        %v1623 = vunpack.c.h.b16 %v1452
        %v1624 = vunpack.c.l.b16 %v1453
        %v1625 = vunpack.c.h.b16 %v1453
        %v1626 = vunpack.c.l.b16 %v1454
        %v1627 = vunpack.c.h.b16 %v1454
        %v1628 = vunpack.c.l.b16 %v1455
        %v1629 = vunpack.c.h.b16 %v1455
        %v1630 = vunpack.c.l.b16 %v1456
        %v1631 = vunpack.c.h.b16 %v1456
        %v1632 = vunpack.c.l.b16 %v1457
        %v1633 = vunpack.c.h.b16 %v1457
        %v1634 = vunpack.c.l.b16 %v1458
        %v1635 = vunpack.c.h.b16 %v1458
        %v1636 = vunpack.c.l.b16 %v1459
        %v1637 = vunpack.c.h.b16 %v1459
        %v1638 = vunpack.c.l.b16 %v1460
        %v1639 = vunpack.c.h.b16 %v1460
        %v1640 = vunpack.c.l.b16 %v1461
        %v1641 = vunpack.c.h.b16 %v1461
        %v1642 = vunpack.c.l.b16 %v1462
        %v1643 = vunpack.c.h.b16 %v1462
        %v1644 = vunpack.c.l.b16 %v1463
        %v1645 = vunpack.c.h.b16 %v1463
        %v1646 = vunpack.c.l.b16 %v1464
        %v1647 = vunpack.c.h.b16 %v1464
        %v1648 = vunpack.c.l.b16 %v1465
        %v1649 = vunpack.c.h.b16 %v1465
        %v1650 = vunpack.c.l.b16 %v1466
        %v1651 = vunpack.c.h.b16 %v1466
        %v1652 = vunpack.c.l.b16 %v1467
        %v1653 = vunpack.c.h.b16 %v1467
        %v1654 = vunpack.c.l.b16 %v1468
        %v1655 = vunpack.c.h.b16 %v1468
        %v1656 = vunpack.c.l.b16 %v1469
        %v1657 = vunpack.c.h.b16 %v1469
        %v1658 = vunpack.c.l.b16 %v1470
        %v1659 = vunpack.c.h.b16 %v1470
        %v1660 = vunpack.c.l.b16 %v1471
        %v1661 = vunpack.c.h.b16 %v1471
        %v1662 = vunpack.c.l.b16 %v1472
        %v1663 = vunpack.c.h.b16 %v1472
        %v1664 = vunpack.c.l.b16 %v1473
        %v1665 = vunpack.c.h.b16 %v1473
        %v1666 = vunpack.c.l.b16 %v1474
        %v1667 = vunpack.c.h.b16 %v1474
        %v1668 = vunpack.c.l.b16 %v1475
        %v1669 = vunpack.c.h.b16 %v1475
        %v1670 = vunpack.c.l.b16 %v1476
        %v1671 = vunpack.c.h.b16 %v1476
        %v1672 = vunpack.c.l.b16 %v1477
        %v1673 = vunpack.c.h.b16 %v1477
        %v1674 = vunpack.c.l.b16 %v1478
        %v1675 = vunpack.c.h.b16 %v1478
        %v1676 = vunpack.c.l.b16 %v1479
        %v1677 = vunpack.c.h.b16 %v1479
        %v1678 = vunpack.c.l.b16 %v1480
        %v1679 = vunpack.c.h.b16 %v1480
        %v1680 = vunpack.c.l.b16 %v1481
        %v1681 = vunpack.c.h.b16 %v1481
        %v1682 = vunpack.c.l.b16 %v1482
        %v1683 = vunpack.c.h.b16 %v1482
        %v1684 = vunpack.c.l.b16 %v1483
        %v1685 = vunpack.c.h.b16 %v1483
        %v1686 = vunpack.c.l.b16 %v1484
        %v1687 = vunpack.c.h.b16 %v1484
        %v1688 = vunpack.c.l.b16 %v1485
        %v1689 = vunpack.c.h.b16 %v1485
        %v1690 = vpack.c.b16 %v1564, %v1562
        %v1691 = vpack.c.b16 %v1565, %v1563
        %v1692 = vpack.c.b16 %v1568, %v1566
        %v1693 = vpack.c.b16 %v1569, %v1567
        %v1694 = vpack.c.b16 %v1572, %v1570
        %v1695 = vpack.c.b16 %v1573, %v1571
        %v1696 = vpack.c.b16 %v1576, %v1574
        %v1697 = vpack.c.b16 %v1577, %v1575
        %v1698 = vpack.c.b16 %v1580, %v1578
        %v1699 = vpack.c.b16 %v1581, %v1579
        %v1700 = vpack.c.b16 %v1584, %v1582
        %v1701 = vpack.c.b16 %v1585, %v1583
        %v1702 = vpack.c.b16 %v1588, %v1586
        %v1703 = vpack.c.b16 %v1589, %v1587
        %v1704 = vpack.c.b16 %v1592, %v1590
        %v1705 = vpack.c.b16 %v1593, %v1591
        %v1706 = vpack.c.b16 %v1596, %v1594
        %v1707 = vpack.c.b16 %v1597, %v1595
        %v1708 = vpack.c.b16 %v1600, %v1598
        %v1709 = vpack.c.b16 %v1601, %v1599
        %v1710 = vpack.c.b16 %v1604, %v1602
        %v1711 = vpack.c.b16 %v1605, %v1603
        %v1712 = vpack.c.b16 %v1608, %v1606
        %v1713 = vpack.c.b16 %v1609, %v1607
        %v1714 = vpack.c.b16 %v1612, %v1610
        %v1715 = vpack.c.b16 %v1613, %v1611
        %v1716 = vpack.c.b16 %v1616, %v1614
        %v1717 = vpack.c.b16 %v1617, %v1615
        %v1718 = vpack.c.b16 %v1620, %v1618
        %v1719 = vpack.c.b16 %v1621, %v1619
        %v1720 = vpack.c.b16 %v1624, %v1622
        %v1721 = vpack.c.b16 %v1625, %v1623
        %v1722 = vpack.c.b16 %v1628, %v1626
        %v1723 = vpack.c.b16 %v1629, %v1627
        %v1724 = vpack.c.b16 %v1632, %v1630
        %v1725 = vpack.c.b16 %v1633, %v1631
        %v1726 = vpack.c.b16 %v1636, %v1634
        %v1727 = vpack.c.b16 %v1637, %v1635
        %v1728 = vpack.c.b16 %v1640, %v1638
        %v1729 = vpack.c.b16 %v1641, %v1639
        %v1730 = vpack.c.b16 %v1644, %v1642
        %v1731 = vpack.c.b16 %v1645, %v1643
        %v1732 = vpack.c.b16 %v1648, %v1646
        %v1733 = vpack.c.b16 %v1649, %v1647
        %v1734 = vpack.c.b16 %v1652, %v1650
        %v1735 = vpack.c.b16 %v1653, %v1651
        %v1736 = vpack.c.b16 %v1656, %v1654
        %v1737 = vpack.c.b16 %v1657, %v1655
        %v1738 = vpack.c.b16 %v1660, %v1658
        %v1739 = vpack.c.b16 %v1661, %v1659
        %v1740 = vpack.c.b16 %v1664, %v1662
        %v1741 = vpack.c.b16 %v1665, %v1663
        %v1742 = vpack.c.b16 %v1668, %v1666
        %v1743 = vpack.c.b16 %v1669, %v1667
        %v1744 = vpack.c.b16 %v1672, %v1670
        %v1745 = vpack.c.b16 %v1673, %v1671
        %v1746 = vpack.c.b16 %v1676, %v1674
        %v1747 = vpack.c.b16 %v1677, %v1675
        %v1748 = vpack.c.b16 %v1680, %v1678
        %v1749 = vpack.c.b16 %v1681, %v1679
        %v1750 = vpack.c.b16 %v1684, %v1682
        %v1751 = vpack.c.b16 %v1685, %v1683
        %v1752 = vpack.c.b16 %v1688, %v1686
        %v1753 = vpack.c.b16 %v1689, %v1687
        %1818 = vmatprep.subr.bf16.mxu0 %v1705
        %1819 = vmatpush1.bf16.msra.mxu0 %v1704
        %1820 = vmatprep.subr.bf16.mxu0 %v1703
        %1821 = vmatpush1.bf16.msra.mxu0 %v1702
        %1822 = vmatprep.subr.bf16.mxu0 %v1701
        %1823 = vmatpush1.bf16.msra.mxu0 %v1700
        %1824 = vmatprep.subr.bf16.mxu0 %v1699
        %1825 = vmatpush1.bf16.msra.mxu0 %v1698
        %1826 = vmatprep.subr.bf16.mxu0 %v1697
        %1827 = vmatpush1.bf16.msra.mxu0 %v1696
        %1828 = vmatprep.subr.bf16.mxu0 %v1695
        %1829 = vmatpush1.bf16.msra.mxu0 %v1694
        %1830 = vmatprep.subr.bf16.mxu0 %v1693
        %1831 = vmatpush1.bf16.msra.mxu0 %v1692
        %1832 = vmatprep.subr.bf16.mxu0 %v1691
        %1833 = vmatpush1.bf16.msra.mxu0 %v1690
        %1834 = vmatprep.subr.bf16.mxu0 %v1721
        %1835 = vmatpush2.bf16.msra.mxu0 %v1720
        %1836 = vmatprep.subr.bf16.mxu0 %v1719
        %1837 = vmatpush2.bf16.msra.mxu0 %v1718
        %1838 = vmatprep.subr.bf16.mxu0 %v1717
        %1839 = vmatpush2.bf16.msra.mxu0 %v1716
        %1840 = vmatprep.subr.bf16.mxu0 %v1715
        %1841 = vmatpush2.bf16.msra.mxu0 %v1714
        %1842 = vmatprep.subr.bf16.mxu0 %v1713
        %1843 = vmatpush2.bf16.msra.mxu0 %v1712
        %1844 = vmatprep.subr.bf16.mxu0 %v1711
        %1845 = vmatpush2.bf16.msra.mxu0 %v1710
        %1846 = vmatprep.subr.bf16.mxu0 %v1709
        %1847 = vmatpush2.bf16.msra.mxu0 %v1708
        %1848 = vmatprep.subr.bf16.mxu0 %v1707
        %1849 = vmatpush2.bf16.msra.mxu0 %v1706
        %1850 = vmatprep.mubr.bf16.mxu0 %v1359
        %1851 = vmatmul.mubr.bf16.gmra.mxu0 %v1358
        %v1852 = vpop.f32.mrf.mxu0
        %v1853 = vadd.f32 %v1491, %v1852
        %v1854 = vpop.f32.mrf.mxu0
        %v1855 = vadd.f32 %v1495, %v1854
        %v1856 = vpop.f32.mrf.mxu0
        %v1857 = vadd.f32 %v1491, %v1856
        %v1858 = vpop.f32.mrf.mxu0
        %v1859 = vadd.f32 %v1495, %v1858
        %1860 = vmatprep.mubr.bf16.mxu0 %v1363
        %1861 = vmatmul.mubr.bf16.gmra.mxu0 %v1362
        %v1862 = vpop.f32.mrf.mxu0
        %v1863 = vadd.f32 %v1491, %v1862
        %v1864 = vpop.f32.mrf.mxu0
        %v1865 = vadd.f32 %v1495, %v1864
        %v1866 = vpop.f32.mrf.mxu0
        %v1867 = vadd.f32 %v1491, %v1866
        %v1868 = vpop.f32.mrf.mxu0
        %v1869 = vadd.f32 %v1495, %v1868
        %1870 = vmatprep.mubr.bf16.mxu0 %v1367
        %1871 = vmatmul.mubr.bf16.gmra.mxu0 %v1366
        %v1872 = vpop.f32.mrf.mxu0
        %v1873 = vadd.f32 %v1491, %v1872
        %v1874 = vpop.f32.mrf.mxu0
        %v1875 = vadd.f32 %v1495, %v1874
        %v1876 = vpop.f32.mrf.mxu0
        %v1877 = vadd.f32 %v1491, %v1876
        %v1878 = vpop.f32.mrf.mxu0
        %v1879 = vadd.f32 %v1495, %v1878
        %1880 = vmatprep.mubr.bf16.mxu0 %v1371
        %1881 = vmatmul.mubr.bf16.gmra.mxu0 %v1370
        %v1882 = vpop.f32.mrf.mxu0
        %v1883 = vadd.f32 %v1491, %v1882
        %v1884 = vpop.f32.mrf.mxu0
        %v1885 = vadd.f32 %v1495, %v1884
        %v1886 = vpop.f32.mrf.mxu0
        %v1887 = vadd.f32 %v1491, %v1886
        %v1888 = vpop.f32.mrf.mxu0
        %v1889 = vadd.f32 %v1495, %v1888
        %1890 = vmatprep.mubr.bf16.mxu0 %v1375
        %1891 = vmatmul.mubr.bf16.gmra.mxu0 %v1374
        %v1892 = vpop.f32.mrf.mxu0
        %v1893 = vadd.f32 %v1491, %v1892
        %v1894 = vpop.f32.mrf.mxu0
        %v1895 = vadd.f32 %v1495, %v1894
        %v1896 = vpop.f32.mrf.mxu0
        %v1897 = vadd.f32 %v1491, %v1896
        %v1898 = vpop.f32.mrf.mxu0
        %v1899 = vadd.f32 %v1495, %v1898
        %1900 = vmatprep.mubr.bf16.mxu0 %v1379
        %1901 = vmatmul.mubr.bf16.gmra.mxu0 %v1378
        %v1902 = vpop.f32.mrf.mxu0
        %v1903 = vadd.f32 %v1491, %v1902
        %v1904 = vpop.f32.mrf.mxu0
        %v1905 = vadd.f32 %v1495, %v1904
        %v1906 = vpop.f32.mrf.mxu0
        %v1907 = vadd.f32 %v1491, %v1906
        %v1908 = vpop.f32.mrf.mxu0
        %v1909 = vadd.f32 %v1495, %v1908
        %1910 = vmatprep.mubr.bf16.mxu0 %v1383
        %1911 = vmatmul.mubr.bf16.gmra.mxu0 %v1382
        %v1912 = vpop.f32.mrf.mxu0
        %v1913 = vadd.f32 %v1491, %v1912
        %v1914 = vpop.f32.mrf.mxu0
        %v1915 = vadd.f32 %v1495, %v1914
        %v1916 = vpop.f32.mrf.mxu0
        %v1917 = vadd.f32 %v1491, %v1916
        %v1918 = vpop.f32.mrf.mxu0
        %v1919 = vadd.f32 %v1495, %v1918
        %1920 = vmatprep.mubr.bf16.mxu0 %v1387
        %1921 = vmatmul.mubr.bf16.gmra.mxu0 %v1386
        %v1922 = vpop.f32.mrf.mxu0
        %v1923 = vadd.f32 %v1491, %v1922
        %v1924 = vpop.f32.mrf.mxu0
        %v1925 = vadd.f32 %v1495, %v1924
        %v1926 = vpop.f32.mrf.mxu0
        %v1927 = vadd.f32 %v1491, %v1926
        %v1928 = vpop.f32.mrf.mxu0
        %v1929 = vadd.f32 %v1495, %v1928
        %1930 = vmatprep.mubr.bf16.mxu0 %v1391
        %1931 = vmatmul.mubr.bf16.gmra.mxu0 %v1390
        %v1932 = vpop.f32.mrf.mxu0
        %v1933 = vadd.f32 %v1491, %v1932
        %v1934 = vpop.f32.mrf.mxu0
        %v1935 = vadd.f32 %v1495, %v1934
        %v1936 = vpop.f32.mrf.mxu0
        %v1937 = vadd.f32 %v1491, %v1936
        %v1938 = vpop.f32.mrf.mxu0
        %v1939 = vadd.f32 %v1495, %v1938
        %1940 = vmatprep.mubr.bf16.mxu0 %v1395
        %1941 = vmatmul.mubr.bf16.gmra.mxu0 %v1394
        %v1942 = vpop.f32.mrf.mxu0
        %v1943 = vadd.f32 %v1491, %v1942
        %v1944 = vpop.f32.mrf.mxu0
        %v1945 = vadd.f32 %v1495, %v1944
        %v1946 = vpop.f32.mrf.mxu0
        %v1947 = vadd.f32 %v1491, %v1946
        %v1948 = vpop.f32.mrf.mxu0
        %v1949 = vadd.f32 %v1495, %v1948
        %1950 = vmatprep.mubr.bf16.mxu0 %v1399
        %1951 = vmatmul.mubr.bf16.gmra.mxu0 %v1398
        %v1952 = vpop.f32.mrf.mxu0
        %v1953 = vadd.f32 %v1491, %v1952
        %v1954 = vpop.f32.mrf.mxu0
        %v1955 = vadd.f32 %v1495, %v1954
        %v1956 = vpop.f32.mrf.mxu0
        %v1957 = vadd.f32 %v1491, %v1956
        %v1958 = vpop.f32.mrf.mxu0
        %v1959 = vadd.f32 %v1495, %v1958
        %1960 = vmatprep.mubr.bf16.mxu0 %v1403
        %1961 = vmatmul.mubr.bf16.gmra.mxu0 %v1402
        %v1962 = vpop.f32.mrf.mxu0
        %v1963 = vadd.f32 %v1491, %v1962
        %v1964 = vpop.f32.mrf.mxu0
        %v1965 = vadd.f32 %v1495, %v1964
        %v1966 = vpop.f32.mrf.mxu0
        %v1967 = vadd.f32 %v1491, %v1966
        %v1968 = vpop.f32.mrf.mxu0
        %v1969 = vadd.f32 %v1495, %v1968
        %1970 = vmatprep.mubr.bf16.mxu0 %v1407
        %1971 = vmatmul.mubr.bf16.gmra.mxu0 %v1406
        %v1972 = vpop.f32.mrf.mxu0
        %v1973 = vadd.f32 %v1491, %v1972
        %v1974 = vpop.f32.mrf.mxu0
        %v1975 = vadd.f32 %v1495, %v1974
        %v1976 = vpop.f32.mrf.mxu0
        %v1977 = vadd.f32 %v1491, %v1976
        %v1978 = vpop.f32.mrf.mxu0
        %v1979 = vadd.f32 %v1495, %v1978
        %1980 = vmatprep.mubr.bf16.mxu0 %v1411
        %1981 = vmatmul.mubr.bf16.gmra.mxu0 %v1410
        %v1982 = vpop.f32.mrf.mxu0
        %v1983 = vadd.f32 %v1491, %v1982
        %v1984 = vpop.f32.mrf.mxu0
        %v1985 = vadd.f32 %v1495, %v1984
        %v1986 = vpop.f32.mrf.mxu0
        %v1987 = vadd.f32 %v1491, %v1986
        %v1988 = vpop.f32.mrf.mxu0
        %v1989 = vadd.f32 %v1495, %v1988
        %1990 = vmatprep.mubr.bf16.mxu0 %v1415
        %1991 = vmatmul.mubr.bf16.gmra.mxu0 %v1414
        %v1992 = vpop.f32.mrf.mxu0
        %v1993 = vadd.f32 %v1491, %v1992
        %v1994 = vpop.f32.mrf.mxu0
        %v1995 = vadd.f32 %v1495, %v1994
        %v1996 = vpop.f32.mrf.mxu0
        %v1997 = vadd.f32 %v1491, %v1996
        %v1998 = vpop.f32.mrf.mxu0
        %v1999 = vadd.f32 %v1495, %v1998
        %2000 = vmatprep.mubr.bf16.mxu0 %v1419
        %2001 = vmatmul.mubr.bf16.gmra.mxu0 %v1418
        %v2002 = vpop.f32.mrf.mxu0
        %v2003 = vadd.f32 %v1491, %v2002
        %v2004 = vpop.f32.mrf.mxu0
        %v2005 = vadd.f32 %v1495, %v2004
        %v2006 = vpop.f32.mrf.mxu0
        %v2007 = vadd.f32 %v1491, %v2006
        %v2008 = vpop.f32.mrf.mxu0
        %v2009 = vadd.f32 %v1495, %v2008
        %2010 = vdwg.mxu0
        %2011 = vmatprep.subr.bf16.mxu0 %v1737
        %2012 = vmatpush1.bf16.msra.mxu0 %v1736
        %2013 = vmatprep.subr.bf16.mxu0 %v1735
        %2014 = vmatpush1.bf16.msra.mxu0 %v1734
        %2015 = vmatprep.subr.bf16.mxu0 %v1733
        %2016 = vmatpush1.bf16.msra.mxu0 %v1732
        %2017 = vmatprep.subr.bf16.mxu0 %v1731
        %2018 = vmatpush1.bf16.msra.mxu0 %v1730
        %2019 = vmatprep.subr.bf16.mxu0 %v1729
        %2020 = vmatpush1.bf16.msra.mxu0 %v1728
        %2021 = vmatprep.subr.bf16.mxu0 %v1727
        %2022 = vmatpush1.bf16.msra.mxu0 %v1726
        %2023 = vmatprep.subr.bf16.mxu0 %v1725
        %2024 = vmatpush1.bf16.msra.mxu0 %v1724
        %2025 = vmatprep.subr.bf16.mxu0 %v1723
        %2026 = vmatpush1.bf16.msra.mxu0 %v1722
        %2027 = vmatprep.subr.bf16.mxu0 %v1753
        %2028 = vmatpush2.bf16.msra.mxu0 %v1752
        %2029 = vmatprep.subr.bf16.mxu0 %v1751
        %2030 = vmatpush2.bf16.msra.mxu0 %v1750
        %2031 = vmatprep.subr.bf16.mxu0 %v1749
        %2032 = vmatpush2.bf16.msra.mxu0 %v1748
        %2033 = vmatprep.subr.bf16.mxu0 %v1747
        %2034 = vmatpush2.bf16.msra.mxu0 %v1746
        %2035 = vmatprep.subr.bf16.mxu0 %v1745
        %2036 = vmatpush2.bf16.msra.mxu0 %v1744
        %2037 = vmatprep.subr.bf16.mxu0 %v1743
        %2038 = vmatpush2.bf16.msra.mxu0 %v1742
        %2039 = vmatprep.subr.bf16.mxu0 %v1741
        %2040 = vmatpush2.bf16.msra.mxu0 %v1740
        %2041 = vmatprep.subr.bf16.mxu0 %v1739
        %2042 = vmatpush2.bf16.msra.mxu0 %v1738
        %2043 = vmatprep.mubr.bf16.mxu0 %v1361
        %2044 = vmatmul.mubr.bf16.gmra.mxu0 %v1360
        %v2045 = vpop.f32.mrf.mxu0
        %v2046 = vadd.f32 %v1853, %v2045
        %v2047 = vpop.f32.mrf.mxu0
        %v2048 = vadd.f32 %v1855, %v2047
        %v2049 = vpop.f32.mrf.mxu0
        %v2050 = vadd.f32 %v1857, %v2049
        %v2051 = vpop.f32.mrf.mxu0
        %v2052 = vadd.f32 %v1859, %v2051
        %2053 = vmatprep.mubr.bf16.mxu0 %v1365
        %2054 = vmatmul.mubr.bf16.gmra.mxu0 %v1364
        %v2055 = vpop.f32.mrf.mxu0
        %v2056 = vadd.f32 %v1863, %v2055
        %v2057 = vpop.f32.mrf.mxu0
        %v2058 = vadd.f32 %v1865, %v2057
        %v2059 = vpop.f32.mrf.mxu0
        %v2060 = vadd.f32 %v1867, %v2059
        %v2061 = vpop.f32.mrf.mxu0
        %v2062 = vadd.f32 %v1869, %v2061
        %2063 = vmatprep.mubr.bf16.mxu0 %v1369
        %2064 = vmatmul.mubr.bf16.gmra.mxu0 %v1368
        %v2065 = vpop.f32.mrf.mxu0
        %v2066 = vadd.f32 %v1873, %v2065
        %v2067 = vpop.f32.mrf.mxu0
        %v2068 = vadd.f32 %v1875, %v2067
        %v2069 = vpop.f32.mrf.mxu0
        %v2070 = vadd.f32 %v1877, %v2069
        %v2071 = vpop.f32.mrf.mxu0
        %v2072 = vadd.f32 %v1879, %v2071
        %2073 = vmatprep.mubr.bf16.mxu0 %v1373
        %2074 = vmatmul.mubr.bf16.gmra.mxu0 %v1372
        %v2075 = vpop.f32.mrf.mxu0
        %v2076 = vadd.f32 %v1883, %v2075
        %v2077 = vpop.f32.mrf.mxu0
        %v2078 = vadd.f32 %v1885, %v2077
        %v2079 = vpop.f32.mrf.mxu0
        %v2080 = vadd.f32 %v1887, %v2079
        %v2081 = vpop.f32.mrf.mxu0
        %v2082 = vadd.f32 %v1889, %v2081
        %2083 = vmatprep.mubr.bf16.mxu0 %v1377
        %2084 = vmatmul.mubr.bf16.gmra.mxu0 %v1376
        %v2085 = vpop.f32.mrf.mxu0
        %v2086 = vadd.f32 %v1893, %v2085
        %v2087 = vpop.f32.mrf.mxu0
        %v2088 = vadd.f32 %v1895, %v2087
        %v2089 = vpop.f32.mrf.mxu0
        %v2090 = vadd.f32 %v1897, %v2089
        %v2091 = vpop.f32.mrf.mxu0
        %v2092 = vadd.f32 %v1899, %v2091
        %2093 = vmatprep.mubr.bf16.mxu0 %v1381
        %2094 = vmatmul.mubr.bf16.gmra.mxu0 %v1380
        %v2095 = vpop.f32.mrf.mxu0
        %v2096 = vadd.f32 %v1903, %v2095
        %v2097 = vpop.f32.mrf.mxu0
        %v2098 = vadd.f32 %v1905, %v2097
        %v2099 = vpop.f32.mrf.mxu0
        %v2100 = vadd.f32 %v1907, %v2099
        %v2101 = vpop.f32.mrf.mxu0
        %v2102 = vadd.f32 %v1909, %v2101
        %2103 = vmatprep.mubr.bf16.mxu0 %v1385
        %2104 = vmatmul.mubr.bf16.gmra.mxu0 %v1384
        %v2105 = vpop.f32.mrf.mxu0
        %v2106 = vadd.f32 %v1913, %v2105
        %v2107 = vpop.f32.mrf.mxu0
        %v2108 = vadd.f32 %v1915, %v2107
        %v2109 = vpop.f32.mrf.mxu0
        %v2110 = vadd.f32 %v1917, %v2109
        %v2111 = vpop.f32.mrf.mxu0
        %v2112 = vadd.f32 %v1919, %v2111
        %2113 = vmatprep.mubr.bf16.mxu0 %v1389
        %2114 = vmatmul.mubr.bf16.gmra.mxu0 %v1388
        %v2115 = vpop.f32.mrf.mxu0
        %v2116 = vadd.f32 %v1923, %v2115
        %v2117 = vpop.f32.mrf.mxu0
        %v2118 = vadd.f32 %v1925, %v2117
        %v2119 = vpop.f32.mrf.mxu0
        %v2120 = vadd.f32 %v1927, %v2119
        %v2121 = vpop.f32.mrf.mxu0
        %v2122 = vadd.f32 %v1929, %v2121
        %2123 = vmatprep.mubr.bf16.mxu0 %v1393
        %2124 = vmatmul.mubr.bf16.gmra.mxu0 %v1392
        %v2125 = vpop.f32.mrf.mxu0
        %v2126 = vadd.f32 %v1933, %v2125
        %v2127 = vpop.f32.mrf.mxu0
        %v2128 = vadd.f32 %v1935, %v2127
        %v2129 = vpop.f32.mrf.mxu0
        %v2130 = vadd.f32 %v1937, %v2129
        %v2131 = vpop.f32.mrf.mxu0
        %v2132 = vadd.f32 %v1939, %v2131
        %2133 = vmatprep.mubr.bf16.mxu0 %v1397
        %2134 = vmatmul.mubr.bf16.gmra.mxu0 %v1396
        %v2135 = vpop.f32.mrf.mxu0
        %v2136 = vadd.f32 %v1943, %v2135
        %v2137 = vpop.f32.mrf.mxu0
        %v2138 = vadd.f32 %v1945, %v2137
        %v2139 = vpop.f32.mrf.mxu0
        %v2140 = vadd.f32 %v1947, %v2139
        %v2141 = vpop.f32.mrf.mxu0
        %v2142 = vadd.f32 %v1949, %v2141
        %2143 = vmatprep.mubr.bf16.mxu0 %v1401
        %2144 = vmatmul.mubr.bf16.gmra.mxu0 %v1400
        %v2145 = vpop.f32.mrf.mxu0
        %v2146 = vadd.f32 %v1953, %v2145
        %v2147 = vpop.f32.mrf.mxu0
        %v2148 = vadd.f32 %v1955, %v2147
        %v2149 = vpop.f32.mrf.mxu0
        %v2150 = vadd.f32 %v1957, %v2149
        %v2151 = vpop.f32.mrf.mxu0
        %v2152 = vadd.f32 %v1959, %v2151
        %2153 = vmatprep.mubr.bf16.mxu0 %v1405
        %2154 = vmatmul.mubr.bf16.gmra.mxu0 %v1404
        %v2155 = vpop.f32.mrf.mxu0
        %v2156 = vadd.f32 %v1963, %v2155
        %v2157 = vpop.f32.mrf.mxu0
        %v2158 = vadd.f32 %v1965, %v2157
        %v2159 = vpop.f32.mrf.mxu0
        %v2160 = vadd.f32 %v1967, %v2159
        %v2161 = vpop.f32.mrf.mxu0
        %v2162 = vadd.f32 %v1969, %v2161
        %2163 = vmatprep.mubr.bf16.mxu0 %v1409
        %2164 = vmatmul.mubr.bf16.gmra.mxu0 %v1408
        %v2165 = vpop.f32.mrf.mxu0
        %v2166 = vadd.f32 %v1973, %v2165
        %v2167 = vpop.f32.mrf.mxu0
        %v2168 = vadd.f32 %v1975, %v2167
        %v2169 = vpop.f32.mrf.mxu0
        %v2170 = vadd.f32 %v1977, %v2169
        %v2171 = vpop.f32.mrf.mxu0
        %v2172 = vadd.f32 %v1979, %v2171
        %2173 = vmatprep.mubr.bf16.mxu0 %v1413
        %2174 = vmatmul.mubr.bf16.gmra.mxu0 %v1412
        %v2175 = vpop.f32.mrf.mxu0
        %v2176 = vadd.f32 %v1983, %v2175
        %v2177 = vpop.f32.mrf.mxu0
        %v2178 = vadd.f32 %v1985, %v2177
        %v2179 = vpop.f32.mrf.mxu0
        %v2180 = vadd.f32 %v1987, %v2179
        %v2181 = vpop.f32.mrf.mxu0
        %v2182 = vadd.f32 %v1989, %v2181
        %2183 = vmatprep.mubr.bf16.mxu0 %v1417
        %2184 = vmatmul.mubr.bf16.gmra.mxu0 %v1416
        %v2185 = vpop.f32.mrf.mxu0
        %v2186 = vadd.f32 %v1993, %v2185
        %v2187 = vpop.f32.mrf.mxu0
        %v2188 = vadd.f32 %v1995, %v2187
        %v2189 = vpop.f32.mrf.mxu0
        %v2190 = vadd.f32 %v1997, %v2189
        %v2191 = vpop.f32.mrf.mxu0
        %v2192 = vadd.f32 %v1999, %v2191
        %2193 = vmatprep.mubr.bf16.mxu0 %v1421
        %2194 = vmatmul.mubr.bf16.gmra.mxu0 %v1420
        %v2195 = vpop.f32.mrf.mxu0
        %v2196 = vadd.f32 %v2003, %v2195
        %v2197 = vpop.f32.mrf.mxu0
        %v2198 = vadd.f32 %v2005, %v2197
        %v2199 = vpop.f32.mrf.mxu0
        %v2200 = vadd.f32 %v2007, %v2199
        %v2201 = vpop.f32.mrf.mxu0
        %v2202 = vadd.f32 %v2009, %v2201
        %2203 = vdwg.mxu0
        %v2204 = vadd.f32 %v2046, %v342
        %v2205 = vadd.f32 %v2048, %v343
        %v2206 = vadd.f32 %v2050, %v344
        %v2207 = vadd.f32 %v2052, %v345
        %v2208 = vadd.f32 %v2056, %v346
        %v2209 = vadd.f32 %v2058, %v347
        %v2210 = vadd.f32 %v2060, %v348
        %v2211 = vadd.f32 %v2062, %v349
        %v2212 = vadd.f32 %v2066, %v350
        %v2213 = vadd.f32 %v2068, %v351
        %v2214 = vadd.f32 %v2070, %v352
        %v2215 = vadd.f32 %v2072, %v353
        %v2216 = vadd.f32 %v2076, %v354
        %v2217 = vadd.f32 %v2078, %v355
        %v2218 = vadd.f32 %v2080, %v356
        %v2219 = vadd.f32 %v2082, %v357
        %v2220 = vadd.f32 %v2086, %v358
        %v2221 = vadd.f32 %v2088, %v359
        %v2222 = vadd.f32 %v2090, %v360
        %v2223 = vadd.f32 %v2092, %v361
        %v2224 = vadd.f32 %v2096, %v362
        %v2225 = vadd.f32 %v2098, %v363
        %v2226 = vadd.f32 %v2100, %v364
        %v2227 = vadd.f32 %v2102, %v365
        %v2228 = vadd.f32 %v2106, %v366
        %v2229 = vadd.f32 %v2108, %v367
        %v2230 = vadd.f32 %v2110, %v368
        %v2231 = vadd.f32 %v2112, %v369
        %v2232 = vadd.f32 %v2116, %v370
        %v2233 = vadd.f32 %v2118, %v371
        %v2234 = vadd.f32 %v2120, %v372
        %v2235 = vadd.f32 %v2122, %v373
        %v2236 = vadd.f32 %v2126, %v374
        %v2237 = vadd.f32 %v2128, %v375
        %v2238 = vadd.f32 %v2130, %v376
        %v2239 = vadd.f32 %v2132, %v377
        %v2240 = vadd.f32 %v2136, %v378
        %v2241 = vadd.f32 %v2138, %v379
        %v2242 = vadd.f32 %v2140, %v380
        %v2243 = vadd.f32 %v2142, %v381
        %v2244 = vadd.f32 %v2146, %v382
        %v2245 = vadd.f32 %v2148, %v383
        %v2246 = vadd.f32 %v2150, %v384
        %v2247 = vadd.f32 %v2152, %v385
        %v2248 = vadd.f32 %v2156, %v386
        %v2249 = vadd.f32 %v2158, %v387
        %v2250 = vadd.f32 %v2160, %v388
        %v2251 = vadd.f32 %v2162, %v389
        %v2252 = vadd.f32 %v2166, %v390
        %v2253 = vadd.f32 %v2168, %v391
        %v2254 = vadd.f32 %v2170, %v392
        %v2255 = vadd.f32 %v2172, %v393
        %v2256 = vadd.f32 %v2176, %v394
        %v2257 = vadd.f32 %v2178, %v395
        %v2258 = vadd.f32 %v2180, %v396
        %v2259 = vadd.f32 %v2182, %v397
        %v2260 = vadd.f32 %v2186, %v398
        %v2261 = vadd.f32 %v2188, %v399
        %v2262 = vadd.f32 %v2190, %v400
        %v2263 = vadd.f32 %v2192, %v401
        %v2264 = vadd.f32 %v2196, %v402
        %v2265 = vadd.f32 %v2198, %v403
        %v2266 = vadd.f32 %v2200, %v404
        %v2267 = vadd.f32 %v2202, %v405
        %v2268 = vadd.f32 %v2204, %v2205
        %2269 = vadd.xlane.f32.xlu0 %v2268
        %v2270 = vpop.xlane.xlu0 %2269
        %v2271 = vadd.f32 %v2206, %v2207
        %2272 = vadd.xlane.f32.xlu0 %v2271
        %v2273 = vpop.xlane.xlu0 %2272
        %v2274 = vadd.f32 %v2208, %v2209
        %2275 = vadd.xlane.f32.xlu0 %v2274
        %v2276 = vpop.xlane.xlu0 %2275
        %v2277 = vadd.f32 %v2210, %v2211
        %2278 = vadd.xlane.f32.xlu0 %v2277
        %v2279 = vpop.xlane.xlu0 %2278
        %v2280 = vadd.f32 %v2212, %v2213
        %2281 = vadd.xlane.f32.xlu0 %v2280
        %v2282 = vpop.xlane.xlu0 %2281
        %v2283 = vadd.f32 %v2214, %v2215
        %2284 = vadd.xlane.f32.xlu0 %v2283
        %v2285 = vpop.xlane.xlu0 %2284
        %v2286 = vadd.f32 %v2216, %v2217
        %2287 = vadd.xlane.f32.xlu0 %v2286
        %v2288 = vpop.xlane.xlu0 %2287
        %v2289 = vadd.f32 %v2218, %v2219
        %2290 = vadd.xlane.f32.xlu0 %v2289
        %v2291 = vpop.xlane.xlu0 %2290
        %v2292 = vadd.f32 %v2220, %v2221
        %2293 = vadd.xlane.f32.xlu0 %v2292
        %v2294 = vpop.xlane.xlu0 %2293
        %v2295 = vadd.f32 %v2222, %v2223
        %2296 = vadd.xlane.f32.xlu0 %v2295
        %v2297 = vpop.xlane.xlu0 %2296
        %v2298 = vadd.f32 %v2224, %v2225
        %2299 = vadd.xlane.f32.xlu0 %v2298
        %v2300 = vpop.xlane.xlu0 %2299
        %v2301 = vadd.f32 %v2226, %v2227
        %2302 = vadd.xlane.f32.xlu0 %v2301
        %v2303 = vpop.xlane.xlu0 %2302
        %v2304 = vadd.f32 %v2228, %v2229
        %2305 = vadd.xlane.f32.xlu0 %v2304
        %v2306 = vpop.xlane.xlu0 %2305
        %v2307 = vadd.f32 %v2230, %v2231
        %2308 = vadd.xlane.f32.xlu0 %v2307
        %v2309 = vpop.xlane.xlu0 %2308
        %v2310 = vadd.f32 %v2232, %v2233
        %2311 = vadd.xlane.f32.xlu0 %v2310
        %v2312 = vpop.xlane.xlu0 %2311
        %v2313 = vadd.f32 %v2234, %v2235
        %2314 = vadd.xlane.f32.xlu0 %v2313
        %v2315 = vpop.xlane.xlu0 %2314
        %v2316 = vadd.f32 %v2236, %v2237
        %2317 = vadd.xlane.f32.xlu0 %v2316
        %v2318 = vpop.xlane.xlu0 %2317
        %v2319 = vadd.f32 %v2238, %v2239
        %2320 = vadd.xlane.f32.xlu0 %v2319
        %v2321 = vpop.xlane.xlu0 %2320
        %v2322 = vadd.f32 %v2240, %v2241
        %2323 = vadd.xlane.f32.xlu0 %v2322
        %v2324 = vpop.xlane.xlu0 %2323
        %v2325 = vadd.f32 %v2242, %v2243
        %2326 = vadd.xlane.f32.xlu0 %v2325
        %v2327 = vpop.xlane.xlu0 %2326
        %v2328 = vadd.f32 %v2244, %v2245
        %2329 = vadd.xlane.f32.xlu0 %v2328
        %v2330 = vpop.xlane.xlu0 %2329
        %v2331 = vadd.f32 %v2246, %v2247
        %2332 = vadd.xlane.f32.xlu0 %v2331
        %v2333 = vpop.xlane.xlu0 %2332
        %v2334 = vadd.f32 %v2248, %v2249
        %2335 = vadd.xlane.f32.xlu0 %v2334
        %v2336 = vpop.xlane.xlu0 %2335
        %v2337 = vadd.f32 %v2250, %v2251
        %2338 = vadd.xlane.f32.xlu0 %v2337
        %v2339 = vpop.xlane.xlu0 %2338
        %v2340 = vadd.f32 %v2252, %v2253
        %2341 = vadd.xlane.f32.xlu0 %v2340
        %v2342 = vpop.xlane.xlu0 %2341
        %v2343 = vadd.f32 %v2254, %v2255
        %2344 = vadd.xlane.f32.xlu0 %v2343
        %v2345 = vpop.xlane.xlu0 %2344
        %v2346 = vadd.f32 %v2256, %v2257
        %2347 = vadd.xlane.f32.xlu0 %v2346
        %v2348 = vpop.xlane.xlu0 %2347
        %v2349 = vadd.f32 %v2258, %v2259
        %2350 = vadd.xlane.f32.xlu0 %v2349
        %v2351 = vpop.xlane.xlu0 %2350
        %v2352 = vadd.f32 %v2260, %v2261
        %2353 = vadd.xlane.f32.xlu0 %v2352
        %v2354 = vpop.xlane.xlu0 %2353
        %v2355 = vadd.f32 %v2262, %v2263
        %2356 = vadd.xlane.f32.xlu0 %v2355
        %v2357 = vpop.xlane.xlu0 %2356
        %v2358 = vadd.f32 %v2264, %v2265
        %2359 = vadd.xlane.f32.xlu0 %v2358
        %v2360 = vpop.xlane.xlu0 %2359
        %v2361 = vadd.f32 %v2266, %v2267
        %2362 = vadd.xlane.f32.xlu0 %v2361
        %v2363 = vpop.xlane.xlu0 %2362
        %v2364 = vrcp.pop 256.0
        %v2365 = vmul.f32 %v2270, %v2364
        %v2366 = vmul.f32 %v2273, %v2364
        %v2367 = vmul.f32 %v2276, %v2364
        %v2368 = vmul.f32 %v2279, %v2364
        %v2369 = vmul.f32 %v2282, %v2364
        %v2370 = vmul.f32 %v2285, %v2364
        %v2371 = vmul.f32 %v2288, %v2364
        %v2372 = vmul.f32 %v2291, %v2364
        %v2373 = vmul.f32 %v2294, %v2364
        %v2374 = vmul.f32 %v2297, %v2364
        %v2375 = vmul.f32 %v2300, %v2364
        %v2376 = vmul.f32 %v2303, %v2364
        %v2377 = vmul.f32 %v2306, %v2364
        %v2378 = vmul.f32 %v2309, %v2364
        %v2379 = vmul.f32 %v2312, %v2364
        %v2380 = vmul.f32 %v2315, %v2364
        %v2381 = vmul.f32 %v2318, %v2364
        %v2382 = vmul.f32 %v2321, %v2364
        %v2383 = vmul.f32 %v2324, %v2364
        %v2384 = vmul.f32 %v2327, %v2364
        %v2385 = vmul.f32 %v2330, %v2364
        %v2386 = vmul.f32 %v2333, %v2364
        %v2387 = vmul.f32 %v2336, %v2364
        %v2388 = vmul.f32 %v2339, %v2364
        %v2389 = vmul.f32 %v2342, %v2364
        %v2390 = vmul.f32 %v2345, %v2364
        %v2391 = vmul.f32 %v2348, %v2364
        %v2392 = vmul.f32 %v2351, %v2364
        %v2393 = vmul.f32 %v2354, %v2364
        %v2394 = vmul.f32 %v2357, %v2364
        %v2395 = vmul.f32 %v2360, %v2364
        %v2396 = vmul.f32 %v2363, %v2364
        %v2397 = vsub.f32 %v2204, %v2365
        %v2398 = vsub.f32 %v2205, %v2365
        %v2399 = vsub.f32 %v2206, %v2366
        %v2400 = vsub.f32 %v2207, %v2366
        %v2401 = vsub.f32 %v2208, %v2367
        %v2402 = vsub.f32 %v2209, %v2367
        %v2403 = vsub.f32 %v2210, %v2368
        %v2404 = vsub.f32 %v2211, %v2368
        %v2405 = vsub.f32 %v2212, %v2369
        %v2406 = vsub.f32 %v2213, %v2369
        %v2407 = vsub.f32 %v2214, %v2370
        %v2408 = vsub.f32 %v2215, %v2370
        %v2409 = vsub.f32 %v2216, %v2371
        %v2410 = vsub.f32 %v2217, %v2371
        %v2411 = vsub.f32 %v2218, %v2372
        %v2412 = vsub.f32 %v2219, %v2372
        %v2413 = vsub.f32 %v2220, %v2373
        %v2414 = vsub.f32 %v2221, %v2373
        %v2415 = vsub.f32 %v2222, %v2374
        %v2416 = vsub.f32 %v2223, %v2374
        %v2417 = vsub.f32 %v2224, %v2375
        %v2418 = vsub.f32 %v2225, %v2375
        %v2419 = vsub.f32 %v2226, %v2376
        %v2420 = vsub.f32 %v2227, %v2376
        %v2421 = vsub.f32 %v2228, %v2377
        %v2422 = vsub.f32 %v2229, %v2377
        %v2423 = vsub.f32 %v2230, %v2378
        %v2424 = vsub.f32 %v2231, %v2378
        %v2425 = vsub.f32 %v2232, %v2379
        %v2426 = vsub.f32 %v2233, %v2379
        %v2427 = vsub.f32 %v2234, %v2380
        %v2428 = vsub.f32 %v2235, %v2380
        %v2429 = vsub.f32 %v2236, %v2381
        %v2430 = vsub.f32 %v2237, %v2381
        %v2431 = vsub.f32 %v2238, %v2382
        %v2432 = vsub.f32 %v2239, %v2382
        %v2433 = vsub.f32 %v2240, %v2383
        %v2434 = vsub.f32 %v2241, %v2383
        %v2435 = vsub.f32 %v2242, %v2384
        %v2436 = vsub.f32 %v2243, %v2384
        %v2437 = vsub.f32 %v2244, %v2385
        %v2438 = vsub.f32 %v2245, %v2385
        %v2439 = vsub.f32 %v2246, %v2386
        %v2440 = vsub.f32 %v2247, %v2386
        %v2441 = vsub.f32 %v2248, %v2387
        %v2442 = vsub.f32 %v2249, %v2387
        %v2443 = vsub.f32 %v2250, %v2388
        %v2444 = vsub.f32 %v2251, %v2388
        %v2445 = vsub.f32 %v2252, %v2389
        %v2446 = vsub.f32 %v2253, %v2389
        %v2447 = vsub.f32 %v2254, %v2390
        %v2448 = vsub.f32 %v2255, %v2390
        %v2449 = vsub.f32 %v2256, %v2391
        %v2450 = vsub.f32 %v2257, %v2391
        %v2451 = vsub.f32 %v2258, %v2392
        %v2452 = vsub.f32 %v2259, %v2392
        %v2453 = vsub.f32 %v2260, %v2393
        %v2454 = vsub.f32 %v2261, %v2393
        %v2455 = vsub.f32 %v2262, %v2394
        %v2456 = vsub.f32 %v2263, %v2394
        %v2457 = vsub.f32 %v2264, %v2395
        %v2458 = vsub.f32 %v2265, %v2395
        %v2459 = vsub.f32 %v2266, %v2396
        %v2460 = vsub.f32 %v2267, %v2396
        %v2461 = vmul.f32 %v2397, %v2397
        %v2462 = vmul.f32 %v2398, %v2398
        %v2463 = vmul.f32 %v2399, %v2399
        %v2464 = vmul.f32 %v2400, %v2400
        %v2465 = vmul.f32 %v2401, %v2401
        %v2466 = vmul.f32 %v2402, %v2402
        %v2467 = vmul.f32 %v2403, %v2403
        %v2468 = vmul.f32 %v2404, %v2404
        %v2469 = vmul.f32 %v2405, %v2405
        %v2470 = vmul.f32 %v2406, %v2406
        %v2471 = vmul.f32 %v2407, %v2407
        %v2472 = vmul.f32 %v2408, %v2408
        %v2473 = vmul.f32 %v2409, %v2409
        %v2474 = vmul.f32 %v2410, %v2410
        %v2475 = vmul.f32 %v2411, %v2411
        %v2476 = vmul.f32 %v2412, %v2412
        %v2477 = vmul.f32 %v2413, %v2413
        %v2478 = vmul.f32 %v2414, %v2414
        %v2479 = vmul.f32 %v2415, %v2415
        %v2480 = vmul.f32 %v2416, %v2416
        %v2481 = vmul.f32 %v2417, %v2417
        %v2482 = vmul.f32 %v2418, %v2418
        %v2483 = vmul.f32 %v2419, %v2419
        %v2484 = vmul.f32 %v2420, %v2420
        %v2485 = vmul.f32 %v2421, %v2421
        %v2486 = vmul.f32 %v2422, %v2422
        %v2487 = vmul.f32 %v2423, %v2423
        %v2488 = vmul.f32 %v2424, %v2424
        %v2489 = vmul.f32 %v2425, %v2425
        %v2490 = vmul.f32 %v2426, %v2426
        %v2491 = vmul.f32 %v2427, %v2427
        %v2492 = vmul.f32 %v2428, %v2428
        %v2493 = vmul.f32 %v2429, %v2429
        %v2494 = vmul.f32 %v2430, %v2430
        %v2495 = vmul.f32 %v2431, %v2431
        %v2496 = vmul.f32 %v2432, %v2432
        %v2497 = vmul.f32 %v2433, %v2433
        %v2498 = vmul.f32 %v2434, %v2434
        %v2499 = vmul.f32 %v2435, %v2435
        %v2500 = vmul.f32 %v2436, %v2436
        %v2501 = vmul.f32 %v2437, %v2437
        %v2502 = vmul.f32 %v2438, %v2438
        %v2503 = vmul.f32 %v2439, %v2439
        %v2504 = vmul.f32 %v2440, %v2440
        %v2505 = vmul.f32 %v2441, %v2441
        %v2506 = vmul.f32 %v2442, %v2442
        %v2507 = vmul.f32 %v2443, %v2443
        %v2508 = vmul.f32 %v2444, %v2444
        %v2509 = vmul.f32 %v2445, %v2445
        %v2510 = vmul.f32 %v2446, %v2446
        %v2511 = vmul.f32 %v2447, %v2447
        %v2512 = vmul.f32 %v2448, %v2448
        %v2513 = vmul.f32 %v2449, %v2449
        %v2514 = vmul.f32 %v2450, %v2450
        %v2515 = vmul.f32 %v2451, %v2451
        %v2516 = vmul.f32 %v2452, %v2452
        %v2517 = vmul.f32 %v2453, %v2453
        %v2518 = vmul.f32 %v2454, %v2454
        %v2519 = vmul.f32 %v2455, %v2455
        %v2520 = vmul.f32 %v2456, %v2456
        %v2521 = vmul.f32 %v2457, %v2457
        %v2522 = vmul.f32 %v2458, %v2458
        %v2523 = vmul.f32 %v2459, %v2459
        %v2524 = vmul.f32 %v2460, %v2460
        %v2525 = vadd.f32 %v2461, %v2462
        %2526 = vadd.xlane.f32.xlu0 %v2525
        %v2527 = vpop.xlane.xlu0 %2526
        %v2528 = vadd.f32 %v2463, %v2464
        %2529 = vadd.xlane.f32.xlu0 %v2528
        %v2530 = vpop.xlane.xlu0 %2529
        %v2531 = vadd.f32 %v2465, %v2466
        %2532 = vadd.xlane.f32.xlu0 %v2531
        %v2533 = vpop.xlane.xlu0 %2532
        %v2534 = vadd.f32 %v2467, %v2468
        %2535 = vadd.xlane.f32.xlu0 %v2534
        %v2536 = vpop.xlane.xlu0 %2535
        %v2537 = vadd.f32 %v2469, %v2470
        %2538 = vadd.xlane.f32.xlu0 %v2537
        %v2539 = vpop.xlane.xlu0 %2538
        %v2540 = vadd.f32 %v2471, %v2472
        %2541 = vadd.xlane.f32.xlu0 %v2540
        %v2542 = vpop.xlane.xlu0 %2541
        %v2543 = vadd.f32 %v2473, %v2474
        %2544 = vadd.xlane.f32.xlu0 %v2543
        %v2545 = vpop.xlane.xlu0 %2544
        %v2546 = vadd.f32 %v2475, %v2476
        %2547 = vadd.xlane.f32.xlu0 %v2546
        %v2548 = vpop.xlane.xlu0 %2547
        %v2549 = vadd.f32 %v2477, %v2478
        %2550 = vadd.xlane.f32.xlu0 %v2549
        %v2551 = vpop.xlane.xlu0 %2550
        %v2552 = vadd.f32 %v2479, %v2480
        %2553 = vadd.xlane.f32.xlu0 %v2552
        %v2554 = vpop.xlane.xlu0 %2553
        %v2555 = vadd.f32 %v2481, %v2482
        %2556 = vadd.xlane.f32.xlu0 %v2555
        %v2557 = vpop.xlane.xlu0 %2556
        %v2558 = vadd.f32 %v2483, %v2484
        %2559 = vadd.xlane.f32.xlu0 %v2558
        %v2560 = vpop.xlane.xlu0 %2559
        %v2561 = vadd.f32 %v2485, %v2486
        %2562 = vadd.xlane.f32.xlu0 %v2561
        %v2563 = vpop.xlane.xlu0 %2562
        %v2564 = vadd.f32 %v2487, %v2488
        %2565 = vadd.xlane.f32.xlu0 %v2564
        %v2566 = vpop.xlane.xlu0 %2565
        %v2567 = vadd.f32 %v2489, %v2490
        %2568 = vadd.xlane.f32.xlu0 %v2567
        %v2569 = vpop.xlane.xlu0 %2568
        %v2570 = vadd.f32 %v2491, %v2492
        %2571 = vadd.xlane.f32.xlu0 %v2570
        %v2572 = vpop.xlane.xlu0 %2571
        %v2573 = vadd.f32 %v2493, %v2494
        %2574 = vadd.xlane.f32.xlu0 %v2573
        %v2575 = vpop.xlane.xlu0 %2574
        %v2576 = vadd.f32 %v2495, %v2496
        %2577 = vadd.xlane.f32.xlu0 %v2576
        %v2578 = vpop.xlane.xlu0 %2577
        %v2579 = vadd.f32 %v2497, %v2498
        %2580 = vadd.xlane.f32.xlu0 %v2579
        %v2581 = vpop.xlane.xlu0 %2580
        %v2582 = vadd.f32 %v2499, %v2500
        %2583 = vadd.xlane.f32.xlu0 %v2582
        %v2584 = vpop.xlane.xlu0 %2583
        %v2585 = vadd.f32 %v2501, %v2502
        %2586 = vadd.xlane.f32.xlu0 %v2585
        %v2587 = vpop.xlane.xlu0 %2586
        %v2588 = vadd.f32 %v2503, %v2504
        %2589 = vadd.xlane.f32.xlu0 %v2588
        %v2590 = vpop.xlane.xlu0 %2589
        %v2591 = vadd.f32 %v2505, %v2506
        %2592 = vadd.xlane.f32.xlu0 %v2591
        %v2593 = vpop.xlane.xlu0 %2592
        %v2594 = vadd.f32 %v2507, %v2508
        %2595 = vadd.xlane.f32.xlu0 %v2594
        %v2596 = vpop.xlane.xlu0 %2595
        %v2597 = vadd.f32 %v2509, %v2510
        %2598 = vadd.xlane.f32.xlu0 %v2597
        %v2599 = vpop.xlane.xlu0 %2598
        %v2600 = vadd.f32 %v2511, %v2512
        %2601 = vadd.xlane.f32.xlu0 %v2600
        %v2602 = vpop.xlane.xlu0 %2601
        %v2603 = vadd.f32 %v2513, %v2514
        %2604 = vadd.xlane.f32.xlu0 %v2603
        %v2605 = vpop.xlane.xlu0 %2604
        %v2606 = vadd.f32 %v2515, %v2516
        %2607 = vadd.xlane.f32.xlu0 %v2606
        %v2608 = vpop.xlane.xlu0 %2607
        %v2609 = vadd.f32 %v2517, %v2518
        %2610 = vadd.xlane.f32.xlu0 %v2609
        %v2611 = vpop.xlane.xlu0 %2610
        %v2612 = vadd.f32 %v2519, %v2520
        %2613 = vadd.xlane.f32.xlu0 %v2612
        %v2614 = vpop.xlane.xlu0 %2613
        %v2615 = vadd.f32 %v2521, %v2522
        %2616 = vadd.xlane.f32.xlu0 %v2615
        %v2617 = vpop.xlane.xlu0 %2616
        %v2618 = vadd.f32 %v2523, %v2524
        %2619 = vadd.xlane.f32.xlu0 %v2618
        %v2620 = vpop.xlane.xlu0 %2619
        %v2621 = vmul.f32 %v2527, %v2364
        %v2622 = vmul.f32 %v2530, %v2364
        %v2623 = vmul.f32 %v2533, %v2364
        %v2624 = vmul.f32 %v2536, %v2364
        %v2625 = vmul.f32 %v2539, %v2364
        %v2626 = vmul.f32 %v2542, %v2364
        %v2627 = vmul.f32 %v2545, %v2364
        %v2628 = vmul.f32 %v2548, %v2364
        %v2629 = vmul.f32 %v2551, %v2364
        %v2630 = vmul.f32 %v2554, %v2364
        %v2631 = vmul.f32 %v2557, %v2364
        %v2632 = vmul.f32 %v2560, %v2364
        %v2633 = vmul.f32 %v2563, %v2364
        %v2634 = vmul.f32 %v2566, %v2364
        %v2635 = vmul.f32 %v2569, %v2364
        %v2636 = vmul.f32 %v2572, %v2364
        %v2637 = vmul.f32 %v2575, %v2364
        %v2638 = vmul.f32 %v2578, %v2364
        %v2639 = vmul.f32 %v2581, %v2364
        %v2640 = vmul.f32 %v2584, %v2364
        %v2641 = vmul.f32 %v2587, %v2364
        %v2642 = vmul.f32 %v2590, %v2364
        %v2643 = vmul.f32 %v2593, %v2364
        %v2644 = vmul.f32 %v2596, %v2364
        %v2645 = vmul.f32 %v2599, %v2364
        %v2646 = vmul.f32 %v2602, %v2364
        %v2647 = vmul.f32 %v2605, %v2364
        %v2648 = vmul.f32 %v2608, %v2364
        %v2649 = vmul.f32 %v2611, %v2364
        %v2650 = vmul.f32 %v2614, %v2364
        %v2651 = vmul.f32 %v2617, %v2364
        %v2652 = vmul.f32 %v2620, %v2364
        %v2653 = vadd.f32 %v2621, 1e-05
        %v2654 = vadd.f32 %v2622, 1e-05
        %v2655 = vadd.f32 %v2623, 1e-05
        %v2656 = vadd.f32 %v2624, 1e-05
        %v2657 = vadd.f32 %v2625, 1e-05
        %v2658 = vadd.f32 %v2626, 1e-05
        %v2659 = vadd.f32 %v2627, 1e-05
        %v2660 = vadd.f32 %v2628, 1e-05
        %v2661 = vadd.f32 %v2629, 1e-05
        %v2662 = vadd.f32 %v2630, 1e-05
        %v2663 = vadd.f32 %v2631, 1e-05
        %v2664 = vadd.f32 %v2632, 1e-05
        %v2665 = vadd.f32 %v2633, 1e-05
        %v2666 = vadd.f32 %v2634, 1e-05
        %v2667 = vadd.f32 %v2635, 1e-05
        %v2668 = vadd.f32 %v2636, 1e-05
        %v2669 = vadd.f32 %v2637, 1e-05
        %v2670 = vadd.f32 %v2638, 1e-05
        %v2671 = vadd.f32 %v2639, 1e-05
        %v2672 = vadd.f32 %v2640, 1e-05
        %v2673 = vadd.f32 %v2641, 1e-05
        %v2674 = vadd.f32 %v2642, 1e-05
        %v2675 = vadd.f32 %v2643, 1e-05
        %v2676 = vadd.f32 %v2644, 1e-05
        %v2677 = vadd.f32 %v2645, 1e-05
        %v2678 = vadd.f32 %v2646, 1e-05
        %v2679 = vadd.f32 %v2647, 1e-05
        %v2680 = vadd.f32 %v2648, 1e-05
        %v2681 = vadd.f32 %v2649, 1e-05
        %v2682 = vadd.f32 %v2650, 1e-05
        %v2683 = vadd.f32 %v2651, 1e-05
        %v2684 = vadd.f32 %v2652, 1e-05
        %v2685 = vrsqrt.pop %v2653
        %v2686 = vrsqrt.pop %v2654
        %v2687 = vrsqrt.pop %v2655
        %v2688 = vrsqrt.pop %v2656
        %v2689 = vrsqrt.pop %v2657
        %v2690 = vrsqrt.pop %v2658
        %v2691 = vrsqrt.pop %v2659
        %v2692 = vrsqrt.pop %v2660
        %v2693 = vrsqrt.pop %v2661
        %v2694 = vrsqrt.pop %v2662
        %v2695 = vrsqrt.pop %v2663
        %v2696 = vrsqrt.pop %v2664
        %v2697 = vrsqrt.pop %v2665
        %v2698 = vrsqrt.pop %v2666
        %v2699 = vrsqrt.pop %v2667
        %v2700 = vrsqrt.pop %v2668
        %v2701 = vrsqrt.pop %v2669
        %v2702 = vrsqrt.pop %v2670
        %v2703 = vrsqrt.pop %v2671
        %v2704 = vrsqrt.pop %v2672
        %v2705 = vrsqrt.pop %v2673
        %v2706 = vrsqrt.pop %v2674
        %v2707 = vrsqrt.pop %v2675
        %v2708 = vrsqrt.pop %v2676
        %v2709 = vrsqrt.pop %v2677
        %v2710 = vrsqrt.pop %v2678
        %v2711 = vrsqrt.pop %v2679
        %v2712 = vrsqrt.pop %v2680
        %v2713 = vrsqrt.pop %v2681
        %v2714 = vrsqrt.pop %v2682
        %v2715 = vrsqrt.pop %v2683
        %v2716 = vrsqrt.pop %v2684
        %v2717 = vmul.f32 %v2397, %v2685
        %v2718 = vmul.f32 %v2398, %v2685
        %v2719 = vmul.f32 %v2399, %v2686
        %v2720 = vmul.f32 %v2400, %v2686
        %v2721 = vmul.f32 %v2401, %v2687
        %v2722 = vmul.f32 %v2402, %v2687
        %v2723 = vmul.f32 %v2403, %v2688
        %v2724 = vmul.f32 %v2404, %v2688
        %v2725 = vmul.f32 %v2405, %v2689
        %v2726 = vmul.f32 %v2406, %v2689
        %v2727 = vmul.f32 %v2407, %v2690
        %v2728 = vmul.f32 %v2408, %v2690
        %v2729 = vmul.f32 %v2409, %v2691
        %v2730 = vmul.f32 %v2410, %v2691
        %v2731 = vmul.f32 %v2411, %v2692
        %v2732 = vmul.f32 %v2412, %v2692
        %v2733 = vmul.f32 %v2413, %v2693
        %v2734 = vmul.f32 %v2414, %v2693
        %v2735 = vmul.f32 %v2415, %v2694
        %v2736 = vmul.f32 %v2416, %v2694
        %v2737 = vmul.f32 %v2417, %v2695
        %v2738 = vmul.f32 %v2418, %v2695
        %v2739 = vmul.f32 %v2419, %v2696
        %v2740 = vmul.f32 %v2420, %v2696
        %v2741 = vmul.f32 %v2421, %v2697
        %v2742 = vmul.f32 %v2422, %v2697
        %v2743 = vmul.f32 %v2423, %v2698
        %v2744 = vmul.f32 %v2424, %v2698
        %v2745 = vmul.f32 %v2425, %v2699
        %v2746 = vmul.f32 %v2426, %v2699
        %v2747 = vmul.f32 %v2427, %v2700
        %v2748 = vmul.f32 %v2428, %v2700
        %v2749 = vmul.f32 %v2429, %v2701
        %v2750 = vmul.f32 %v2430, %v2701
        %v2751 = vmul.f32 %v2431, %v2702
        %v2752 = vmul.f32 %v2432, %v2702
        %v2753 = vmul.f32 %v2433, %v2703
        %v2754 = vmul.f32 %v2434, %v2703
        %v2755 = vmul.f32 %v2435, %v2704
        %v2756 = vmul.f32 %v2436, %v2704
        %v2757 = vmul.f32 %v2437, %v2705
        %v2758 = vmul.f32 %v2438, %v2705
        %v2759 = vmul.f32 %v2439, %v2706
        %v2760 = vmul.f32 %v2440, %v2706
        %v2761 = vmul.f32 %v2441, %v2707
        %v2762 = vmul.f32 %v2442, %v2707
        %v2763 = vmul.f32 %v2443, %v2708
        %v2764 = vmul.f32 %v2444, %v2708
        %v2765 = vmul.f32 %v2445, %v2709
        %v2766 = vmul.f32 %v2446, %v2709
        %v2767 = vmul.f32 %v2447, %v2710
        %v2768 = vmul.f32 %v2448, %v2710
        %v2769 = vmul.f32 %v2449, %v2711
        %v2770 = vmul.f32 %v2450, %v2711
        %v2771 = vmul.f32 %v2451, %v2712
        %v2772 = vmul.f32 %v2452, %v2712
        %v2773 = vmul.f32 %v2453, %v2713
        %v2774 = vmul.f32 %v2454, %v2713
        %v2775 = vmul.f32 %v2455, %v2714
        %v2776 = vmul.f32 %v2456, %v2714
        %v2777 = vmul.f32 %v2457, %v2715
        %v2778 = vmul.f32 %v2458, %v2715
        %v2779 = vmul.f32 %v2459, %v2716
        %v2780 = vmul.f32 %v2460, %v2716
        %v2781 = vld [vmem:[%s5] sm:$0x3]
        %v2783 = vlaneseq
        %v2784 = vshrl.u32 %v2783, 7
        %v2785 = vsub.s32 0, %v2784
        %v2786 = vrot.slane %v2781, %v2785
        %v2787 = vlaneseq
        %v2788 = vshrl.u32 %v2787, 7
        %v2789 = vsub.s32 1, %v2788
        %v2790 = vrot.slane %v2781, %v2789
        %v2793 = vmul.f32 %v2717, %v2786
        %v2794 = vmul.f32 %v2718, %v2790
        %v2795 = vmul.f32 %v2719, %v2786
        %v2796 = vmul.f32 %v2720, %v2790
        %v2797 = vmul.f32 %v2721, %v2786
        %v2798 = vmul.f32 %v2722, %v2790
        %v2799 = vmul.f32 %v2723, %v2786
        %v2800 = vmul.f32 %v2724, %v2790
        %v2801 = vmul.f32 %v2725, %v2786
        %v2802 = vmul.f32 %v2726, %v2790
        %v2803 = vmul.f32 %v2727, %v2786
        %v2804 = vmul.f32 %v2728, %v2790
        %v2805 = vmul.f32 %v2729, %v2786
        %v2806 = vmul.f32 %v2730, %v2790
        %v2807 = vmul.f32 %v2731, %v2786
        %v2808 = vmul.f32 %v2732, %v2790
        %v2809 = vmul.f32 %v2733, %v2786
        %v2810 = vmul.f32 %v2734, %v2790
        %v2811 = vmul.f32 %v2735, %v2786
        %v2812 = vmul.f32 %v2736, %v2790
        %v2813 = vmul.f32 %v2737, %v2786
        %v2814 = vmul.f32 %v2738, %v2790
        %v2815 = vmul.f32 %v2739, %v2786
        %v2816 = vmul.f32 %v2740, %v2790
        %v2817 = vmul.f32 %v2741, %v2786
        %v2818 = vmul.f32 %v2742, %v2790
        %v2819 = vmul.f32 %v2743, %v2786
        %v2820 = vmul.f32 %v2744, %v2790
        %v2821 = vmul.f32 %v2745, %v2786
        %v2822 = vmul.f32 %v2746, %v2790
        %v2823 = vmul.f32 %v2747, %v2786
        %v2824 = vmul.f32 %v2748, %v2790
        %v2825 = vmul.f32 %v2749, %v2786
        %v2826 = vmul.f32 %v2750, %v2790
        %v2827 = vmul.f32 %v2751, %v2786
        %v2828 = vmul.f32 %v2752, %v2790
        %v2829 = vmul.f32 %v2753, %v2786
        %v2830 = vmul.f32 %v2754, %v2790
        %v2831 = vmul.f32 %v2755, %v2786
        %v2832 = vmul.f32 %v2756, %v2790
        %v2833 = vmul.f32 %v2757, %v2786
        %v2834 = vmul.f32 %v2758, %v2790
        %v2835 = vmul.f32 %v2759, %v2786
        %v2836 = vmul.f32 %v2760, %v2790
        %v2837 = vmul.f32 %v2761, %v2786
        %v2838 = vmul.f32 %v2762, %v2790
        %v2839 = vmul.f32 %v2763, %v2786
        %v2840 = vmul.f32 %v2764, %v2790
        %v2841 = vmul.f32 %v2765, %v2786
        %v2842 = vmul.f32 %v2766, %v2790
        %v2843 = vmul.f32 %v2767, %v2786
        %v2844 = vmul.f32 %v2768, %v2790
        %v2845 = vmul.f32 %v2769, %v2786
        %v2846 = vmul.f32 %v2770, %v2790
        %v2847 = vmul.f32 %v2771, %v2786
        %v2848 = vmul.f32 %v2772, %v2790
        %v2849 = vmul.f32 %v2773, %v2786
        %v2850 = vmul.f32 %v2774, %v2790
        %v2851 = vmul.f32 %v2775, %v2786
        %v2852 = vmul.f32 %v2776, %v2790
        %v2853 = vmul.f32 %v2777, %v2786
        %v2854 = vmul.f32 %v2778, %v2790
        %v2855 = vmul.f32 %v2779, %v2786
        %v2856 = vmul.f32 %v2780, %v2790
        %v2857 = vld [vmem:[%s6] sm:$0x3]
        %v2859 = vlaneseq
        %v2860 = vshrl.u32 %v2859, 7
        %v2861 = vsub.s32 0, %v2860
        %v2862 = vrot.slane %v2857, %v2861
        %v2863 = vlaneseq
        %v2864 = vshrl.u32 %v2863, 7
        %v2865 = vsub.s32 1, %v2864
        %v2866 = vrot.slane %v2857, %v2865
        %v2869 = vadd.f32 %v2793, %v2862
        %v2870 = vadd.f32 %v2794, %v2866
        %v2871 = vadd.f32 %v2795, %v2862
        %v2872 = vadd.f32 %v2796, %v2866
        %v2873 = vadd.f32 %v2797, %v2862
        %v2874 = vadd.f32 %v2798, %v2866
        %v2875 = vadd.f32 %v2799, %v2862
        %v2876 = vadd.f32 %v2800, %v2866
        %v2877 = vadd.f32 %v2801, %v2862
        %v2878 = vadd.f32 %v2802, %v2866
        %v2879 = vadd.f32 %v2803, %v2862
        %v2880 = vadd.f32 %v2804, %v2866
        %v2881 = vadd.f32 %v2805, %v2862
        %v2882 = vadd.f32 %v2806, %v2866
        %v2883 = vadd.f32 %v2807, %v2862
        %v2884 = vadd.f32 %v2808, %v2866
        %v2885 = vadd.f32 %v2809, %v2862
        %v2886 = vadd.f32 %v2810, %v2866
        %v2887 = vadd.f32 %v2811, %v2862
        %v2888 = vadd.f32 %v2812, %v2866
        %v2889 = vadd.f32 %v2813, %v2862
        %v2890 = vadd.f32 %v2814, %v2866
        %v2891 = vadd.f32 %v2815, %v2862
        %v2892 = vadd.f32 %v2816, %v2866
        %v2893 = vadd.f32 %v2817, %v2862
        %v2894 = vadd.f32 %v2818, %v2866
        %v2895 = vadd.f32 %v2819, %v2862
        %v2896 = vadd.f32 %v2820, %v2866
        %v2897 = vadd.f32 %v2821, %v2862
        %v2898 = vadd.f32 %v2822, %v2866
        %v2899 = vadd.f32 %v2823, %v2862
        %v2900 = vadd.f32 %v2824, %v2866
        %v2901 = vadd.f32 %v2825, %v2862
        %v2902 = vadd.f32 %v2826, %v2866
        %v2903 = vadd.f32 %v2827, %v2862
        %v2904 = vadd.f32 %v2828, %v2866
        %v2905 = vadd.f32 %v2829, %v2862
        %v2906 = vadd.f32 %v2830, %v2866
        %v2907 = vadd.f32 %v2831, %v2862
        %v2908 = vadd.f32 %v2832, %v2866
        %v2909 = vadd.f32 %v2833, %v2862
        %v2910 = vadd.f32 %v2834, %v2866
        %v2911 = vadd.f32 %v2835, %v2862
        %v2912 = vadd.f32 %v2836, %v2866
        %v2913 = vadd.f32 %v2837, %v2862
        %v2914 = vadd.f32 %v2838, %v2866
        %v2915 = vadd.f32 %v2839, %v2862
        %v2916 = vadd.f32 %v2840, %v2866
        %v2917 = vadd.f32 %v2841, %v2862
        %v2918 = vadd.f32 %v2842, %v2866
        %v2919 = vadd.f32 %v2843, %v2862
        %v2920 = vadd.f32 %v2844, %v2866
        %v2921 = vadd.f32 %v2845, %v2862
        %v2922 = vadd.f32 %v2846, %v2866
        %v2923 = vadd.f32 %v2847, %v2862
        %v2924 = vadd.f32 %v2848, %v2866
        %v2925 = vadd.f32 %v2849, %v2862
        %v2926 = vadd.f32 %v2850, %v2866
        %v2927 = vadd.f32 %v2851, %v2862
        %v2928 = vadd.f32 %v2852, %v2866
        %v2929 = vadd.f32 %v2853, %v2862
        %v2930 = vadd.f32 %v2854, %v2866
        %v2931 = vadd.f32 %v2855, %v2862
        %v2932 = vadd.f32 %v2856, %v2866
        %2933 = vst [vmem:[%s339] sm:$0xff] %v2869
        %2934 = vst [vmem:[%s339 + $0x8] sm:$0xff] %v2870
        %2935 = vst [vmem:[%s339 + $0x10] sm:$0xff] %v2871
        %2936 = vst [vmem:[%s339 + $0x18] sm:$0xff] %v2872
        %2937 = vst [vmem:[%s339 + $0x20] sm:$0xff] %v2873
        %2938 = vst [vmem:[%s339 + $0x28] sm:$0xff] %v2874
        %2939 = vst [vmem:[%s339 + $0x30] sm:$0xff] %v2875
        %2940 = vst [vmem:[%s339 + $0x38] sm:$0xff] %v2876
        %2941 = vst [vmem:[%s339 + $0x40] sm:$0xff] %v2877
        %2942 = vst [vmem:[%s339 + $0x48] sm:$0xff] %v2878
        %2943 = vst [vmem:[%s339 + $0x50] sm:$0xff] %v2879
        %2944 = vst [vmem:[%s339 + $0x58] sm:$0xff] %v2880
        %2945 = vst [vmem:[%s339 + $0x60] sm:$0xff] %v2881
        %2946 = vst [vmem:[%s339 + $0x68] sm:$0xff] %v2882
        %2947 = vst [vmem:[%s339 + $0x70] sm:$0xff] %v2883
        %2948 = vst [vmem:[%s339 + $0x78] sm:$0xff] %v2884
        %2949 = vst [vmem:[%s339 + $0x80] sm:$0xff] %v2885
        %2950 = vst [vmem:[%s339 + $0x88] sm:$0xff] %v2886
        %2951 = vst [vmem:[%s339 + $0x90] sm:$0xff] %v2887
        %2952 = vst [vmem:[%s339 + $0x98] sm:$0xff] %v2888
        %2953 = vst [vmem:[%s339 + $0xa0] sm:$0xff] %v2889
        %2954 = vst [vmem:[%s339 + $0xa8] sm:$0xff] %v2890
        %2955 = vst [vmem:[%s339 + $0xb0] sm:$0xff] %v2891
        %2956 = vst [vmem:[%s339 + $0xb8] sm:$0xff] %v2892
        %2957 = vst [vmem:[%s339 + $0xc0] sm:$0xff] %v2893
        %2958 = vst [vmem:[%s339 + $0xc8] sm:$0xff] %v2894
        %2959 = vst [vmem:[%s339 + $0xd0] sm:$0xff] %v2895
        %2960 = vst [vmem:[%s339 + $0xd8] sm:$0xff] %v2896
        %2961 = vst [vmem:[%s339 + $0xe0] sm:$0xff] %v2897
        %2962 = vst [vmem:[%s339 + $0xe8] sm:$0xff] %v2898
        %2963 = vst [vmem:[%s339 + $0xf0] sm:$0xff] %v2899
        %2964 = vst [vmem:[%s339 + $0xf8] sm:$0xff] %v2900
        %2965 = vst [vmem:[%s339 + $0x100] sm:$0xff] %v2901
        %2966 = vst [vmem:[%s339 + $0x108] sm:$0xff] %v2902
        %2967 = vst [vmem:[%s339 + $0x110] sm:$0xff] %v2903
        %2968 = vst [vmem:[%s339 + $0x118] sm:$0xff] %v2904
        %2969 = vst [vmem:[%s339 + $0x120] sm:$0xff] %v2905
        %2970 = vst [vmem:[%s339 + $0x128] sm:$0xff] %v2906
        %2971 = vst [vmem:[%s339 + $0x130] sm:$0xff] %v2907
        %2972 = vst [vmem:[%s339 + $0x138] sm:$0xff] %v2908
        %2973 = vst [vmem:[%s339 + $0x140] sm:$0xff] %v2909
        %2974 = vst [vmem:[%s339 + $0x148] sm:$0xff] %v2910
        %2975 = vst [vmem:[%s339 + $0x150] sm:$0xff] %v2911
        %2976 = vst [vmem:[%s339 + $0x158] sm:$0xff] %v2912
        %2977 = vst [vmem:[%s339 + $0x160] sm:$0xff] %v2913
        %2978 = vst [vmem:[%s339 + $0x168] sm:$0xff] %v2914
        %2979 = vst [vmem:[%s339 + $0x170] sm:$0xff] %v2915
        %2980 = vst [vmem:[%s339 + $0x178] sm:$0xff] %v2916
        %2981 = vst [vmem:[%s339 + $0x180] sm:$0xff] %v2917
        %2982 = vst [vmem:[%s339 + $0x188] sm:$0xff] %v2918
        %2983 = vst [vmem:[%s339 + $0x190] sm:$0xff] %v2919
        %2984 = vst [vmem:[%s339 + $0x198] sm:$0xff] %v2920
        %2985 = vst [vmem:[%s339 + $0x1a0] sm:$0xff] %v2921
        %2986 = vst [vmem:[%s339 + $0x1a8] sm:$0xff] %v2922
        %2987 = vst [vmem:[%s339 + $0x1b0] sm:$0xff] %v2923
        %2988 = vst [vmem:[%s339 + $0x1b8] sm:$0xff] %v2924
        %2989 = vst [vmem:[%s339 + $0x1c0] sm:$0xff] %v2925
        %2990 = vst [vmem:[%s339 + $0x1c8] sm:$0xff] %v2926
        %2991 = vst [vmem:[%s339 + $0x1d0] sm:$0xff] %v2927
        %2992 = vst [vmem:[%s339 + $0x1d8] sm:$0xff] %v2928
        %2993 = vst [vmem:[%s339 + $0x1e0] sm:$0xff] %v2929
        %2994 = vst [vmem:[%s339 + $0x1e8] sm:$0xff] %v2930
        %2995 = vst [vmem:[%s339 + $0x1f0] sm:$0xff] %v2931
        %2996 = vst [vmem:[%s339 + $0x1f8] sm:$0xff] %v2932
        %s2997 = sand.u32 %s186, 1
        %s2998 = scalar_lea.sflag [#allocation4], %s2997
        %s2999 = sand.u32 %s186, 1
        %s3000 = smul.addr %s2999, 512
        %s3001 = scalar_lea.vmem [#allocation10], %s3000
        // Predicated region
        $region65: #{tpu_custom_call.1} parent=47 // pred_check
          %p3002 = pneg %p196
        $region66: #{tpu_custom_call.1} parent=47 // pred_check_branch
          %3004 = sbr.rel (%p3002) target = $region68
        $region67: #{tpu_custom_call.1} parent=47 // pred_region
          %s3005 = smul.u32 32, %s26
          %s3007 = ssub.s32 8192, 8192
          %3008 = vsyncadd %s2998, %s3007
          %s3009 = smul.addr %s3005, 2
          %s3010 = smul.addr %s3009, 128
          %s3011 = scalar_lea.hbm %s7, %s3010
          %s3012 = sshll.u32 %s3001, 4
          %s3013 = int_to_ptr.vmem [resolvable:$true] %s3012
          %3018 = dma.vmem_to_hbm [thread:$0]  %s3013, 8192, %s3011, %s2998, 256, 256, 16
        $region68: #{tpu_custom_call.1} parent=47 // pred_fallthru
          _
      $region48: #{tpu_custom_call.1} parent=5 // pred_fallthru
        _
      %p3019 = scmp.le.s32.totalorder 2, %s21
      // Predicated region
      $region69: #{tpu_custom_call.1} parent=5 // pred_check
        %p3020 = pneg %p3019
      $region70: #{tpu_custom_call.1} parent=5 // pred_check_branch
        %3022 = sbr.rel (%p3020) target = $region72
      $region71: #{tpu_custom_call.1} parent=5 // pred_region
        %s3023 = ssub.s32 %s21, 2
        // Predicated region
        $region73: #{tpu_custom_call.1} parent=71 // pred_check
          %p3024 = pneg %p202
        $region74: #{tpu_custom_call.1} parent=71 // pred_check_branch
          %3026 = sbr.rel (%p3024) target = $region76
        $region75: #{tpu_custom_call.1} parent=71 // pred_region
          %s3027 = sand.u32 %s187, 1
          %s3028 = scalar_lea.sflag [#allocation4], %s3027
          %s3029 = sand.u32 %s187, 1
          %s3030 = smul.addr %s3029, 512
          %s3031 = scalar_lea.vmem [#allocation10], %s3030
          %3032 = dma.done %s3028, 8192
        $region76: #{tpu_custom_call.1} parent=71 // pred_fallthru
          _
      $region72: #{tpu_custom_call.1} parent=5 // pred_fallthru
        _
    $region6: #{tpu_custom_call.1} parent=1 // loop_footer
      %s25 = sadd.s32 1, %s21
    $region7: #{tpu_custom_call.1} parent=1 // loop_footer_branch
      %20 = sbr.rel target = $region3
    $region8: #{tpu_custom_call.1} parent=1 // loop_exit
      _
    %3033 = vsyncpa [#allocation3], 1
    %s3034 = scalar_lea.sflag [#allocation3], 1
    %3035 = vsyncpa %s3034, 1
    %3036 = vsyncpa [#allocation6], 1
    %3037 = vsyncpa [#allocation9], 1
    %3038 = vsyncpa [#allocation4], 1
    %s3039 = scalar_lea.sflag [#allocation4], 1
    %3040 = vsyncpa %s3039, 1

// kernel: tpu_custom_call.1
$region0: #{tpu_custom_call.1}
  #allocation0 [shape = 'u32[]', space=smem, size = 0x4, offset = 0x4, fixed_abs, tag = 'smem constant byte address 0x4 - core index']
  #allocation1 [shape = 'u32[144,128]{1,0:T(1,128)}', space=vmem, size = 0x12000, scoped, tag = 'internal scratch']
  %s0 = inlined_call_operand.hbm [shape: f32[1024,256], index: 0, kind: input, shape index: {}]
  %s1 = inlined_call_operand.hbm [shape: bf16[256,512], index: 1, kind: input, shape index: {}]
  %s2 = inlined_call_operand.hbm [shape: f32[1,512], index: 2, kind: input, shape index: {}]
  %s3 = inlined_call_operand.hbm [shape: bf16[512,256], index: 3, kind: input, shape index: {}]
  %s4 = inlined_call_operand.vmem [shape: f32[1,256], index: 4, kind: input, shape index: {}]
  %s5 = inlined_call_operand.vmem [shape: f32[1,256], index: 5, kind: input, shape index: {}]
  %s6 = inlined_call_operand.vmem [shape: f32[1,256], index: 6, kind: input, shape index: {}]
  %s7 = inlined_call_operand.hbm [shape: f32[1024,256], index: 7, kind: output, shape index: {}]
  %s8 = sld [smem:[#allocation0]]
  $region77: #{tpu_custom_call.1} parent=0
    _
  %s10 = ssub.s32 1, %s8
  %s11 = scalar_select 0, %s10, %s8
  $region1: #{tpu_custom_call.1} parent=0
    #allocation2 [shape = 'u8[524288]{0}', space=vmem, size = 0x80000, scoped, tag = 'input window, operand 0']
    #allocation3 [shape = 's32[2]{0}', space=sflag, size = 0x8, scoped, tag = 'scoped memory for tpu_custom_call.1']
    #allocation4 [shape = 's32[2]{0}', space=sflag, size = 0x8, scoped, tag = 'scoped memory for tpu_custom_call.1']
    #allocation5 [shape = 'u8[262144]{0}', space=vmem, size = 0x40000, scoped, tag = 'input window, operand 1, single buffered']
    #allocation6 [shape = 's32[1]{0}', space=sflag, size = 0x4, scoped, tag = 'scoped memory for tpu_custom_call.1']
    #allocation7 [shape = 'u8[2048]{0}', space=vmem, size = 0x800, scoped, tag = 'input window, operand 2, single buffered']
    #allocation8 [shape = 'u8[262144]{0}', space=vmem, size = 0x40000, scoped, tag = 'input window, operand 3, single buffered']
    #allocation9 [shape = 's32[1]{0}', space=sflag, size = 0x4, scoped, tag = 'scoped memory for tpu_custom_call.1']
    #allocation10 [shape = 'u8[524288]{0}', space=vmem, size = 0x80000, scoped, tag = 'output window, operand 0']
    %12 = vsyncpa [#allocation3], 0
    %s13 = scalar_lea.sflag [#allocation3], 1
    %14 = vsyncpa %s13, 0
    %15 = vsyncpa [#allocation6], 0
    %16 = vsyncpa [#allocation9], 0
    %17 = vsyncpa [#allocation4], 0
    %s18 = scalar_lea.sflag [#allocation4], 1
    %19 = vsyncpa %s18, 0
    loop: start=0, step=1, limit=6
    $region2: #{tpu_custom_call.1} parent=1 // loop_pre_header
      _
    $region3: #{tpu_custom_call.1} parent=1 // loop_header
      %s21 = sphi 0, %s25
      %p22 = scmp.ge.s32.totalorder %s21, 6
      %s31 = sphi 0, %s33
      %s34 = sphi 0, %s31
      %s35 = sphi 0, %s34
      %s51 = sphi 0, %s35
      %s55 = sphi 0, %s55
      %s57 = sphi 0, %s55
      %s58 = sphi 0, %s57
      %s72 = sphi 0, %s58
      %s76 = sphi 0, %s76
      %s78 = sphi 0, %s76
      %s79 = sphi 0, %s78
      %s93 = sphi 0, %s79
      %s97 = sphi 0, %s97
      %s99 = sphi 0, %s97
      %s100 = sphi 0, %s99
      %s114 = sphi 0, %s100
      %s118 = sphi 0, %s118
      %s120 = sphi 0, %s118
      %s121 = sphi 0, %s120
      %s135 = sphi 0, %s121
      %s139 = sphi 0, %s139
      %s141 = sphi 0, %s139
      %s142 = sphi 0, %s141
      %s156 = sphi 0, %s142
      %s160 = sphi 0, %s160
      %s162 = sphi 0, %s160
      %s163 = sphi 0, %s162
      %s177 = sphi 0, %s163
      %s183 = sphi 0, %s185
      %s186 = sphi 0, %s183
      %s187 = sphi 0, %s186
      %s203 = sphi 0, %s187
    $region4: #{tpu_custom_call.1} parent=1 // loop_header_branch
      %24 = sbr.rel (%p22) target = $region8
    $region5: #{tpu_custom_call.1} parent=1 // loop_body
      %s26 = ssub.s32 %s21, 1
      %s27 = ssub.s32 %s21, 2
      %s28 = sadd.s32 %s21, 1
      %s29 = ssub.s32 %s21, %s28
      %p30 = scmp.eq.s32.totalorder %s29, 0
      %s32 = sadd.s32 %s31, 1
      %s33 = scalar_select %p30, %s31, %s32
      %p36 = pneg %p30
      %p37 = scmp.eq.s32.totalorder %s21, 3
      %p38 = por %p36, %p37
      %p39 = scmp.ne.s32.totalorder %s31, %s34
      %p40 = scmp.eq.s32.totalorder %s21, 0
      %p41 = por %p39, %p40
      %p42 = scmp.ne.s32.totalorder %s31, %s34
      %p43 = scmp.eq.s32.totalorder %s26, 3
      %p44 = por %p42, %p43
      %p45 = scmp.ne.s32.totalorder %s34, %s35
      %p46 = scmp.eq.s32.totalorder %s26, 0
      %p47 = por %p45, %p46
      %p48 = scmp.ne.s32.totalorder %s34, %s35
      %p49 = scmp.eq.s32.totalorder %s27, 3
      %p50 = por %p48, %p49
      %p52 = scmp.ne.s32.totalorder %s35, %s51
      %p53 = scmp.eq.s32.totalorder %s27, 0
      %p54 = por %p52, %p53
      %s56 = sadd.s32 %s55, 1
      %p59 = scmp.eq.s32.totalorder %s21, 3
      %p60 = scmp.ne.s32.totalorder %s55, %s57
      %p61 = scmp.eq.s32.totalorder %s21, 0
      %p62 = por %p60, %p61
      %p63 = scmp.ne.s32.totalorder %s55, %s57
      %p64 = scmp.eq.s32.totalorder %s26, 3
      %p65 = por %p63, %p64
      %p66 = scmp.ne.s32.totalorder %s57, %s58
      %p67 = scmp.eq.s32.totalorder %s26, 0
      %p68 = por %p66, %p67
      %p69 = scmp.ne.s32.totalorder %s57, %s58
      %p70 = scmp.eq.s32.totalorder %s27, 3
      %p71 = por %p69, %p70
      %p73 = scmp.ne.s32.totalorder %s58, %s72
      %p74 = scmp.eq.s32.totalorder %s27, 0
      %p75 = por %p73, %p74
      %s77 = sadd.s32 %s76, 1
      %p80 = scmp.eq.s32.totalorder %s21, 3
      %p81 = scmp.ne.s32.totalorder %s76, %s78
      %p82 = scmp.eq.s32.totalorder %s21, 0
      %p83 = por %p81, %p82
      %p84 = scmp.ne.s32.totalorder %s76, %s78
      %p85 = scmp.eq.s32.totalorder %s26, 3
      %p86 = por %p84, %p85
      %p87 = scmp.ne.s32.totalorder %s78, %s79
      %p88 = scmp.eq.s32.totalorder %s26, 0
      %p89 = por %p87, %p88
      %p90 = scmp.ne.s32.totalorder %s78, %s79
      %p91 = scmp.eq.s32.totalorder %s27, 3
      %p92 = por %p90, %p91
      %p94 = scmp.ne.s32.totalorder %s79, %s93
      %p95 = scmp.eq.s32.totalorder %s27, 0
      %p96 = por %p94, %p95
      %s98 = sadd.s32 %s97, 1
      %p101 = scmp.eq.s32.totalorder %s21, 3
      %p102 = scmp.ne.s32.totalorder %s97, %s99
      %p103 = scmp.eq.s32.totalorder %s21, 0
      %p104 = por %p102, %p103
      %p105 = scmp.ne.s32.totalorder %s97, %s99
      %p106 = scmp.eq.s32.totalorder %s26, 3
      %p107 = por %p105, %p106
      %p108 = scmp.ne.s32.totalorder %s99, %s100
      %p109 = scmp.eq.s32.totalorder %s26, 0
      %p110 = por %p108, %p109
      %p111 = scmp.ne.s32.totalorder %s99, %s100
      %p112 = scmp.eq.s32.totalorder %s27, 3
      %p113 = por %p111, %p112
      %p115 = scmp.ne.s32.totalorder %s100, %s114
      %p116 = scmp.eq.s32.totalorder %s27, 0
      %p117 = por %p115, %p116
      %s119 = sadd.s32 %s118, 1
      %p122 = scmp.eq.s32.totalorder %s21, 3
      %p123 = scmp.ne.s32.totalorder %s118, %s120
      %p124 = scmp.eq.s32.totalorder %s21, 0
      %p125 = por %p123, %p124
      %p126 = scmp.ne.s32.totalorder %s118, %s120
      %p127 = scmp.eq.s32.totalorder %s26, 3
      %p128 = por %p126, %p127
      %p129 = scmp.ne.s32.totalorder %s120, %s121
      %p130 = scmp.eq.s32.totalorder %s26, 0
      %p131 = por %p129, %p130
      %p132 = scmp.ne.s32.totalorder %s120, %s121
      %p133 = scmp.eq.s32.totalorder %s27, 3
      %p134 = por %p132, %p133
      %p136 = scmp.ne.s32.totalorder %s121, %s135
      %p137 = scmp.eq.s32.totalorder %s27, 0
      %p138 = por %p136, %p137
      %s140 = sadd.s32 %s139, 1
      %p143 = scmp.eq.s32.totalorder %s21, 3
      %p144 = scmp.ne.s32.totalorder %s139, %s141
      %p145 = scmp.eq.s32.totalorder %s21, 0
      %p146 = por %p144, %p145
      %p147 = scmp.ne.s32.totalorder %s139, %s141
      %p148 = scmp.eq.s32.totalorder %s26, 3
      %p149 = por %p147, %p148
      %p150 = scmp.ne.s32.totalorder %s141, %s142
      %p151 = scmp.eq.s32.totalorder %s26, 0
      %p152 = por %p150, %p151
      %p153 = scmp.ne.s32.totalorder %s141, %s142
      %p154 = scmp.eq.s32.totalorder %s27, 3
      %p155 = por %p153, %p154
      %p157 = scmp.ne.s32.totalorder %s142, %s156
      %p158 = scmp.eq.s32.totalorder %s27, 0
      %p159 = por %p157, %p158
      %s161 = sadd.s32 %s160, 1
      %p164 = scmp.eq.s32.totalorder %s21, 3
      %p165 = scmp.ne.s32.totalorder %s160, %s162
      %p166 = scmp.eq.s32.totalorder %s21, 0
      %p167 = por %p165, %p166
      %p168 = scmp.ne.s32.totalorder %s160, %s162
      %p169 = scmp.eq.s32.totalorder %s26, 3
      %p170 = por %p168, %p169
      %p171 = scmp.ne.s32.totalorder %s162, %s163
      %p172 = scmp.eq.s32.totalorder %s26, 0
      %p173 = por %p171, %p172
      %p174 = scmp.ne.s32.totalorder %s162, %s163
      %p175 = scmp.eq.s32.totalorder %s27, 3
      %p176 = por %p174, %p175
      %p178 = scmp.ne.s32.totalorder %s163, %s177
      %p179 = scmp.eq.s32.totalorder %s27, 0
      %p180 = por %p178, %p179
      %s181 = ssub.s32 %s21, %s28
      %p182 = scmp.eq.s32.totalorder %s181, 0
      %s184 = sadd.s32 %s183, 1
      %s185 = scalar_select %p182, %s183, %s184
      %p188 = pneg %p182
      %p189 = scmp.eq.s32.totalorder %s21, 3
      %p190 = por %p188, %p189
      %p191 = scmp.ne.s32.totalorder %s183, %s186
      %p192 = scmp.eq.s32.totalorder %s21, 0
      %p193 = por %p191, %p192
      %p194 = scmp.ne.s32.totalorder %s183, %s186
      %p195 = scmp.eq.s32.totalorder %s26, 3
      %p196 = por %p194, %p195
      %p197 = scmp.ne.s32.totalorder %s186, %s187
      %p198 = scmp.eq.s32.totalorder %s26, 0
      %p199 = por %p197, %p198
      %p200 = scmp.ne.s32.totalorder %s186, %s187
      %p201 = scmp.eq.s32.totalorder %s27, 3
      %p202 = por %p200, %p201
      %p204 = scmp.ne.s32.totalorder %s187, %s203
      %p205 = scmp.eq.s32.totalorder %s27, 0
      %p206 = por %p204, %p205
      %p207 = scmp.le.s32.totalorder 1, %s21
      %p208 = scmp.lt.s32.totalorder %s21, 5
      %p209 = pnand %p207, %p208
      %p210 = pneg %p209
      // Predicated region
      $region9: #{tpu_custom_call.1} parent=5 // pred_check
        _
      $region10: #{tpu_custom_call.1} parent=5 // pred_check_branch
        %212 = sbr.rel (%p209) target = $region12
      $region11: #{tpu_custom_call.1} parent=5 // pred_region
        %s213 = ssub.s32 %s21, 1
        // Predicated region
        $region13: #{tpu_custom_call.1} parent=11 // pred_check
          %p214 = pneg %p68
        $region14: #{tpu_custom_call.1} parent=11 // pred_check_branch
          %216 = sbr.rel (%p214) target = $region16
        $region15: #{tpu_custom_call.1} parent=11 // pred_region
          %s218 = ssub.s32 8192, 8192
          %219 = vsyncadd [#allocation6], %s218
          %s220 = sshll.u32 [#allocation5], 4
          %s221 = int_to_ptr.vmem [resolvable:$true] %s220
          %226 = dma.hbm_to_vmem [thread:$0]  %s1, 8192, %s221, [#allocation6], 256, 256, 16
        $region16: #{tpu_custom_call.1} parent=11 // pred_fallthru
          _
        // Predicated region
        $region17: #{tpu_custom_call.1} parent=11 // pred_check
          %p227 = pneg %p89
        $region18: #{tpu_custom_call.1} parent=11 // pred_check_branch
          %229 = sbr.rel (%p227) target = $region20
        $region19: #{tpu_custom_call.1} parent=11 // pred_region
          %s231 = ssub.s32 64, 64
          %232 = vsyncadd [#allocation6], %s231
          %s234 = sshll.u32 [#allocation7], 4
          %s235 = int_to_ptr.vmem [resolvable:$true] %s234
          %237 = dma.hbm_to_vmem [thread:$0]  %s2, 64, %s235, [#allocation6]
        $region20: #{tpu_custom_call.1} parent=11 // pred_fallthru
          _
        // Predicated region
        $region21: #{tpu_custom_call.1} parent=11 // pred_check
          %p238 = pneg %p110
        $region22: #{tpu_custom_call.1} parent=11 // pred_check_branch
          %240 = sbr.rel (%p238) target = $region24
        $region23: #{tpu_custom_call.1} parent=11 // pred_region
          %s242 = ssub.s32 8192, 8192
          %243 = vsyncadd [#allocation9], %s242
          %s244 = sshll.u32 [#allocation8], 4
          %s245 = int_to_ptr.vmem [resolvable:$true] %s244
          %250 = dma.hbm_to_vmem [thread:$0]  %s3, 8192, %s245, [#allocation9], 128, 128, 8
        $region24: #{tpu_custom_call.1} parent=11 // pred_fallthru
          _
        // Predicated region
        $region25: #{tpu_custom_call.1} parent=11 // pred_check
          %p251 = pneg %p131
        $region26: #{tpu_custom_call.1} parent=11 // pred_check_branch
          %253 = sbr.rel (%p251) target = $region28
        $region27: #{tpu_custom_call.1} parent=11 // pred_region
          _
        $region28: #{tpu_custom_call.1} parent=11 // pred_fallthru
          _
        // Predicated region
        $region29: #{tpu_custom_call.1} parent=11 // pred_check
          %p254 = pneg %p152
        $region30: #{tpu_custom_call.1} parent=11 // pred_check_branch
          %256 = sbr.rel (%p254) target = $region32
        $region31: #{tpu_custom_call.1} parent=11 // pred_region
          _
        $region32: #{tpu_custom_call.1} parent=11 // pred_fallthru
          _
        // Predicated region
        $region33: #{tpu_custom_call.1} parent=11 // pred_check
          %p257 = pneg %p173
        $region34: #{tpu_custom_call.1} parent=11 // pred_check_branch
          %259 = sbr.rel (%p257) target = $region36
        $region35: #{tpu_custom_call.1} parent=11 // pred_region
          _
        $region36: #{tpu_custom_call.1} parent=11 // pred_fallthru
          _
      $region12: #{tpu_custom_call.1} parent=5 // pred_fallthru
        _
      %p260 = scmp.lt.s32.totalorder %s21, 4
      // Predicated region
      $region37: #{tpu_custom_call.1} parent=5 // pred_check
        %p261 = pneg %p260
      $region38: #{tpu_custom_call.1} parent=5 // pred_check_branch
        %263 = sbr.rel (%p261) target = $region40
      $region39: #{tpu_custom_call.1} parent=5 // pred_region
        // Predicated region
        $region41: #{tpu_custom_call.1} parent=39 // pred_check
          %p264 = pneg %p41
        $region42: #{tpu_custom_call.1} parent=39 // pred_check_branch
          %266 = sbr.rel (%p264) target = $region44
        $region43: #{tpu_custom_call.1} parent=39 // pred_region
          %s267 = sand.u32 %s31, 1
          %s268 = scalar_lea.sflag [#allocation3], %s267
          %s269 = sand.u32 %s31, 1
          %s270 = smul.addr %s269, 512
          %s271 = scalar_lea.vmem [#allocation2], %s270
          %s272 = smul.u32 32, %s21
          %s274 = ssub.s32 8192, 8192
          %275 = vsyncadd %s268, %s274
          %s276 = smul.addr %s272, 2
          %s277 = smul.addr %s276, 128
          %s278 = scalar_lea.hbm %s0, %s277
          %s279 = sshll.u32 %s271, 4
          %s280 = int_to_ptr.vmem [resolvable:$true] %s279
          %285 = dma.hbm_to_vmem [thread:$0]  %s278, 8192, %s280, %s268, 256, 256, 16
        $region44: #{tpu_custom_call.1} parent=39 // pred_fallthru
          _
      $region40: #{tpu_custom_call.1} parent=5 // pred_fallthru
        _
      %p286 = scmp.le.s32.totalorder 1, %s21
      %p287 = scmp.lt.s32.totalorder %s21, 5
      %p288 = pnand %p286, %p287
      %p289 = pneg %p288
      // Predicated region
      $region45: #{tpu_custom_call.1} parent=5 // pred_check
        _
      $region46: #{tpu_custom_call.1} parent=5 // pred_check_branch
        %291 = sbr.rel (%p288) target = $region48
      $region47: #{tpu_custom_call.1} parent=5 // pred_region
        %s292 = ssub.s32 %s21, 1
        %s293 = sand.u32 %s34, 1
        %s294 = scalar_lea.sflag [#allocation3], %s293
        %s295 = sand.u32 %s34, 1
        %s296 = smul.addr %s295, 512
        %s297 = scalar_lea.vmem [#allocation2], %s296
        // Predicated region
        $region49: #{tpu_custom_call.1} parent=47 // pred_check
          %p298 = pneg %p47
        $region50: #{tpu_custom_call.1} parent=47 // pred_check_branch
          %300 = sbr.rel (%p298) target = $region52
        $region51: #{tpu_custom_call.1} parent=47 // pred_region
          %301 = dma.done %s294, 8192
        $region52: #{tpu_custom_call.1} parent=47 // pred_fallthru
          _
        // Predicated region
        $region53: #{tpu_custom_call.1} parent=47 // pred_check
          %p302 = pneg %p68
        $region54: #{tpu_custom_call.1} parent=47 // pred_check_branch
          %304 = sbr.rel (%p302) target = $region56
        $region55: #{tpu_custom_call.1} parent=47 // pred_region
          %305 = dma.done [#allocation6], 8192
        $region56: #{tpu_custom_call.1} parent=47 // pred_fallthru
          _
        // Predicated region
        $region57: #{tpu_custom_call.1} parent=47 // pred_check
          %p306 = pneg %p89
        $region58: #{tpu_custom_call.1} parent=47 // pred_check_branch
          %308 = sbr.rel (%p306) target = $region60
        $region59: #{tpu_custom_call.1} parent=47 // pred_region
          %309 = dma.done [#allocation6], 64
        $region60: #{tpu_custom_call.1} parent=47 // pred_fallthru
          _
        // Predicated region
        $region61: #{tpu_custom_call.1} parent=47 // pred_check
          %p310 = pneg %p110
        $region62: #{tpu_custom_call.1} parent=47 // pred_check_branch
          %312 = sbr.rel (%p310) target = $region64
        $region63: #{tpu_custom_call.1} parent=47 // pred_region
          %313 = dma.done [#allocation9], 8192
        $region64: #{tpu_custom_call.1} parent=47 // pred_fallthru
          _
        %s314 = sand.u32 %s34, 1
        %s315 = scalar_lea.sflag [#allocation3], %s314
        %s316 = sand.u32 %s34, 1
        %s317 = smul.addr %s316, 512
        %s318 = scalar_lea.vmem [#allocation2], %s317
        %p319 = pneg %p47
        %p320 = pneg %p44
        %p321 = pneg %p68
        %p322 = pneg %p65
        %p323 = pneg %p89
        %p324 = pneg %p86
        %p325 = pneg %p110
        %p326 = pneg %p107
        %p327 = pneg %p131
        %p328 = pneg %p128
        %p329 = pneg %p152
        %p330 = pneg %p149
        %p331 = pneg %p173
        %p332 = pneg %p170
        %p333 = pneg %p199
        %p334 = pneg %p196
        %s335 = sand.u32 %s186, 1
        %s336 = scalar_lea.sflag [#allocation4], %s335
        %s337 = sand.u32 %s186, 1
        %s338 = smul.addr %s337, 512
        %s339 = scalar_lea.vmem [#allocation10], %s338
        %s340 = smul.u32 32, %s26
        %s341 = smul.u32 32, %s26
        %v342 = vld [vmem:[%s297] sm:$0xff]
        %v343 = vld [vmem:[%s297 + $0x8] sm:$0xff]
        %v344 = vld [vmem:[%s297 + $0x10] sm:$0xff]
        %v345 = vld [vmem:[%s297 + $0x18] sm:$0xff]
        %v346 = vld [vmem:[%s297 + $0x20] sm:$0xff]
        %v347 = vld [vmem:[%s297 + $0x28] sm:$0xff]
        %v348 = vld [vmem:[%s297 + $0x30] sm:$0xff]
        %v349 = vld [vmem:[%s297 + $0x38] sm:$0xff]
        %v350 = vld [vmem:[%s297 + $0x40] sm:$0xff]
        %v351 = vld [vmem:[%s297 + $0x48] sm:$0xff]
        %v352 = vld [vmem:[%s297 + $0x50] sm:$0xff]
        %v353 = vld [vmem:[%s297 + $0x58] sm:$0xff]
        %v354 = vld [vmem:[%s297 + $0x60] sm:$0xff]
        %v355 = vld [vmem:[%s297 + $0x68] sm:$0xff]
        %v356 = vld [vmem:[%s297 + $0x70] sm:$0xff]
        %v357 = vld [vmem:[%s297 + $0x78] sm:$0xff]
        %v358 = vld [vmem:[%s297 + $0x80] sm:$0xff]
        %v359 = vld [vmem:[%s297 + $0x88] sm:$0xff]
        %v360 = vld [vmem:[%s297 + $0x90] sm:$0xff]
        %v361 = vld [vmem:[%s297 + $0x98] sm:$0xff]
        %v362 = vld [vmem:[%s297 + $0xa0] sm:$0xff]
        %v363 = vld [vmem:[%s297 + $0xa8] sm:$0xff]
        %v364 = vld [vmem:[%s297 + $0xb0] sm:$0xff]
        %v365 = vld [vmem:[%s297 + $0xb8] sm:$0xff]
        %v366 = vld [vmem:[%s297 + $0xc0] sm:$0xff]
        %v367 = vld [vmem:[%s297 + $0xc8] sm:$0xff]
        %v368 = vld [vmem:[%s297 + $0xd0] sm:$0xff]
        %v369 = vld [vmem:[%s297 + $0xd8] sm:$0xff]
        %v370 = vld [vmem:[%s297 + $0xe0] sm:$0xff]
        %v371 = vld [vmem:[%s297 + $0xe8] sm:$0xff]
        %v372 = vld [vmem:[%s297 + $0xf0] sm:$0xff]
        %v373 = vld [vmem:[%s297 + $0xf8] sm:$0xff]
        %v374 = vld [vmem:[%s297 + $0x100] sm:$0xff]
        %v375 = vld [vmem:[%s297 + $0x108] sm:$0xff]
        %v376 = vld [vmem:[%s297 + $0x110] sm:$0xff]
        %v377 = vld [vmem:[%s297 + $0x118] sm:$0xff]
        %v378 = vld [vmem:[%s297 + $0x120] sm:$0xff]
        %v379 = vld [vmem:[%s297 + $0x128] sm:$0xff]
        %v380 = vld [vmem:[%s297 + $0x130] sm:$0xff]
        %v381 = vld [vmem:[%s297 + $0x138] sm:$0xff]
        %v382 = vld [vmem:[%s297 + $0x140] sm:$0xff]
        %v383 = vld [vmem:[%s297 + $0x148] sm:$0xff]
        %v384 = vld [vmem:[%s297 + $0x150] sm:$0xff]
        %v385 = vld [vmem:[%s297 + $0x158] sm:$0xff]
        %v386 = vld [vmem:[%s297 + $0x160] sm:$0xff]
        %v387 = vld [vmem:[%s297 + $0x168] sm:$0xff]
        %v388 = vld [vmem:[%s297 + $0x170] sm:$0xff]
        %v389 = vld [vmem:[%s297 + $0x178] sm:$0xff]
        %v390 = vld [vmem:[%s297 + $0x180] sm:$0xff]
        %v391 = vld [vmem:[%s297 + $0x188] sm:$0xff]
        %v392 = vld [vmem:[%s297 + $0x190] sm:$0xff]
        %v393 = vld [vmem:[%s297 + $0x198] sm:$0xff]
        %v394 = vld [vmem:[%s297 + $0x1a0] sm:$0xff]
        %v395 = vld [vmem:[%s297 + $0x1a8] sm:$0xff]
        %v396 = vld [vmem:[%s297 + $0x1b0] sm:$0xff]
        %v397 = vld [vmem:[%s297 + $0x1b8] sm:$0xff]
        %v398 = vld [vmem:[%s297 + $0x1c0] sm:$0xff]
        %v399 = vld [vmem:[%s297 + $0x1c8] sm:$0xff]
        %v400 = vld [vmem:[%s297 + $0x1d0] sm:$0xff]
        %v401 = vld [vmem:[%s297 + $0x1d8] sm:$0xff]
        %v402 = vld [vmem:[%s297 + $0x1e0] sm:$0xff]
        %v403 = vld [vmem:[%s297 + $0x1e8] sm:$0xff]
        %v404 = vld [vmem:[%s297 + $0x1f0] sm:$0xff]
        %v405 = vld [vmem:[%s297 + $0x1f8] sm:$0xff]
        %v406 = vpack.c.bf16 %v344, %v342
        %v407 = vpack.c.bf16 %v345, %v343
        %v408 = vpack.c.bf16 %v348, %v346
        %v409 = vpack.c.bf16 %v349, %v347
        %v410 = vpack.c.bf16 %v352, %v350
        %v411 = vpack.c.bf16 %v353, %v351
        %v412 = vpack.c.bf16 %v356, %v354
        %v413 = vpack.c.bf16 %v357, %v355
        %v414 = vpack.c.bf16 %v360, %v358
        %v415 = vpack.c.bf16 %v361, %v359
        %v416 = vpack.c.bf16 %v364, %v362
        %v417 = vpack.c.bf16 %v365, %v363
        %v418 = vpack.c.bf16 %v368, %v366
        %v419 = vpack.c.bf16 %v369, %v367
        %v420 = vpack.c.bf16 %v372, %v370
        %v421 = vpack.c.bf16 %v373, %v371
        %v422 = vpack.c.bf16 %v376, %v374
        %v423 = vpack.c.bf16 %v377, %v375
        %v424 = vpack.c.bf16 %v380, %v378
        %v425 = vpack.c.bf16 %v381, %v379
        %v426 = vpack.c.bf16 %v384, %v382
        %v427 = vpack.c.bf16 %v385, %v383
        %v428 = vpack.c.bf16 %v388, %v386
        %v429 = vpack.c.bf16 %v389, %v387
        %v430 = vpack.c.bf16 %v392, %v390
        %v431 = vpack.c.bf16 %v393, %v391
        %v432 = vpack.c.bf16 %v396, %v394
        %v433 = vpack.c.bf16 %v397, %v395
        %v434 = vpack.c.bf16 %v400, %v398
        %v435 = vpack.c.bf16 %v401, %v399
        %v436 = vpack.c.bf16 %v404, %v402
        %v437 = vpack.c.bf16 %v405, %v403
        %v438 = vld [vmem:[#allocation5] sm:$0xff]
        %v439 = vld [vmem:[#allocation5 + $0x8] sm:$0xff]
        %v440 = vld [vmem:[#allocation5 + $0x10] sm:$0xff]
        %v441 = vld [vmem:[#allocation5 + $0x18] sm:$0xff]
        %v442 = vld [vmem:[#allocation5 + $0x20] sm:$0xff]
        %v443 = vld [vmem:[#allocation5 + $0x28] sm:$0xff]
        %v444 = vld [vmem:[#allocation5 + $0x30] sm:$0xff]
        %v445 = vld [vmem:[#allocation5 + $0x38] sm:$0xff]
        %v446 = vld [vmem:[#allocation5 + $0x40] sm:$0xff]
        %v447 = vld [vmem:[#allocation5 + $0x48] sm:$0xff]
        %v448 = vld [vmem:[#allocation5 + $0x50] sm:$0xff]
        %v449 = vld [vmem:[#allocation5 + $0x58] sm:$0xff]
        %v450 = vld [vmem:[#allocation5 + $0x60] sm:$0xff]
        %v451 = vld [vmem:[#allocation5 + $0x68] sm:$0xff]
        %v452 = vld [vmem:[#allocation5 + $0x70] sm:$0xff]
        %v453 = vld [vmem:[#allocation5 + $0x78] sm:$0xff]
        %v454 = vld [vmem:[#allocation5 + $0x80] sm:$0xff]
        %v455 = vld [vmem:[#allocation5 + $0x88] sm:$0xff]
        %v456 = vld [vmem:[#allocation5 + $0x90] sm:$0xff]
        %v457 = vld [vmem:[#allocation5 + $0x98] sm:$0xff]
        %v458 = vld [vmem:[#allocation5 + $0xa0] sm:$0xff]
        %v459 = vld [vmem:[#allocation5 + $0xa8] sm:$0xff]
        %v460 = vld [vmem:[#allocation5 + $0xb0] sm:$0xff]
        %v461 = vld [vmem:[#allocation5 + $0xb8] sm:$0xff]
        %v462 = vld [vmem:[#allocation5 + $0xc0] sm:$0xff]
        %v463 = vld [vmem:[#allocation5 + $0xc8] sm:$0xff]
        %v464 = vld [vmem:[#allocation5 + $0xd0] sm:$0xff]
        %v465 = vld [vmem:[#allocation5 + $0xd8] sm:$0xff]
        %v466 = vld [vmem:[#allocation5 + $0xe0] sm:$0xff]
        %v467 = vld [vmem:[#allocation5 + $0xe8] sm:$0xff]
        %v468 = vld [vmem:[#allocation5 + $0xf0] sm:$0xff]
        %v469 = vld [vmem:[#allocation5 + $0xf8] sm:$0xff]
        %v470 = vld [vmem:[#allocation5 + $0x100] sm:$0xff]
        %v471 = vld [vmem:[#allocation5 + $0x108] sm:$0xff]
        %v472 = vld [vmem:[#allocation5 + $0x110] sm:$0xff]
        %v473 = vld [vmem:[#allocation5 + $0x118] sm:$0xff]
        %v474 = vld [vmem:[#allocation5 + $0x120] sm:$0xff]
        %v475 = vld [vmem:[#allocation5 + $0x128] sm:$0xff]
        %v476 = vld [vmem:[#allocation5 + $0x130] sm:$0xff]
        %v477 = vld [vmem:[#allocation5 + $0x138] sm:$0xff]
        %v478 = vld [vmem:[#allocation5 + $0x140] sm:$0xff]
        %v479 = vld [vmem:[#allocation5 + $0x148] sm:$0xff]
        %v480 = vld [vmem:[#allocation5 + $0x150] sm:$0xff]
        %v481 = vld [vmem:[#allocation5 + $0x158] sm:$0xff]
        %v482 = vld [vmem:[#allocation5 + $0x160] sm:$0xff]
        %v483 = vld [vmem:[#allocation5 + $0x168] sm:$0xff]
        %v484 = vld [vmem:[#allocation5 + $0x170] sm:$0xff]
        %v485 = vld [vmem:[#allocation5 + $0x178] sm:$0xff]
        %v486 = vld [vmem:[#allocation5 + $0x180] sm:$0xff]
        %v487 = vld [vmem:[#allocation5 + $0x188] sm:$0xff]
        %v488 = vld [vmem:[#allocation5 + $0x190] sm:$0xff]
        %v489 = vld [vmem:[#allocation5 + $0x198] sm:$0xff]
        %v490 = vld [vmem:[#allocation5 + $0x1a0] sm:$0xff]
        %v491 = vld [vmem:[#allocation5 + $0x1a8] sm:$0xff]
        %v492 = vld [vmem:[#allocation5 + $0x1b0] sm:$0xff]
        %v493 = vld [vmem:[#allocation5 + $0x1b8] sm:$0xff]
        %v494 = vld [vmem:[#allocation5 + $0x1c0] sm:$0xff]
        %v495 = vld [vmem:[#allocation5 + $0x1c8] sm:$0xff]
        %v496 = vld [vmem:[#allocation5 + $0x1d0] sm:$0xff]
        %v497 = vld [vmem:[#allocation5 + $0x1d8] sm:$0xff]
        %v498 = vld [vmem:[#allocation5 + $0x1e0] sm:$0xff]
        %v499 = vld [vmem:[#allocation5 + $0x1e8] sm:$0xff]
        %v500 = vld [vmem:[#allocation5 + $0x1f0] sm:$0xff]
        %v501 = vld [vmem:[#allocation5 + $0x1f8] sm:$0xff]
        %v502 = vld [vmem:[#allocation7] sm:$0xf]
        %v504 = vlaneseq
        %v505 = vshrl.u32 %v504, 7
        %v506 = vsub.s32 0, %v505
        %v507 = vrot.slane %v502, %v506
        %v508 = vlaneseq
        %v509 = vshrl.u32 %v508, 7
        %v510 = vsub.s32 1, %v509
        %v511 = vrot.slane %v502, %v510
        %v512 = vlaneseq
        %v513 = vshrl.u32 %v512, 7
        %v514 = vsub.s32 2, %v513
        %v515 = vrot.slane %v502, %v514
        %v516 = vlaneseq
        %v517 = vshrl.u32 %v516, 7
        %v518 = vsub.s32 3, %v517
        %v519 = vrot.slane %v502, %v518
        %v588 = vunpack.c.l.b16 %v438
        %v589 = vunpack.c.h.b16 %v438
        %v590 = vunpack.c.l.b16 %v439
        %v591 = vunpack.c.h.b16 %v439
        %v592 = vunpack.c.l.b16 %v440
        %v593 = vunpack.c.h.b16 %v440
        %v594 = vunpack.c.l.b16 %v441
        %v595 = vunpack.c.h.b16 %v441
        %v596 = vunpack.c.l.b16 %v442
        %v597 = vunpack.c.h.b16 %v442
        %v598 = vunpack.c.l.b16 %v443
        %v599 = vunpack.c.h.b16 %v443
        %v600 = vunpack.c.l.b16 %v444
        %v601 = vunpack.c.h.b16 %v444
        %v602 = vunpack.c.l.b16 %v445
        %v603 = vunpack.c.h.b16 %v445
        %v604 = vunpack.c.l.b16 %v446
        %v605 = vunpack.c.h.b16 %v446
        %v606 = vunpack.c.l.b16 %v447
        %v607 = vunpack.c.h.b16 %v447
        %v608 = vunpack.c.l.b16 %v448
        %v609 = vunpack.c.h.b16 %v448
        %v610 = vunpack.c.l.b16 %v449
        %v611 = vunpack.c.h.b16 %v449
        %v612 = vunpack.c.l.b16 %v450
        %v613 = vunpack.c.h.b16 %v450
        %v614 = vunpack.c.l.b16 %v451
        %v615 = vunpack.c.h.b16 %v451
        %v616 = vunpack.c.l.b16 %v452
        %v617 = vunpack.c.h.b16 %v452
        %v618 = vunpack.c.l.b16 %v453
        %v619 = vunpack.c.h.b16 %v453
        %v620 = vunpack.c.l.b16 %v454
        %v621 = vunpack.c.h.b16 %v454
        %v622 = vunpack.c.l.b16 %v455
        %v623 = vunpack.c.h.b16 %v455
        %v624 = vunpack.c.l.b16 %v456
        %v625 = vunpack.c.h.b16 %v456
        %v626 = vunpack.c.l.b16 %v457
        %v627 = vunpack.c.h.b16 %v457
        %v628 = vunpack.c.l.b16 %v458
        %v629 = vunpack.c.h.b16 %v458
        %v630 = vunpack.c.l.b16 %v459
        %v631 = vunpack.c.h.b16 %v459
        %v632 = vunpack.c.l.b16 %v460
        %v633 = vunpack.c.h.b16 %v460
        %v634 = vunpack.c.l.b16 %v461
        %v635 = vunpack.c.h.b16 %v461
        %v636 = vunpack.c.l.b16 %v462
        %v637 = vunpack.c.h.b16 %v462
        %v638 = vunpack.c.l.b16 %v463
        %v639 = vunpack.c.h.b16 %v463
        %v640 = vunpack.c.l.b16 %v464
        %v641 = vunpack.c.h.b16 %v464
        %v642 = vunpack.c.l.b16 %v465
        %v643 = vunpack.c.h.b16 %v465
        %v644 = vunpack.c.l.b16 %v466
        %v645 = vunpack.c.h.b16 %v466
        %v646 = vunpack.c.l.b16 %v467
        %v647 = vunpack.c.h.b16 %v467
        %v648 = vunpack.c.l.b16 %v468
        %v649 = vunpack.c.h.b16 %v468
        %v650 = vunpack.c.l.b16 %v469
        %v651 = vunpack.c.h.b16 %v469
        %v652 = vunpack.c.l.b16 %v470
        %v653 = vunpack.c.h.b16 %v470
        %v654 = vunpack.c.l.b16 %v471
        %v655 = vunpack.c.h.b16 %v471
        %v656 = vunpack.c.l.b16 %v472
        %v657 = vunpack.c.h.b16 %v472
        %v658 = vunpack.c.l.b16 %v473
        %v659 = vunpack.c.h.b16 %v473
        %v660 = vunpack.c.l.b16 %v474
        %v661 = vunpack.c.h.b16 %v474
        %v662 = vunpack.c.l.b16 %v475
        %v663 = vunpack.c.h.b16 %v475
        %v664 = vunpack.c.l.b16 %v476
        %v665 = vunpack.c.h.b16 %v476
        %v666 = vunpack.c.l.b16 %v477
        %v667 = vunpack.c.h.b16 %v477
        %v668 = vunpack.c.l.b16 %v478
        %v669 = vunpack.c.h.b16 %v478
        %v670 = vunpack.c.l.b16 %v479
        %v671 = vunpack.c.h.b16 %v479
        %v672 = vunpack.c.l.b16 %v480
        %v673 = vunpack.c.h.b16 %v480
        %v674 = vunpack.c.l.b16 %v481
        %v675 = vunpack.c.h.b16 %v481
        %v676 = vunpack.c.l.b16 %v482
        %v677 = vunpack.c.h.b16 %v482
        %v678 = vunpack.c.l.b16 %v483
        %v679 = vunpack.c.h.b16 %v483
        %v680 = vunpack.c.l.b16 %v484
        %v681 = vunpack.c.h.b16 %v484
        %v682 = vunpack.c.l.b16 %v485
        %v683 = vunpack.c.h.b16 %v485
        %v684 = vunpack.c.l.b16 %v486
        %v685 = vunpack.c.h.b16 %v486
        %v686 = vunpack.c.l.b16 %v487
        %v687 = vunpack.c.h.b16 %v487
        %v688 = vunpack.c.l.b16 %v488
        %v689 = vunpack.c.h.b16 %v488
        %v690 = vunpack.c.l.b16 %v489
        %v691 = vunpack.c.h.b16 %v489
        %v692 = vunpack.c.l.b16 %v490
        %v693 = vunpack.c.h.b16 %v490
        %v694 = vunpack.c.l.b16 %v491
        %v695 = vunpack.c.h.b16 %v491
        %v696 = vunpack.c.l.b16 %v492
        %v697 = vunpack.c.h.b16 %v492
        %v698 = vunpack.c.l.b16 %v493
        %v699 = vunpack.c.h.b16 %v493
        %v700 = vunpack.c.l.b16 %v494
        %v701 = vunpack.c.h.b16 %v494
        %v702 = vunpack.c.l.b16 %v495
        %v703 = vunpack.c.h.b16 %v495
        %v704 = vunpack.c.l.b16 %v496
        %v705 = vunpack.c.h.b16 %v496
        %v706 = vunpack.c.l.b16 %v497
        %v707 = vunpack.c.h.b16 %v497
        %v708 = vunpack.c.l.b16 %v498
        %v709 = vunpack.c.h.b16 %v498
        %v710 = vunpack.c.l.b16 %v499
        %v711 = vunpack.c.h.b16 %v499
        %v712 = vunpack.c.l.b16 %v500
        %v713 = vunpack.c.h.b16 %v500
        %v714 = vunpack.c.l.b16 %v501
        %v715 = vunpack.c.h.b16 %v501
        %v716 = vpack.c.b16 %v592, %v588
        %v717 = vpack.c.b16 %v593, %v589
        %v718 = vpack.c.b16 %v594, %v590
        %v719 = vpack.c.b16 %v595, %v591
        %v720 = vpack.c.b16 %v600, %v596
        %v721 = vpack.c.b16 %v601, %v597
        %v722 = vpack.c.b16 %v602, %v598
        %v723 = vpack.c.b16 %v603, %v599
        %v724 = vpack.c.b16 %v608, %v604
        %v725 = vpack.c.b16 %v609, %v605
        %v726 = vpack.c.b16 %v610, %v606
        %v727 = vpack.c.b16 %v611, %v607
        %v728 = vpack.c.b16 %v616, %v612
        %v729 = vpack.c.b16 %v617, %v613
        %v730 = vpack.c.b16 %v618, %v614
        %v731 = vpack.c.b16 %v619, %v615
        %v732 = vpack.c.b16 %v624, %v620
        %v733 = vpack.c.b16 %v625, %v621
        %v734 = vpack.c.b16 %v626, %v622
        %v735 = vpack.c.b16 %v627, %v623
        %v736 = vpack.c.b16 %v632, %v628
        %v737 = vpack.c.b16 %v633, %v629
        %v738 = vpack.c.b16 %v634, %v630
        %v739 = vpack.c.b16 %v635, %v631
        %v740 = vpack.c.b16 %v640, %v636
        %v741 = vpack.c.b16 %v641, %v637
        %v742 = vpack.c.b16 %v642, %v638
        %v743 = vpack.c.b16 %v643, %v639
        %v744 = vpack.c.b16 %v648, %v644
        %v745 = vpack.c.b16 %v649, %v645
        %v746 = vpack.c.b16 %v650, %v646
        %v747 = vpack.c.b16 %v651, %v647
        %v748 = vpack.c.b16 %v656, %v652
        %v749 = vpack.c.b16 %v657, %v653
        %v750 = vpack.c.b16 %v658, %v654
        %v751 = vpack.c.b16 %v659, %v655
        %v752 = vpack.c.b16 %v664, %v660
        %v753 = vpack.c.b16 %v665, %v661
        %v754 = vpack.c.b16 %v666, %v662
        %v755 = vpack.c.b16 %v667, %v663
        %v756 = vpack.c.b16 %v672, %v668
        %v757 = vpack.c.b16 %v673, %v669
        %v758 = vpack.c.b16 %v674, %v670
        %v759 = vpack.c.b16 %v675, %v671
        %v760 = vpack.c.b16 %v680, %v676
        %v761 = vpack.c.b16 %v681, %v677
        %v762 = vpack.c.b16 %v682, %v678
        %v763 = vpack.c.b16 %v683, %v679
        %v764 = vpack.c.b16 %v688, %v684
        %v765 = vpack.c.b16 %v689, %v685
        %v766 = vpack.c.b16 %v690, %v686
        %v767 = vpack.c.b16 %v691, %v687
        %v768 = vpack.c.b16 %v696, %v692
        %v769 = vpack.c.b16 %v697, %v693
        %v770 = vpack.c.b16 %v698, %v694
        %v771 = vpack.c.b16 %v699, %v695
        %v772 = vpack.c.b16 %v704, %v700
        %v773 = vpack.c.b16 %v705, %v701
        %v774 = vpack.c.b16 %v706, %v702
        %v775 = vpack.c.b16 %v707, %v703
        %v776 = vpack.c.b16 %v712, %v708
        %v777 = vpack.c.b16 %v713, %v709
        %v778 = vpack.c.b16 %v714, %v710
        %v779 = vpack.c.b16 %v715, %v711
        %844 = vmatprep.subr.bf16.mxu0 %v745
        %845 = vmatpush1.bf16.msra.mxu0 %v744
        %846 = vmatprep.subr.bf16.mxu0 %v741
        %847 = vmatpush1.bf16.msra.mxu0 %v740
        %848 = vmatprep.subr.bf16.mxu0 %v737
        %849 = vmatpush1.bf16.msra.mxu0 %v736
        %850 = vmatprep.subr.bf16.mxu0 %v733
        %851 = vmatpush1.bf16.msra.mxu0 %v732
        %852 = vmatprep.subr.bf16.mxu0 %v729
        %853 = vmatpush1.bf16.msra.mxu0 %v728
        %854 = vmatprep.subr.bf16.mxu0 %v725
        %855 = vmatpush1.bf16.msra.mxu0 %v724
        %856 = vmatprep.subr.bf16.mxu0 %v721
        %857 = vmatpush1.bf16.msra.mxu0 %v720
        %858 = vmatprep.subr.bf16.mxu0 %v717
        %859 = vmatpush1.bf16.msra.mxu0 %v716
        %860 = vmatprep.subr.bf16.mxu0 %v777
        %861 = vmatpush2.bf16.msra.mxu0 %v776
        %862 = vmatprep.subr.bf16.mxu0 %v773
        %863 = vmatpush2.bf16.msra.mxu0 %v772
        %864 = vmatprep.subr.bf16.mxu0 %v769
        %865 = vmatpush2.bf16.msra.mxu0 %v768
        %866 = vmatprep.subr.bf16.mxu0 %v765
        %867 = vmatpush2.bf16.msra.mxu0 %v764
        %868 = vmatprep.subr.bf16.mxu0 %v761
        %869 = vmatpush2.bf16.msra.mxu0 %v760
        %870 = vmatprep.subr.bf16.mxu0 %v757
        %871 = vmatpush2.bf16.msra.mxu0 %v756
        %872 = vmatprep.subr.bf16.mxu0 %v753
        %873 = vmatpush2.bf16.msra.mxu0 %v752
        %874 = vmatprep.subr.bf16.mxu0 %v749
        %875 = vmatpush2.bf16.msra.mxu0 %v748
        %876 = vmatprep.mubr.bf16.mxu0 %v407
        %877 = vmatmul.mubr.bf16.gmra.mxu0 %v406
        %v878 = vpop.f32.mrf.mxu0
        %v879 = vadd.f32 %v507, %v878
        %v880 = vpop.f32.mrf.mxu0
        %v881 = vadd.f32 %v511, %v880
        %v882 = vpop.f32.mrf.mxu0
        %v883 = vadd.f32 %v507, %v882
        %v884 = vpop.f32.mrf.mxu0
        %v885 = vadd.f32 %v511, %v884
        %886 = vmatprep.mubr.bf16.mxu0 %v409
        %887 = vmatmul.mubr.bf16.gmra.mxu0 %v408
        %v888 = vpop.f32.mrf.mxu0
        %v889 = vadd.f32 %v507, %v888
        %v890 = vpop.f32.mrf.mxu0
        %v891 = vadd.f32 %v511, %v890
        %v892 = vpop.f32.mrf.mxu0
        %v893 = vadd.f32 %v507, %v892
        %v894 = vpop.f32.mrf.mxu0
        %v895 = vadd.f32 %v511, %v894
        %896 = vmatprep.mubr.bf16.mxu0 %v411
        %897 = vmatmul.mubr.bf16.gmra.mxu0 %v410
        %v898 = vpop.f32.mrf.mxu0
        %v899 = vadd.f32 %v507, %v898
        %v900 = vpop.f32.mrf.mxu0
        %v901 = vadd.f32 %v511, %v900
        %v902 = vpop.f32.mrf.mxu0
        %v903 = vadd.f32 %v507, %v902
        %v904 = vpop.f32.mrf.mxu0
        %v905 = vadd.f32 %v511, %v904
        %906 = vmatprep.mubr.bf16.mxu0 %v413
        %907 = vmatmul.mubr.bf16.gmra.mxu0 %v412
        %v908 = vpop.f32.mrf.mxu0
        %v909 = vadd.f32 %v507, %v908
        %v910 = vpop.f32.mrf.mxu0
        %v911 = vadd.f32 %v511, %v910
        %v912 = vpop.f32.mrf.mxu0
        %v913 = vadd.f32 %v507, %v912
        %v914 = vpop.f32.mrf.mxu0
        %v915 = vadd.f32 %v511, %v914
        %916 = vmatprep.mubr.bf16.mxu0 %v415
        %917 = vmatmul.mubr.bf16.gmra.mxu0 %v414
        %v918 = vpop.f32.mrf.mxu0
        %v919 = vadd.f32 %v507, %v918
        %v920 = vpop.f32.mrf.mxu0
        %v921 = vadd.f32 %v511, %v920
        %v922 = vpop.f32.mrf.mxu0
        %v923 = vadd.f32 %v507, %v922
        %v924 = vpop.f32.mrf.mxu0
        %v925 = vadd.f32 %v511, %v924
        %926 = vmatprep.mubr.bf16.mxu0 %v417
        %927 = vmatmul.mubr.bf16.gmra.mxu0 %v416
        %v928 = vpop.f32.mrf.mxu0
        %v929 = vadd.f32 %v507, %v928
        %v930 = vpop.f32.mrf.mxu0
        %v931 = vadd.f32 %v511, %v930
        %v932 = vpop.f32.mrf.mxu0
        %v933 = vadd.f32 %v507, %v932
        %v934 = vpop.f32.mrf.mxu0
        %v935 = vadd.f32 %v511, %v934
        %936 = vmatprep.mubr.bf16.mxu0 %v419
        %937 = vmatmul.mubr.bf16.gmra.mxu0 %v418
        %v938 = vpop.f32.mrf.mxu0
        %v939 = vadd.f32 %v507, %v938
        %v940 = vpop.f32.mrf.mxu0
        %v941 = vadd.f32 %v511, %v940
        %v942 = vpop.f32.mrf.mxu0
        %v943 = vadd.f32 %v507, %v942
        %v944 = vpop.f32.mrf.mxu0
        %v945 = vadd.f32 %v511, %v944
        %946 = vmatprep.mubr.bf16.mxu0 %v421
        %947 = vmatmul.mubr.bf16.gmra.mxu0 %v420
        %v948 = vpop.f32.mrf.mxu0
        %v949 = vadd.f32 %v507, %v948
        %v950 = vpop.f32.mrf.mxu0
        %v951 = vadd.f32 %v511, %v950
        %v952 = vpop.f32.mrf.mxu0
        %v953 = vadd.f32 %v507, %v952
        %v954 = vpop.f32.mrf.mxu0
        %v955 = vadd.f32 %v511, %v954
        %956 = vmatprep.mubr.bf16.mxu0 %v423
        %957 = vmatmul.mubr.bf16.gmra.mxu0 %v422
        %v958 = vpop.f32.mrf.mxu0
        %v959 = vadd.f32 %v507, %v958
        %v960 = vpop.f32.mrf.mxu0
        %v961 = vadd.f32 %v511, %v960
        %v962 = vpop.f32.mrf.mxu0
        %v963 = vadd.f32 %v507, %v962
        %v964 = vpop.f32.mrf.mxu0
        %v965 = vadd.f32 %v511, %v964
        %966 = vmatprep.mubr.bf16.mxu0 %v425
        %967 = vmatmul.mubr.bf16.gmra.mxu0 %v424
        %v968 = vpop.f32.mrf.mxu0
        %v969 = vadd.f32 %v507, %v968
        %v970 = vpop.f32.mrf.mxu0
        %v971 = vadd.f32 %v511, %v970
        %v972 = vpop.f32.mrf.mxu0
        %v973 = vadd.f32 %v507, %v972
        %v974 = vpop.f32.mrf.mxu0
        %v975 = vadd.f32 %v511, %v974
        %976 = vmatprep.mubr.bf16.mxu0 %v427
        %977 = vmatmul.mubr.bf16.gmra.mxu0 %v426
        %v978 = vpop.f32.mrf.mxu0
        %v979 = vadd.f32 %v507, %v978
        %v980 = vpop.f32.mrf.mxu0
        %v981 = vadd.f32 %v511, %v980
        %v982 = vpop.f32.mrf.mxu0
        %v983 = vadd.f32 %v507, %v982
        %v984 = vpop.f32.mrf.mxu0
        %v985 = vadd.f32 %v511, %v984
        %986 = vmatprep.mubr.bf16.mxu0 %v429
        %987 = vmatmul.mubr.bf16.gmra.mxu0 %v428
        %v988 = vpop.f32.mrf.mxu0
        %v989 = vadd.f32 %v507, %v988
        %v990 = vpop.f32.mrf.mxu0
        %v991 = vadd.f32 %v511, %v990
        %v992 = vpop.f32.mrf.mxu0
        %v993 = vadd.f32 %v507, %v992
        %v994 = vpop.f32.mrf.mxu0
        %v995 = vadd.f32 %v511, %v994
        %996 = vmatprep.mubr.bf16.mxu0 %v431
        %997 = vmatmul.mubr.bf16.gmra.mxu0 %v430
        %v998 = vpop.f32.mrf.mxu0
        %v999 = vadd.f32 %v507, %v998
        %v1000 = vpop.f32.mrf.mxu0
        %v1001 = vadd.f32 %v511, %v1000
        %v1002 = vpop.f32.mrf.mxu0
        %v1003 = vadd.f32 %v507, %v1002
        %v1004 = vpop.f32.mrf.mxu0
        %v1005 = vadd.f32 %v511, %v1004
        %1006 = vmatprep.mubr.bf16.mxu0 %v433
        %1007 = vmatmul.mubr.bf16.gmra.mxu0 %v432
        %v1008 = vpop.f32.mrf.mxu0
        %v1009 = vadd.f32 %v507, %v1008
        %v1010 = vpop.f32.mrf.mxu0
        %v1011 = vadd.f32 %v511, %v1010
        %v1012 = vpop.f32.mrf.mxu0
        %v1013 = vadd.f32 %v507, %v1012
        %v1014 = vpop.f32.mrf.mxu0
        %v1015 = vadd.f32 %v511, %v1014
        %1016 = vmatprep.mubr.bf16.mxu0 %v435
        %1017 = vmatmul.mubr.bf16.gmra.mxu0 %v434
        %v1018 = vpop.f32.mrf.mxu0
        %v1019 = vadd.f32 %v507, %v1018
        %v1020 = vpop.f32.mrf.mxu0
        %v1021 = vadd.f32 %v511, %v1020
        %v1022 = vpop.f32.mrf.mxu0
        %v1023 = vadd.f32 %v507, %v1022
        %v1024 = vpop.f32.mrf.mxu0
        %v1025 = vadd.f32 %v511, %v1024
        %1026 = vmatprep.mubr.bf16.mxu0 %v437
        %1027 = vmatmul.mubr.bf16.gmra.mxu0 %v436
        %v1028 = vpop.f32.mrf.mxu0
        %v1029 = vadd.f32 %v507, %v1028
        %v1030 = vpop.f32.mrf.mxu0
        %v1031 = vadd.f32 %v511, %v1030
        %v1032 = vpop.f32.mrf.mxu0
        %v1033 = vadd.f32 %v507, %v1032
        %v1034 = vpop.f32.mrf.mxu0
        %v1035 = vadd.f32 %v511, %v1034
        %1036 = vdwg.mxu0
        %1037 = vmatprep.subr.bf16.mxu0 %v747
        %1038 = vmatpush1.bf16.msra.mxu0 %v746
        %1039 = vmatprep.subr.bf16.mxu0 %v743
        %1040 = vmatpush1.bf16.msra.mxu0 %v742
        %1041 = vmatprep.subr.bf16.mxu0 %v739
        %1042 = vmatpush1.bf16.msra.mxu0 %v738
        %1043 = vmatprep.subr.bf16.mxu0 %v735
        %1044 = vmatpush1.bf16.msra.mxu0 %v734
        %1045 = vmatprep.subr.bf16.mxu0 %v731
        %1046 = vmatpush1.bf16.msra.mxu0 %v730
        %1047 = vmatprep.subr.bf16.mxu0 %v727
        %1048 = vmatpush1.bf16.msra.mxu0 %v726
        %1049 = vmatprep.subr.bf16.mxu0 %v723
        %1050 = vmatpush1.bf16.msra.mxu0 %v722
        %1051 = vmatprep.subr.bf16.mxu0 %v719
        %1052 = vmatpush1.bf16.msra.mxu0 %v718
        %1053 = vmatprep.subr.bf16.mxu0 %v779
        %1054 = vmatpush2.bf16.msra.mxu0 %v778
        %1055 = vmatprep.subr.bf16.mxu0 %v775
        %1056 = vmatpush2.bf16.msra.mxu0 %v774
        %1057 = vmatprep.subr.bf16.mxu0 %v771
        %1058 = vmatpush2.bf16.msra.mxu0 %v770
        %1059 = vmatprep.subr.bf16.mxu0 %v767
        %1060 = vmatpush2.bf16.msra.mxu0 %v766
        %1061 = vmatprep.subr.bf16.mxu0 %v763
        %1062 = vmatpush2.bf16.msra.mxu0 %v762
        %1063 = vmatprep.subr.bf16.mxu0 %v759
        %1064 = vmatpush2.bf16.msra.mxu0 %v758
        %1065 = vmatprep.subr.bf16.mxu0 %v755
        %1066 = vmatpush2.bf16.msra.mxu0 %v754
        %1067 = vmatprep.subr.bf16.mxu0 %v751
        %1068 = vmatpush2.bf16.msra.mxu0 %v750
        %1069 = vmatprep.mubr.bf16.mxu0 %v407
        %1070 = vmatmul.mubr.bf16.gmra.mxu0 %v406
        %v1071 = vpop.f32.mrf.mxu0
        %v1072 = vadd.f32 %v515, %v1071
        %v1073 = vpop.f32.mrf.mxu0
        %v1074 = vadd.f32 %v519, %v1073
        %v1075 = vpop.f32.mrf.mxu0
        %v1076 = vadd.f32 %v515, %v1075
        %v1077 = vpop.f32.mrf.mxu0
        %v1078 = vadd.f32 %v519, %v1077
        %1079 = vmatprep.mubr.bf16.mxu0 %v409
        %1080 = vmatmul.mubr.bf16.gmra.mxu0 %v408
        %v1081 = vpop.f32.mrf.mxu0
        %v1082 = vadd.f32 %v515, %v1081
        %v1083 = vpop.f32.mrf.mxu0
        %v1084 = vadd.f32 %v519, %v1083
        %v1085 = vpop.f32.mrf.mxu0
        %v1086 = vadd.f32 %v515, %v1085
        %v1087 = vpop.f32.mrf.mxu0
        %v1088 = vadd.f32 %v519, %v1087
        %1089 = vmatprep.mubr.bf16.mxu0 %v411
        %1090 = vmatmul.mubr.bf16.gmra.mxu0 %v410
        %v1091 = vpop.f32.mrf.mxu0
        %v1092 = vadd.f32 %v515, %v1091
        %v1093 = vpop.f32.mrf.mxu0
        %v1094 = vadd.f32 %v519, %v1093
        %v1095 = vpop.f32.mrf.mxu0
        %v1096 = vadd.f32 %v515, %v1095
        %v1097 = vpop.f32.mrf.mxu0
        %v1098 = vadd.f32 %v519, %v1097
        %1099 = vmatprep.mubr.bf16.mxu0 %v413
        %1100 = vmatmul.mubr.bf16.gmra.mxu0 %v412
        %v1101 = vpop.f32.mrf.mxu0
        %v1102 = vadd.f32 %v515, %v1101
        %v1103 = vpop.f32.mrf.mxu0
        %v1104 = vadd.f32 %v519, %v1103
        %v1105 = vpop.f32.mrf.mxu0
        %v1106 = vadd.f32 %v515, %v1105
        %v1107 = vpop.f32.mrf.mxu0
        %v1108 = vadd.f32 %v519, %v1107
        %1109 = vmatprep.mubr.bf16.mxu0 %v415
        %1110 = vmatmul.mubr.bf16.gmra.mxu0 %v414
        %v1111 = vpop.f32.mrf.mxu0
        %v1112 = vadd.f32 %v515, %v1111
        %v1113 = vpop.f32.mrf.mxu0
        %v1114 = vadd.f32 %v519, %v1113
        %v1115 = vpop.f32.mrf.mxu0
        %v1116 = vadd.f32 %v515, %v1115
        %v1117 = vpop.f32.mrf.mxu0
        %v1118 = vadd.f32 %v519, %v1117
        %1119 = vmatprep.mubr.bf16.mxu0 %v417
        %1120 = vmatmul.mubr.bf16.gmra.mxu0 %v416
        %v1121 = vpop.f32.mrf.mxu0
        %v1122 = vadd.f32 %v515, %v1121
        %v1123 = vpop.f32.mrf.mxu0
        %v1124 = vadd.f32 %v519, %v1123
        %v1125 = vpop.f32.mrf.mxu0
        %v1126 = vadd.f32 %v515, %v1125
        %v1127 = vpop.f32.mrf.mxu0
        %v1128 = vadd.f32 %v519, %v1127
        %1129 = vmatprep.mubr.bf16.mxu0 %v419
        %1130 = vmatmul.mubr.bf16.gmra.mxu0 %v418
        %v1131 = vpop.f32.mrf.mxu0
        %v1132 = vadd.f32 %v515, %v1131
        %v1133 = vpop.f32.mrf.mxu0
        %v1134 = vadd.f32 %v519, %v1133
        %v1135 = vpop.f32.mrf.mxu0
        %v1136 = vadd.f32 %v515, %v1135
        %v1137 = vpop.f32.mrf.mxu0
        %v1138 = vadd.f32 %v519, %v1137
        %1139 = vmatprep.mubr.bf16.mxu0 %v421
        %1140 = vmatmul.mubr.bf16.gmra.mxu0 %v420
        %v1141 = vpop.f32.mrf.mxu0
        %v1142 = vadd.f32 %v515, %v1141
        %v1143 = vpop.f32.mrf.mxu0
        %v1144 = vadd.f32 %v519, %v1143
        %v1145 = vpop.f32.mrf.mxu0
        %v1146 = vadd.f32 %v515, %v1145
        %v1147 = vpop.f32.mrf.mxu0
        %v1148 = vadd.f32 %v519, %v1147
        %1149 = vmatprep.mubr.bf16.mxu0 %v423
        %1150 = vmatmul.mubr.bf16.gmra.mxu0 %v422
        %v1151 = vpop.f32.mrf.mxu0
        %v1152 = vadd.f32 %v515, %v1151
        %v1153 = vpop.f32.mrf.mxu0
        %v1154 = vadd.f32 %v519, %v1153
        %v1155 = vpop.f32.mrf.mxu0
        %v1156 = vadd.f32 %v515, %v1155
        %v1157 = vpop.f32.mrf.mxu0
        %v1158 = vadd.f32 %v519, %v1157
        %1159 = vmatprep.mubr.bf16.mxu0 %v425
        %1160 = vmatmul.mubr.bf16.gmra.mxu0 %v424
        %v1161 = vpop.f32.mrf.mxu0
        %v1162 = vadd.f32 %v515, %v1161
        %v1163 = vpop.f32.mrf.mxu0
        %v1164 = vadd.f32 %v519, %v1163
        %v1165 = vpop.f32.mrf.mxu0
        %v1166 = vadd.f32 %v515, %v1165
        %v1167 = vpop.f32.mrf.mxu0
        %v1168 = vadd.f32 %v519, %v1167
        %1169 = vmatprep.mubr.bf16.mxu0 %v427
        %1170 = vmatmul.mubr.bf16.gmra.mxu0 %v426
        %v1171 = vpop.f32.mrf.mxu0
        %v1172 = vadd.f32 %v515, %v1171
        %v1173 = vpop.f32.mrf.mxu0
        %v1174 = vadd.f32 %v519, %v1173
        %v1175 = vpop.f32.mrf.mxu0
        %v1176 = vadd.f32 %v515, %v1175
        %v1177 = vpop.f32.mrf.mxu0
        %v1178 = vadd.f32 %v519, %v1177
        %1179 = vmatprep.mubr.bf16.mxu0 %v429
        %1180 = vmatmul.mubr.bf16.gmra.mxu0 %v428
        %v1181 = vpop.f32.mrf.mxu0
        %v1182 = vadd.f32 %v515, %v1181
        %v1183 = vpop.f32.mrf.mxu0
        %v1184 = vadd.f32 %v519, %v1183
        %v1185 = vpop.f32.mrf.mxu0
        %v1186 = vadd.f32 %v515, %v1185
        %v1187 = vpop.f32.mrf.mxu0
        %v1188 = vadd.f32 %v519, %v1187
        %1189 = vmatprep.mubr.bf16.mxu0 %v431
        %1190 = vmatmul.mubr.bf16.gmra.mxu0 %v430
        %v1191 = vpop.f32.mrf.mxu0
        %v1192 = vadd.f32 %v515, %v1191
        %v1193 = vpop.f32.mrf.mxu0
        %v1194 = vadd.f32 %v519, %v1193
        %v1195 = vpop.f32.mrf.mxu0
        %v1196 = vadd.f32 %v515, %v1195
        %v1197 = vpop.f32.mrf.mxu0
        %v1198 = vadd.f32 %v519, %v1197
        %1199 = vmatprep.mubr.bf16.mxu0 %v433
        %1200 = vmatmul.mubr.bf16.gmra.mxu0 %v432
        %v1201 = vpop.f32.mrf.mxu0
        %v1202 = vadd.f32 %v515, %v1201
        %v1203 = vpop.f32.mrf.mxu0
        %v1204 = vadd.f32 %v519, %v1203
        %v1205 = vpop.f32.mrf.mxu0
        %v1206 = vadd.f32 %v515, %v1205
        %v1207 = vpop.f32.mrf.mxu0
        %v1208 = vadd.f32 %v519, %v1207
        %1209 = vmatprep.mubr.bf16.mxu0 %v435
        %1210 = vmatmul.mubr.bf16.gmra.mxu0 %v434
        %v1211 = vpop.f32.mrf.mxu0
        %v1212 = vadd.f32 %v515, %v1211
        %v1213 = vpop.f32.mrf.mxu0
        %v1214 = vadd.f32 %v519, %v1213
        %v1215 = vpop.f32.mrf.mxu0
        %v1216 = vadd.f32 %v515, %v1215
        %v1217 = vpop.f32.mrf.mxu0
        %v1218 = vadd.f32 %v519, %v1217
        %1219 = vmatprep.mubr.bf16.mxu0 %v437
        %1220 = vmatmul.mubr.bf16.gmra.mxu0 %v436
        %v1221 = vpop.f32.mrf.mxu0
        %v1222 = vadd.f32 %v515, %v1221
        %v1223 = vpop.f32.mrf.mxu0
        %v1224 = vadd.f32 %v519, %v1223
        %v1225 = vpop.f32.mrf.mxu0
        %v1226 = vadd.f32 %v515, %v1225
        %v1227 = vpop.f32.mrf.mxu0
        %v1228 = vadd.f32 %v519, %v1227
        %1229 = vdwg.mxu0
        %v1230 = vmax.f32 %v879, 0.0
        %v1231 = vmax.f32 %v881, 0.0
        %v1232 = vmax.f32 %v1072, 0.0
        %v1233 = vmax.f32 %v1074, 0.0
        %v1234 = vmax.f32 %v883, 0.0
        %v1235 = vmax.f32 %v885, 0.0
        %v1236 = vmax.f32 %v1076, 0.0
        %v1237 = vmax.f32 %v1078, 0.0
        %v1238 = vmax.f32 %v889, 0.0
        %v1239 = vmax.f32 %v891, 0.0
        %v1240 = vmax.f32 %v1082, 0.0
        %v1241 = vmax.f32 %v1084, 0.0
        %v1242 = vmax.f32 %v893, 0.0
        %v1243 = vmax.f32 %v895, 0.0
        %v1244 = vmax.f32 %v1086, 0.0
        %v1245 = vmax.f32 %v1088, 0.0
        %v1246 = vmax.f32 %v899, 0.0
        %v1247 = vmax.f32 %v901, 0.0
        %v1248 = vmax.f32 %v1092, 0.0
        %v1249 = vmax.f32 %v1094, 0.0
        %v1250 = vmax.f32 %v903, 0.0
        %v1251 = vmax.f32 %v905, 0.0
        %v1252 = vmax.f32 %v1096, 0.0
        %v1253 = vmax.f32 %v1098, 0.0
        %v1254 = vmax.f32 %v909, 0.0
        %v1255 = vmax.f32 %v911, 0.0
        %v1256 = vmax.f32 %v1102, 0.0
        %v1257 = vmax.f32 %v1104, 0.0
        %v1258 = vmax.f32 %v913, 0.0
        %v1259 = vmax.f32 %v915, 0.0
        %v1260 = vmax.f32 %v1106, 0.0
        %v1261 = vmax.f32 %v1108, 0.0
        %v1262 = vmax.f32 %v919, 0.0
        %v1263 = vmax.f32 %v921, 0.0
        %v1264 = vmax.f32 %v1112, 0.0
        %v1265 = vmax.f32 %v1114, 0.0
        %v1266 = vmax.f32 %v923, 0.0
        %v1267 = vmax.f32 %v925, 0.0
        %v1268 = vmax.f32 %v1116, 0.0
        %v1269 = vmax.f32 %v1118, 0.0
        %v1270 = vmax.f32 %v929, 0.0
        %v1271 = vmax.f32 %v931, 0.0
        %v1272 = vmax.f32 %v1122, 0.0
        %v1273 = vmax.f32 %v1124, 0.0
        %v1274 = vmax.f32 %v933, 0.0
        %v1275 = vmax.f32 %v935, 0.0
        %v1276 = vmax.f32 %v1126, 0.0
        %v1277 = vmax.f32 %v1128, 0.0
        %v1278 = vmax.f32 %v939, 0.0
        %v1279 = vmax.f32 %v941, 0.0
        %v1280 = vmax.f32 %v1132, 0.0
        %v1281 = vmax.f32 %v1134, 0.0
        %v1282 = vmax.f32 %v943, 0.0
        %v1283 = vmax.f32 %v945, 0.0
        %v1284 = vmax.f32 %v1136, 0.0
        %v1285 = vmax.f32 %v1138, 0.0
        %v1286 = vmax.f32 %v949, 0.0
        %v1287 = vmax.f32 %v951, 0.0
        %v1288 = vmax.f32 %v1142, 0.0
        %v1289 = vmax.f32 %v1144, 0.0
        %v1290 = vmax.f32 %v953, 0.0
        %v1291 = vmax.f32 %v955, 0.0
        %v1292 = vmax.f32 %v1146, 0.0
        %v1293 = vmax.f32 %v1148, 0.0
        %v1294 = vmax.f32 %v959, 0.0
        %v1295 = vmax.f32 %v961, 0.0
        %v1296 = vmax.f32 %v1152, 0.0
        %v1297 = vmax.f32 %v1154, 0.0
        %v1298 = vmax.f32 %v963, 0.0
        %v1299 = vmax.f32 %v965, 0.0
        %v1300 = vmax.f32 %v1156, 0.0
        %v1301 = vmax.f32 %v1158, 0.0
        %v1302 = vmax.f32 %v969, 0.0
        %v1303 = vmax.f32 %v971, 0.0
        %v1304 = vmax.f32 %v1162, 0.0
        %v1305 = vmax.f32 %v1164, 0.0
        %v1306 = vmax.f32 %v973, 0.0
        %v1307 = vmax.f32 %v975, 0.0
        %v1308 = vmax.f32 %v1166, 0.0
        %v1309 = vmax.f32 %v1168, 0.0
        %v1310 = vmax.f32 %v979, 0.0
        %v1311 = vmax.f32 %v981, 0.0
        %v1312 = vmax.f32 %v1172, 0.0
        %v1313 = vmax.f32 %v1174, 0.0
        %v1314 = vmax.f32 %v983, 0.0
        %v1315 = vmax.f32 %v985, 0.0
        %v1316 = vmax.f32 %v1176, 0.0
        %v1317 = vmax.f32 %v1178, 0.0
        %v1318 = vmax.f32 %v989, 0.0
        %v1319 = vmax.f32 %v991, 0.0
        %v1320 = vmax.f32 %v1182, 0.0
        %v1321 = vmax.f32 %v1184, 0.0
        %v1322 = vmax.f32 %v993, 0.0
        %v1323 = vmax.f32 %v995, 0.0
        %v1324 = vmax.f32 %v1186, 0.0
        %v1325 = vmax.f32 %v1188, 0.0
        %v1326 = vmax.f32 %v999, 0.0
        %v1327 = vmax.f32 %v1001, 0.0
        %v1328 = vmax.f32 %v1192, 0.0
        %v1329 = vmax.f32 %v1194, 0.0
        %v1330 = vmax.f32 %v1003, 0.0
        %v1331 = vmax.f32 %v1005, 0.0
        %v1332 = vmax.f32 %v1196, 0.0
        %v1333 = vmax.f32 %v1198, 0.0
        %v1334 = vmax.f32 %v1009, 0.0
        %v1335 = vmax.f32 %v1011, 0.0
        %v1336 = vmax.f32 %v1202, 0.0
        %v1337 = vmax.f32 %v1204, 0.0
        %v1338 = vmax.f32 %v1013, 0.0
        %v1339 = vmax.f32 %v1015, 0.0
        %v1340 = vmax.f32 %v1206, 0.0
        %v1341 = vmax.f32 %v1208, 0.0
        %v1342 = vmax.f32 %v1019, 0.0
        %v1343 = vmax.f32 %v1021, 0.0
        %v1344 = vmax.f32 %v1212, 0.0
        %v1345 = vmax.f32 %v1214, 0.0
        %v1346 = vmax.f32 %v1023, 0.0
        %v1347 = vmax.f32 %v1025, 0.0
        %v1348 = vmax.f32 %v1216, 0.0
        %v1349 = vmax.f32 %v1218, 0.0
        %v1350 = vmax.f32 %v1029, 0.0
        %v1351 = vmax.f32 %v1031, 0.0
        %v1352 = vmax.f32 %v1222, 0.0
        %v1353 = vmax.f32 %v1224, 0.0
        %v1354 = vmax.f32 %v1033, 0.0
        %v1355 = vmax.f32 %v1035, 0.0
        %v1356 = vmax.f32 %v1226, 0.0
        %v1357 = vmax.f32 %v1228, 0.0
        %v1358 = vpack.c.bf16 %v1234, %v1230
        %v1359 = vpack.c.bf16 %v1235, %v1231
        %v1360 = vpack.c.bf16 %v1236, %v1232
        %v1361 = vpack.c.bf16 %v1237, %v1233
        %v1362 = vpack.c.bf16 %v1242, %v1238
        %v1363 = vpack.c.bf16 %v1243, %v1239
        %v1364 = vpack.c.bf16 %v1244, %v1240
        %v1365 = vpack.c.bf16 %v1245, %v1241
        %v1366 = vpack.c.bf16 %v1250, %v1246
        %v1367 = vpack.c.bf16 %v1251, %v1247
        %v1368 = vpack.c.bf16 %v1252, %v1248
        %v1369 = vpack.c.bf16 %v1253, %v1249
        %v1370 = vpack.c.bf16 %v1258, %v1254
        %v1371 = vpack.c.bf16 %v1259, %v1255
        %v1372 = vpack.c.bf16 %v1260, %v1256
        %v1373 = vpack.c.bf16 %v1261, %v1257
        %v1374 = vpack.c.bf16 %v1266, %v1262
        %v1375 = vpack.c.bf16 %v1267, %v1263
        %v1376 = vpack.c.bf16 %v1268, %v1264
        %v1377 = vpack.c.bf16 %v1269, %v1265
        %v1378 = vpack.c.bf16 %v1274, %v1270
        %v1379 = vpack.c.bf16 %v1275, %v1271
        %v1380 = vpack.c.bf16 %v1276, %v1272
        %v1381 = vpack.c.bf16 %v1277, %v1273
        %v1382 = vpack.c.bf16 %v1282, %v1278
        %v1383 = vpack.c.bf16 %v1283, %v1279
        %v1384 = vpack.c.bf16 %v1284, %v1280
        %v1385 = vpack.c.bf16 %v1285, %v1281
        %v1386 = vpack.c.bf16 %v1290, %v1286
        %v1387 = vpack.c.bf16 %v1291, %v1287
        %v1388 = vpack.c.bf16 %v1292, %v1288
        %v1389 = vpack.c.bf16 %v1293, %v1289
        %v1390 = vpack.c.bf16 %v1298, %v1294
        %v1391 = vpack.c.bf16 %v1299, %v1295
        %v1392 = vpack.c.bf16 %v1300, %v1296
        %v1393 = vpack.c.bf16 %v1301, %v1297
        %v1394 = vpack.c.bf16 %v1306, %v1302
        %v1395 = vpack.c.bf16 %v1307, %v1303
        %v1396 = vpack.c.bf16 %v1308, %v1304
        %v1397 = vpack.c.bf16 %v1309, %v1305
        %v1398 = vpack.c.bf16 %v1314, %v1310
        %v1399 = vpack.c.bf16 %v1315, %v1311
        %v1400 = vpack.c.bf16 %v1316, %v1312
        %v1401 = vpack.c.bf16 %v1317, %v1313
        %v1402 = vpack.c.bf16 %v1322, %v1318
        %v1403 = vpack.c.bf16 %v1323, %v1319
        %v1404 = vpack.c.bf16 %v1324, %v1320
        %v1405 = vpack.c.bf16 %v1325, %v1321
        %v1406 = vpack.c.bf16 %v1330, %v1326
        %v1407 = vpack.c.bf16 %v1331, %v1327
        %v1408 = vpack.c.bf16 %v1332, %v1328
        %v1409 = vpack.c.bf16 %v1333, %v1329
        %v1410 = vpack.c.bf16 %v1338, %v1334
        %v1411 = vpack.c.bf16 %v1339, %v1335
        %v1412 = vpack.c.bf16 %v1340, %v1336
        %v1413 = vpack.c.bf16 %v1341, %v1337
        %v1414 = vpack.c.bf16 %v1346, %v1342
        %v1415 = vpack.c.bf16 %v1347, %v1343
        %v1416 = vpack.c.bf16 %v1348, %v1344
        %v1417 = vpack.c.bf16 %v1349, %v1345
        %v1418 = vpack.c.bf16 %v1354, %v1350
        %v1419 = vpack.c.bf16 %v1355, %v1351
        %v1420 = vpack.c.bf16 %v1356, %v1352
        %v1421 = vpack.c.bf16 %v1357, %v1353
        %v1422 = vld [vmem:[#allocation8] sm:$0xff]
        %v1423 = vld [vmem:[#allocation8 + $0x8] sm:$0xff]
        %v1424 = vld [vmem:[#allocation8 + $0x10] sm:$0xff]
        %v1425 = vld [vmem:[#allocation8 + $0x18] sm:$0xff]
        %v1426 = vld [vmem:[#allocation8 + $0x20] sm:$0xff]
        %v1427 = vld [vmem:[#allocation8 + $0x28] sm:$0xff]
        %v1428 = vld [vmem:[#allocation8 + $0x30] sm:$0xff]
        %v1429 = vld [vmem:[#allocation8 + $0x38] sm:$0xff]
        %v1430 = vld [vmem:[#allocation8 + $0x40] sm:$0xff]
        %v1431 = vld [vmem:[#allocation8 + $0x48] sm:$0xff]
        %v1432 = vld [vmem:[#allocation8 + $0x50] sm:$0xff]
        %v1433 = vld [vmem:[#allocation8 + $0x58] sm:$0xff]
        %v1434 = vld [vmem:[#allocation8 + $0x60] sm:$0xff]
        %v1435 = vld [vmem:[#allocation8 + $0x68] sm:$0xff]
        %v1436 = vld [vmem:[#allocation8 + $0x70] sm:$0xff]
        %v1437 = vld [vmem:[#allocation8 + $0x78] sm:$0xff]
        %v1438 = vld [vmem:[#allocation8 + $0x80] sm:$0xff]
        %v1439 = vld [vmem:[#allocation8 + $0x88] sm:$0xff]
        %v1440 = vld [vmem:[#allocation8 + $0x90] sm:$0xff]
        %v1441 = vld [vmem:[#allocation8 + $0x98] sm:$0xff]
        %v1442 = vld [vmem:[#allocation8 + $0xa0] sm:$0xff]
        %v1443 = vld [vmem:[#allocation8 + $0xa8] sm:$0xff]
        %v1444 = vld [vmem:[#allocation8 + $0xb0] sm:$0xff]
        %v1445 = vld [vmem:[#allocation8 + $0xb8] sm:$0xff]
        %v1446 = vld [vmem:[#allocation8 + $0xc0] sm:$0xff]
        %v1447 = vld [vmem:[#allocation8 + $0xc8] sm:$0xff]
        %v1448 = vld [vmem:[#allocation8 + $0xd0] sm:$0xff]
        %v1449 = vld [vmem:[#allocation8 + $0xd8] sm:$0xff]
        %v1450 = vld [vmem:[#allocation8 + $0xe0] sm:$0xff]
        %v1451 = vld [vmem:[#allocation8 + $0xe8] sm:$0xff]
        %v1452 = vld [vmem:[#allocation8 + $0xf0] sm:$0xff]
        %v1453 = vld [vmem:[#allocation8 + $0xf8] sm:$0xff]
        %v1454 = vld [vmem:[#allocation8 + $0x100] sm:$0xff]
        %v1455 = vld [vmem:[#allocation8 + $0x108] sm:$0xff]
        %v1456 = vld [vmem:[#allocation8 + $0x110] sm:$0xff]
        %v1457 = vld [vmem:[#allocation8 + $0x118] sm:$0xff]
        %v1458 = vld [vmem:[#allocation8 + $0x120] sm:$0xff]
        %v1459 = vld [vmem:[#allocation8 + $0x128] sm:$0xff]
        %v1460 = vld [vmem:[#allocation8 + $0x130] sm:$0xff]
        %v1461 = vld [vmem:[#allocation8 + $0x138] sm:$0xff]
        %v1462 = vld [vmem:[#allocation8 + $0x140] sm:$0xff]
        %v1463 = vld [vmem:[#allocation8 + $0x148] sm:$0xff]
        %v1464 = vld [vmem:[#allocation8 + $0x150] sm:$0xff]
        %v1465 = vld [vmem:[#allocation8 + $0x158] sm:$0xff]
        %v1466 = vld [vmem:[#allocation8 + $0x160] sm:$0xff]
        %v1467 = vld [vmem:[#allocation8 + $0x168] sm:$0xff]
        %v1468 = vld [vmem:[#allocation8 + $0x170] sm:$0xff]
        %v1469 = vld [vmem:[#allocation8 + $0x178] sm:$0xff]
        %v1470 = vld [vmem:[#allocation8 + $0x180] sm:$0xff]
        %v1471 = vld [vmem:[#allocation8 + $0x188] sm:$0xff]
        %v1472 = vld [vmem:[#allocation8 + $0x190] sm:$0xff]
        %v1473 = vld [vmem:[#allocation8 + $0x198] sm:$0xff]
        %v1474 = vld [vmem:[#allocation8 + $0x1a0] sm:$0xff]
        %v1475 = vld [vmem:[#allocation8 + $0x1a8] sm:$0xff]
        %v1476 = vld [vmem:[#allocation8 + $0x1b0] sm:$0xff]
        %v1477 = vld [vmem:[#allocation8 + $0x1b8] sm:$0xff]
        %v1478 = vld [vmem:[#allocation8 + $0x1c0] sm:$0xff]
        %v1479 = vld [vmem:[#allocation8 + $0x1c8] sm:$0xff]
        %v1480 = vld [vmem:[#allocation8 + $0x1d0] sm:$0xff]
        %v1481 = vld [vmem:[#allocation8 + $0x1d8] sm:$0xff]
        %v1482 = vld [vmem:[#allocation8 + $0x1e0] sm:$0xff]
        %v1483 = vld [vmem:[#allocation8 + $0x1e8] sm:$0xff]
        %v1484 = vld [vmem:[#allocation8 + $0x1f0] sm:$0xff]
        %v1485 = vld [vmem:[#allocation8 + $0x1f8] sm:$0xff]
        %v1486 = vld [vmem:[%s4] sm:$0x3]
        %v1488 = vlaneseq
        %v1489 = vshrl.u32 %v1488, 7
        %v1490 = vsub.s32 0, %v1489
        %v1491 = vrot.slane %v1486, %v1490
        %v1492 = vlaneseq
        %v1493 = vshrl.u32 %v1492, 7
        %v1494 = vsub.s32 1, %v1493
        %v1495 = vrot.slane %v1486, %v1494
        %v1562 = vunpack.c.l.b16 %v1422
        %v1563 = vunpack.c.h.b16 %v1422
        %v1564 = vunpack.c.l.b16 %v1423
        %v1565 = vunpack.c.h.b16 %v1423
        %v1566 = vunpack.c.l.b16 %v1424
        %v1567 = vunpack.c.h.b16 %v1424
        %v1568 = vunpack.c.l.b16 %v1425
        %v1569 = vunpack.c.h.b16 %v1425
        %v1570 = vunpack.c.l.b16 %v1426
        %v1571 = vunpack.c.h.b16 %v1426
        %v1572 = vunpack.c.l.b16 %v1427
        %v1573 = vunpack.c.h.b16 %v1427
        %v1574 = vunpack.c.l.b16 %v1428
        %v1575 = vunpack.c.h.b16 %v1428
        %v1576 = vunpack.c.l.b16 %v1429
        %v1577 = vunpack.c.h.b16 %v1429
        %v1578 = vunpack.c.l.b16 %v1430
        %v1579 = vunpack.c.h.b16 %v1430
        %v1580 = vunpack.c.l.b16 %v1431
        %v1581 = vunpack.c.h.b16 %v1431
        %v1582 = vunpack.c.l.b16 %v1432
        %v1583 = vunpack.c.h.b16 %v1432
        %v1584 = vunpack.c.l.b16 %v1433
        %v1585 = vunpack.c.h.b16 %v1433
        %v1586 = vunpack.c.l.b16 %v1434
        %v1587 = vunpack.c.h.b16 %v1434
        %v1588 = vunpack.c.l.b16 %v1435
        %v1589 = vunpack.c.h.b16 %v1435
        %v1590 = vunpack.c.l.b16 %v1436
        %v1591 = vunpack.c.h.b16 %v1436
        %v1592 = vunpack.c.l.b16 %v1437
        %v1593 = vunpack.c.h.b16 %v1437
        %v1594 = vunpack.c.l.b16 %v1438
        %v1595 = vunpack.c.h.b16 %v1438
        %v1596 = vunpack.c.l.b16 %v1439
        %v1597 = vunpack.c.h.b16 %v1439
        %v1598 = vunpack.c.l.b16 %v1440
        %v1599 = vunpack.c.h.b16 %v1440
        %v1600 = vunpack.c.l.b16 %v1441
        %v1601 = vunpack.c.h.b16 %v1441
        %v1602 = vunpack.c.l.b16 %v1442
        %v1603 = vunpack.c.h.b16 %v1442
        %v1604 = vunpack.c.l.b16 %v1443
        %v1605 = vunpack.c.h.b16 %v1443
        %v1606 = vunpack.c.l.b16 %v1444
        %v1607 = vunpack.c.h.b16 %v1444
        %v1608 = vunpack.c.l.b16 %v1445
        %v1609 = vunpack.c.h.b16 %v1445
        %v1610 = vunpack.c.l.b16 %v1446
        %v1611 = vunpack.c.h.b16 %v1446
        %v1612 = vunpack.c.l.b16 %v1447
        %v1613 = vunpack.c.h.b16 %v1447
        %v1614 = vunpack.c.l.b16 %v1448
        %v1615 = vunpack.c.h.b16 %v1448
        %v1616 = vunpack.c.l.b16 %v1449
        %v1617 = vunpack.c.h.b16 %v1449
        %v1618 = vunpack.c.l.b16 %v1450
        %v1619 = vunpack.c.h.b16 %v1450
        %v1620 = vunpack.c.l.b16 %v1451
        %v1621 = vunpack.c.h.b16 %v1451
        %v1622 = vunpack.c.l.b16 %v1452
        %v1623 = vunpack.c.h.b16 %v1452
        %v1624 = vunpack.c.l.b16 %v1453
        %v1625 = vunpack.c.h.b16 %v1453
        %v1626 = vunpack.c.l.b16 %v1454
        %v1627 = vunpack.c.h.b16 %v1454
        %v1628 = vunpack.c.l.b16 %v1455
        %v1629 = vunpack.c.h.b16 %v1455
        %v1630 = vunpack.c.l.b16 %v1456
        %v1631 = vunpack.c.h.b16 %v1456
        %v1632 = vunpack.c.l.b16 %v1457
        %v1633 = vunpack.c.h.b16 %v1457
        %v1634 = vunpack.c.l.b16 %v1458
        %v1635 = vunpack.c.h.b16 %v1458
        %v1636 = vunpack.c.l.b16 %v1459
        %v1637 = vunpack.c.h.b16 %v1459
        %v1638 = vunpack.c.l.b16 %v1460
        %v1639 = vunpack.c.h.b16 %v1460
        %v1640 = vunpack.c.l.b16 %v1461
        %v1641 = vunpack.c.h.b16 %v1461
        %v1642 = vunpack.c.l.b16 %v1462
        %v1643 = vunpack.c.h.b16 %v1462
        %v1644 = vunpack.c.l.b16 %v1463
        %v1645 = vunpack.c.h.b16 %v1463
        %v1646 = vunpack.c.l.b16 %v1464
        %v1647 = vunpack.c.h.b16 %v1464
        %v1648 = vunpack.c.l.b16 %v1465
        %v1649 = vunpack.c.h.b16 %v1465
        %v1650 = vunpack.c.l.b16 %v1466
        %v1651 = vunpack.c.h.b16 %v1466
        %v1652 = vunpack.c.l.b16 %v1467
        %v1653 = vunpack.c.h.b16 %v1467
        %v1654 = vunpack.c.l.b16 %v1468
        %v1655 = vunpack.c.h.b16 %v1468
        %v1656 = vunpack.c.l.b16 %v1469
        %v1657 = vunpack.c.h.b16 %v1469
        %v1658 = vunpack.c.l.b16 %v1470
        %v1659 = vunpack.c.h.b16 %v1470
        %v1660 = vunpack.c.l.b16 %v1471
        %v1661 = vunpack.c.h.b16 %v1471
        %v1662 = vunpack.c.l.b16 %v1472
        %v1663 = vunpack.c.h.b16 %v1472
        %v1664 = vunpack.c.l.b16 %v1473
        %v1665 = vunpack.c.h.b16 %v1473
        %v1666 = vunpack.c.l.b16 %v1474
        %v1667 = vunpack.c.h.b16 %v1474
        %v1668 = vunpack.c.l.b16 %v1475
        %v1669 = vunpack.c.h.b16 %v1475
        %v1670 = vunpack.c.l.b16 %v1476
        %v1671 = vunpack.c.h.b16 %v1476
        %v1672 = vunpack.c.l.b16 %v1477
        %v1673 = vunpack.c.h.b16 %v1477
        %v1674 = vunpack.c.l.b16 %v1478
        %v1675 = vunpack.c.h.b16 %v1478
        %v1676 = vunpack.c.l.b16 %v1479
        %v1677 = vunpack.c.h.b16 %v1479
        %v1678 = vunpack.c.l.b16 %v1480
        %v1679 = vunpack.c.h.b16 %v1480
        %v1680 = vunpack.c.l.b16 %v1481
        %v1681 = vunpack.c.h.b16 %v1481
        %v1682 = vunpack.c.l.b16 %v1482
        %v1683 = vunpack.c.h.b16 %v1482
        %v1684 = vunpack.c.l.b16 %v1483
        %v1685 = vunpack.c.h.b16 %v1483
        %v1686 = vunpack.c.l.b16 %v1484
        %v1687 = vunpack.c.h.b16 %v1484
        %v1688 = vunpack.c.l.b16 %v1485
        %v1689 = vunpack.c.h.b16 %v1485
        %v1690 = vpack.c.b16 %v1564, %v1562
        %v1691 = vpack.c.b16 %v1565, %v1563
        %v1692 = vpack.c.b16 %v1568, %v1566
        %v1693 = vpack.c.b16 %v1569, %v1567
        %v1694 = vpack.c.b16 %v1572, %v1570
        %v1695 = vpack.c.b16 %v1573, %v1571
        %v1696 = vpack.c.b16 %v1576, %v1574
        %v1697 = vpack.c.b16 %v1577, %v1575
        %v1698 = vpack.c.b16 %v1580, %v1578
        %v1699 = vpack.c.b16 %v1581, %v1579
        %v1700 = vpack.c.b16 %v1584, %v1582
        %v1701 = vpack.c.b16 %v1585, %v1583
        %v1702 = vpack.c.b16 %v1588, %v1586
        %v1703 = vpack.c.b16 %v1589, %v1587
        %v1704 = vpack.c.b16 %v1592, %v1590
        %v1705 = vpack.c.b16 %v1593, %v1591
        %v1706 = vpack.c.b16 %v1596, %v1594
        %v1707 = vpack.c.b16 %v1597, %v1595
        %v1708 = vpack.c.b16 %v1600, %v1598
        %v1709 = vpack.c.b16 %v1601, %v1599
        %v1710 = vpack.c.b16 %v1604, %v1602
        %v1711 = vpack.c.b16 %v1605, %v1603
        %v1712 = vpack.c.b16 %v1608, %v1606
        %v1713 = vpack.c.b16 %v1609, %v1607
        %v1714 = vpack.c.b16 %v1612, %v1610
        %v1715 = vpack.c.b16 %v1613, %v1611
        %v1716 = vpack.c.b16 %v1616, %v1614
        %v1717 = vpack.c.b16 %v1617, %v1615
        %v1718 = vpack.c.b16 %v1620, %v1618
        %v1719 = vpack.c.b16 %v1621, %v1619
        %v1720 = vpack.c.b16 %v1624, %v1622
        %v1721 = vpack.c.b16 %v1625, %v1623
        %v1722 = vpack.c.b16 %v1628, %v1626
        %v1723 = vpack.c.b16 %v1629, %v1627
        %v1724 = vpack.c.b16 %v1632, %v1630
        %v1725 = vpack.c.b16 %v1633, %v1631
        %v1726 = vpack.c.b16 %v1636, %v1634
        %v1727 = vpack.c.b16 %v1637, %v1635
        %v1728 = vpack.c.b16 %v1640, %v1638
        %v1729 = vpack.c.b16 %v1641, %v1639
        %v1730 = vpack.c.b16 %v1644, %v1642
        %v1731 = vpack.c.b16 %v1645, %v1643
        %v1732 = vpack.c.b16 %v1648, %v1646
        %v1733 = vpack.c.b16 %v1649, %v1647
        %v1734 = vpack.c.b16 %v1652, %v1650
        %v1735 = vpack.c.b16 %v1653, %v1651
        %v1736 = vpack.c.b16 %v1656, %v1654
        %v1737 = vpack.c.b16 %v1657, %v1655
        %v1738 = vpack.c.b16 %v1660, %v1658
        %v1739 = vpack.c.b16 %v1661, %v1659
        %v1740 = vpack.c.b16 %v1664, %v1662
        %v1741 = vpack.c.b16 %v1665, %v1663
        %v1742 = vpack.c.b16 %v1668, %v1666
        %v1743 = vpack.c.b16 %v1669, %v1667
        %v1744 = vpack.c.b16 %v1672, %v1670
        %v1745 = vpack.c.b16 %v1673, %v1671
        %v1746 = vpack.c.b16 %v1676, %v1674
        %v1747 = vpack.c.b16 %v1677, %v1675
        %v1748 = vpack.c.b16 %v1680, %v1678
        %v1749 = vpack.c.b16 %v1681, %v1679
        %v1750 = vpack.c.b16 %v1684, %v1682
        %v1751 = vpack.c.b16 %v1685, %v1683
        %v1752 = vpack.c.b16 %v1688, %v1686
        %v1753 = vpack.c.b16 %v1689, %v1687
        %1818 = vmatprep.subr.bf16.mxu0 %v1705
        %1819 = vmatpush1.bf16.msra.mxu0 %v1704
        %1820 = vmatprep.subr.bf16.mxu0 %v1703
        %1821 = vmatpush1.bf16.msra.mxu0 %v1702
        %1822 = vmatprep.subr.bf16.mxu0 %v1701
        %1823 = vmatpush1.bf16.msra.mxu0 %v1700
        %1824 = vmatprep.subr.bf16.mxu0 %v1699
        %1825 = vmatpush1.bf16.msra.mxu0 %v1698
        %1826 = vmatprep.subr.bf16.mxu0 %v1697
        %1827 = vmatpush1.bf16.msra.mxu0 %v1696
        %1828 = vmatprep.subr.bf16.mxu0 %v1695
        %1829 = vmatpush1.bf16.msra.mxu0 %v1694
        %1830 = vmatprep.subr.bf16.mxu0 %v1693
        %1831 = vmatpush1.bf16.msra.mxu0 %v1692
        %1832 = vmatprep.subr.bf16.mxu0 %v1691
        %1833 = vmatpush1.bf16.msra.mxu0 %v1690
        %1834 = vmatprep.subr.bf16.mxu0 %v1721
        %1835 = vmatpush2.bf16.msra.mxu0 %v1720
        %1836 = vmatprep.subr.bf16.mxu0 %v1719
        %1837 = vmatpush2.bf16.msra.mxu0 %v1718
        %1838 = vmatprep.subr.bf16.mxu0 %v1717
        %1839 = vmatpush2.bf16.msra.mxu0 %v1716
        %1840 = vmatprep.subr.bf16.mxu0 %v1715
        %1841 = vmatpush2.bf16.msra.mxu0 %v1714
        %1842 = vmatprep.subr.bf16.mxu0 %v1713
        %1843 = vmatpush2.bf16.msra.mxu0 %v1712
        %1844 = vmatprep.subr.bf16.mxu0 %v1711
        %1845 = vmatpush2.bf16.msra.mxu0 %v1710
        %1846 = vmatprep.subr.bf16.mxu0 %v1709
        %1847 = vmatpush2.bf16.msra.mxu0 %v1708
        %1848 = vmatprep.subr.bf16.mxu0 %v1707
        %1849 = vmatpush2.bf16.msra.mxu0 %v1706
        %1850 = vmatprep.mubr.bf16.mxu0 %v1359
        %1851 = vmatmul.mubr.bf16.gmra.mxu0 %v1358
        %v1852 = vpop.f32.mrf.mxu0
        %v1853 = vadd.f32 %v1491, %v1852
        %v1854 = vpop.f32.mrf.mxu0
        %v1855 = vadd.f32 %v1495, %v1854
        %v1856 = vpop.f32.mrf.mxu0
        %v1857 = vadd.f32 %v1491, %v1856
        %v1858 = vpop.f32.mrf.mxu0
        %v1859 = vadd.f32 %v1495, %v1858
        %1860 = vmatprep.mubr.bf16.mxu0 %v1363
        %1861 = vmatmul.mubr.bf16.gmra.mxu0 %v1362
        %v1862 = vpop.f32.mrf.mxu0
        %v1863 = vadd.f32 %v1491, %v1862
        %v1864 = vpop.f32.mrf.mxu0
        %v1865 = vadd.f32 %v1495, %v1864
        %v1866 = vpop.f32.mrf.mxu0
        %v1867 = vadd.f32 %v1491, %v1866
        %v1868 = vpop.f32.mrf.mxu0
        %v1869 = vadd.f32 %v1495, %v1868
        %1870 = vmatprep.mubr.bf16.mxu0 %v1367
        %1871 = vmatmul.mubr.bf16.gmra.mxu0 %v1366
        %v1872 = vpop.f32.mrf.mxu0
        %v1873 = vadd.f32 %v1491, %v1872
        %v1874 = vpop.f32.mrf.mxu0
        %v1875 = vadd.f32 %v1495, %v1874
        %v1876 = vpop.f32.mrf.mxu0
        %v1877 = vadd.f32 %v1491, %v1876
        %v1878 = vpop.f32.mrf.mxu0
        %v1879 = vadd.f32 %v1495, %v1878
        %1880 = vmatprep.mubr.bf16.mxu0 %v1371
        %1881 = vmatmul.mubr.bf16.gmra.mxu0 %v1370
        %v1882 = vpop.f32.mrf.mxu0
        %v1883 = vadd.f32 %v1491, %v1882
        %v1884 = vpop.f32.mrf.mxu0
        %v1885 = vadd.f32 %v1495, %v1884
        %v1886 = vpop.f32.mrf.mxu0
        %v1887 = vadd.f32 %v1491, %v1886
        %v1888 = vpop.f32.mrf.mxu0
        %v1889 = vadd.f32 %v1495, %v1888
        %1890 = vmatprep.mubr.bf16.mxu0 %v1375
        %1891 = vmatmul.mubr.bf16.gmra.mxu0 %v1374
        %v1892 = vpop.f32.mrf.mxu0
        %v1893 = vadd.f32 %v1491, %v1892
        %v1894 = vpop.f32.mrf.mxu0
        %v1895 = vadd.f32 %v1495, %v1894
        %v1896 = vpop.f32.mrf.mxu0
        %v1897 = vadd.f32 %v1491, %v1896
        %v1898 = vpop.f32.mrf.mxu0
        %v1899 = vadd.f32 %v1495, %v1898
        %1900 = vmatprep.mubr.bf16.mxu0 %v1379
        %1901 = vmatmul.mubr.bf16.gmra.mxu0 %v1378
        %v1902 = vpop.f32.mrf.mxu0
        %v1903 = vadd.f32 %v1491, %v1902
        %v1904 = vpop.f32.mrf.mxu0
        %v1905 = vadd.f32 %v1495, %v1904
        %v1906 = vpop.f32.mrf.mxu0
        %v1907 = vadd.f32 %v1491, %v1906
        %v1908 = vpop.f32.mrf.mxu0
        %v1909 = vadd.f32 %v1495, %v1908
        %1910 = vmatprep.mubr.bf16.mxu0 %v1383
        %1911 = vmatmul.mubr.bf16.gmra.mxu0 %v1382
        %v1912 = vpop.f32.mrf.mxu0
        %v1913 = vadd.f32 %v1491, %v1912
        %v1914 = vpop.f32.mrf.mxu0
        %v1915 = vadd.f32 %v1495, %v1914
        %v1916 = vpop.f32.mrf.mxu0
        %v1917 = vadd.f32 %v1491, %v1916
        %v1918 = vpop.f32.mrf.mxu0
        %v1919 = vadd.f32 %v1495, %v1918
        %1920 = vmatprep.mubr.bf16.mxu0 %v1387
        %1921 = vmatmul.mubr.bf16.gmra.mxu0 %v1386
        %v1922 = vpop.f32.mrf.mxu0
        %v1923 = vadd.f32 %v1491, %v1922
        %v1924 = vpop.f32.mrf.mxu0
        %v1925 = vadd.f32 %v1495, %v1924
        %v1926 = vpop.f32.mrf.mxu0
        %v1927 = vadd.f32 %v1491, %v1926
        %v1928 = vpop.f32.mrf.mxu0
        %v1929 = vadd.f32 %v1495, %v1928
        %1930 = vmatprep.mubr.bf16.mxu0 %v1391
        %1931 = vmatmul.mubr.bf16.gmra.mxu0 %v1390
        %v1932 = vpop.f32.mrf.mxu0
        %v1933 = vadd.f32 %v1491, %v1932
        %v1934 = vpop.f32.mrf.mxu0
        %v1935 = vadd.f32 %v1495, %v1934
        %v1936 = vpop.f32.mrf.mxu0
        %v1937 = vadd.f32 %v1491, %v1936
        %v1938 = vpop.f32.mrf.mxu0
        %v1939 = vadd.f32 %v1495, %v1938
        %1940 = vmatprep.mubr.bf16.mxu0 %v1395
        %1941 = vmatmul.mubr.bf16.gmra.mxu0 %v1394
        %v1942 = vpop.f32.mrf.mxu0
        %v1943 = vadd.f32 %v1491, %v1942
        %v1944 = vpop.f32.mrf.mxu0
        %v1945 = vadd.f32 %v1495, %v1944
        %v1946 = vpop.f32.mrf.mxu0
        %v1947 = vadd.f32 %v1491, %v1946
        %v1948 = vpop.f32.mrf.mxu0
        %v1949 = vadd.f32 %v1495, %v1948
        %1950 = vmatprep.mubr.bf16.mxu0 %v1399
        %1951 = vmatmul.mubr.bf16.gmra.mxu0 %v1398
        %v1952 = vpop.f32.mrf.mxu0
        %v1953 = vadd.f32 %v1491, %v1952
        %v1954 = vpop.f32.mrf.mxu0
        %v1955 = vadd.f32 %v1495, %v1954
        %v1956 = vpop.f32.mrf.mxu0
        %v1957 = vadd.f32 %v1491, %v1956
        %v1958 = vpop.f32.mrf.mxu0
        %v1959 = vadd.f32 %v1495, %v1958
        %1960 = vmatprep.mubr.bf16.mxu0 %v1403
        %1961 = vmatmul.mubr.bf16.gmra.mxu0 %v1402
        %v1962 = vpop.f32.mrf.mxu0
        %v1963 = vadd.f32 %v1491, %v1962
        %v1964 = vpop.f32.mrf.mxu0
        %v1965 = vadd.f32 %v1495, %v1964
        %v1966 = vpop.f32.mrf.mxu0
        %v1967 = vadd.f32 %v1491, %v1966
        %v1968 = vpop.f32.mrf.mxu0
        %v1969 = vadd.f32 %v1495, %v1968
        %1970 = vmatprep.mubr.bf16.mxu0 %v1407
        %1971 = vmatmul.mubr.bf16.gmra.mxu0 %v1406
        %v1972 = vpop.f32.mrf.mxu0
        %v1973 = vadd.f32 %v1491, %v1972
        %v1974 = vpop.f32.mrf.mxu0
        %v1975 = vadd.f32 %v1495, %v1974
        %v1976 = vpop.f32.mrf.mxu0
        %v1977 = vadd.f32 %v1491, %v1976
        %v1978 = vpop.f32.mrf.mxu0
        %v1979 = vadd.f32 %v1495, %v1978
        %1980 = vmatprep.mubr.bf16.mxu0 %v1411
        %1981 = vmatmul.mubr.bf16.gmra.mxu0 %v1410
        %v1982 = vpop.f32.mrf.mxu0
        %v1983 = vadd.f32 %v1491, %v1982
        %v1984 = vpop.f32.mrf.mxu0
        %v1985 = vadd.f32 %v1495, %v1984
        %v1986 = vpop.f32.mrf.mxu0
        %v1987 = vadd.f32 %v1491, %v1986
        %v1988 = vpop.f32.mrf.mxu0
        %v1989 = vadd.f32 %v1495, %v1988
        %1990 = vmatprep.mubr.bf16.mxu0 %v1415
        %1991 = vmatmul.mubr.bf16.gmra.mxu0 %v1414
        %v1992 = vpop.f32.mrf.mxu0
        %v1993 = vadd.f32 %v1491, %v1992
        %v1994 = vpop.f32.mrf.mxu0
        %v1995 = vadd.f32 %v1495, %v1994
        %v1996 = vpop.f32.mrf.mxu0
        %v1997 = vadd.f32 %v1491, %v1996
        %v1998 = vpop.f32.mrf.mxu0
        %v1999 = vadd.f32 %v1495, %v1998
        %2000 = vmatprep.mubr.bf16.mxu0 %v1419
        %2001 = vmatmul.mubr.bf16.gmra.mxu0 %v1418
        %v2002 = vpop.f32.mrf.mxu0
        %v2003 = vadd.f32 %v1491, %v2002
        %v2004 = vpop.f32.mrf.mxu0
        %v2005 = vadd.f32 %v1495, %v2004
        %v2006 = vpop.f32.mrf.mxu0
        %v2007 = vadd.f32 %v1491, %v2006
        %v2008 = vpop.f32.mrf.mxu0
        %v2009 = vadd.f32 %v1495, %v2008
        %2010 = vdwg.mxu0
        %2011 = vmatprep.subr.bf16.mxu0 %v1737
        %2012 = vmatpush1.bf16.msra.mxu0 %v1736
        %2013 = vmatprep.subr.bf16.mxu0 %v1735
        %2014 = vmatpush1.bf16.msra.mxu0 %v1734
        %2015 = vmatprep.subr.bf16.mxu0 %v1733
        %2016 = vmatpush1.bf16.msra.mxu0 %v1732
        %2017 = vmatprep.subr.bf16.mxu0 %v1731
        %2018 = vmatpush1.bf16.msra.mxu0 %v1730
        %2019 = vmatprep.subr.bf16.mxu0 %v1729
        %2020 = vmatpush1.bf16.msra.mxu0 %v1728
        %2021 = vmatprep.subr.bf16.mxu0 %v1727
        %2022 = vmatpush1.bf16.msra.mxu0 %v1726
        %2023 = vmatprep.subr.bf16.mxu0 %v1725
        %2024 = vmatpush1.bf16.msra.mxu0 %v1724
        %2025 = vmatprep.subr.bf16.mxu0 %v1723
        %2026 = vmatpush1.bf16.msra.mxu0 %v1722
        %2027 = vmatprep.subr.bf16.mxu0 %v1753
        %2028 = vmatpush2.bf16.msra.mxu0 %v1752
        %2029 = vmatprep.subr.bf16.mxu0 %v1751
        %2030 = vmatpush2.bf16.msra.mxu0 %v1750
        %2031 = vmatprep.subr.bf16.mxu0 %v1749
        %2032 = vmatpush2.bf16.msra.mxu0 %v1748
        %2033 = vmatprep.subr.bf16.mxu0 %v1747
        %2034 = vmatpush2.bf16.msra.mxu0 %v1746
        %2035 = vmatprep.subr.bf16.mxu0 %v1745
        %2036 = vmatpush2.bf16.msra.mxu0 %v1744
        %2037 = vmatprep.subr.bf16.mxu0 %v1743
        %2038 = vmatpush2.bf16.msra.mxu0 %v1742
        %2039 = vmatprep.subr.bf16.mxu0 %v1741
        %2040 = vmatpush2.bf16.msra.mxu0 %v1740
        %2041 = vmatprep.subr.bf16.mxu0 %v1739
        %2042 = vmatpush2.bf16.msra.mxu0 %v1738
        %2043 = vmatprep.mubr.bf16.mxu0 %v1361
        %2044 = vmatmul.mubr.bf16.gmra.mxu0 %v1360
        %v2045 = vpop.f32.mrf.mxu0
        %v2046 = vadd.f32 %v1853, %v2045
        %v2047 = vpop.f32.mrf.mxu0
        %v2048 = vadd.f32 %v1855, %v2047
        %v2049 = vpop.f32.mrf.mxu0
        %v2050 = vadd.f32 %v1857, %v2049
        %v2051 = vpop.f32.mrf.mxu0
        %v2052 = vadd.f32 %v1859, %v2051
        %2053 = vmatprep.mubr.bf16.mxu0 %v1365
        %2054 = vmatmul.mubr.bf16.gmra.mxu0 %v1364
        %v2055 = vpop.f32.mrf.mxu0
        %v2056 = vadd.f32 %v1863, %v2055
        %v2057 = vpop.f32.mrf.mxu0
        %v2058 = vadd.f32 %v1865, %v2057
        %v2059 = vpop.f32.mrf.mxu0
        %v2060 = vadd.f32 %v1867, %v2059
        %v2061 = vpop.f32.mrf.mxu0
        %v2062 = vadd.f32 %v1869, %v2061
        %2063 = vmatprep.mubr.bf16.mxu0 %v1369
        %2064 = vmatmul.mubr.bf16.gmra.mxu0 %v1368
        %v2065 = vpop.f32.mrf.mxu0
        %v2066 = vadd.f32 %v1873, %v2065
        %v2067 = vpop.f32.mrf.mxu0
        %v2068 = vadd.f32 %v1875, %v2067
        %v2069 = vpop.f32.mrf.mxu0
        %v2070 = vadd.f32 %v1877, %v2069
        %v2071 = vpop.f32.mrf.mxu0
        %v2072 = vadd.f32 %v1879, %v2071
        %2073 = vmatprep.mubr.bf16.mxu0 %v1373
        %2074 = vmatmul.mubr.bf16.gmra.mxu0 %v1372
        %v2075 = vpop.f32.mrf.mxu0
        %v2076 = vadd.f32 %v1883, %v2075
        %v2077 = vpop.f32.mrf.mxu0
        %v2078 = vadd.f32 %v1885, %v2077
        %v2079 = vpop.f32.mrf.mxu0
        %v2080 = vadd.f32 %v1887, %v2079
        %v2081 = vpop.f32.mrf.mxu0
        %v2082 = vadd.f32 %v1889, %v2081
        %2083 = vmatprep.mubr.bf16.mxu0 %v1377
        %2084 = vmatmul.mubr.bf16.gmra.mxu0 %v1376
        %v2085 = vpop.f32.mrf.mxu0
        %v2086 = vadd.f32 %v1893, %v2085
        %v2087 = vpop.f32.mrf.mxu0
        %v2088 = vadd.f32 %v1895, %v2087
        %v2089 = vpop.f32.mrf.mxu0
        %v2090 = vadd.f32 %v1897, %v2089
        %v2091 = vpop.f32.mrf.mxu0
        %v2092 = vadd.f32 %v1899, %v2091
        %2093 = vmatprep.mubr.bf16.mxu0 %v1381
        %2094 = vmatmul.mubr.bf16.gmra.mxu0 %v1380
        %v2095 = vpop.f32.mrf.mxu0
        %v2096 = vadd.f32 %v1903, %v2095
        %v2097 = vpop.f32.mrf.mxu0
        %v2098 = vadd.f32 %v1905, %v2097
        %v2099 = vpop.f32.mrf.mxu0
        %v2100 = vadd.f32 %v1907, %v2099
        %v2101 = vpop.f32.mrf.mxu0
        %v2102 = vadd.f32 %v1909, %v2101
        %2103 = vmatprep.mubr.bf16.mxu0 %v1385
        %2104 = vmatmul.mubr.bf16.gmra.mxu0 %v1384
        %v2105 = vpop.f32.mrf.mxu0
        %v2106 = vadd.f32 %v1913, %v2105
        %v2107 = vpop.f32.mrf.mxu0
        %v2108 = vadd.f32 %v1915, %v2107
        %v2109 = vpop.f32.mrf.mxu0
        %v2110 = vadd.f32 %v1917, %v2109
        %v2111 = vpop.f32.mrf.mxu0
        %v2112 = vadd.f32 %v1919, %v2111
        %2113 = vmatprep.mubr.bf16.mxu0 %v1389
        %2114 = vmatmul.mubr.bf16.gmra.mxu0 %v1388
        %v2115 = vpop.f32.mrf.mxu0
        %v2116 = vadd.f32 %v1923, %v2115
        %v2117 = vpop.f32.mrf.mxu0
        %v2118 = vadd.f32 %v1925, %v2117
        %v2119 = vpop.f32.mrf.mxu0
        %v2120 = vadd.f32 %v1927, %v2119
        %v2121 = vpop.f32.mrf.mxu0
        %v2122 = vadd.f32 %v1929, %v2121
        %2123 = vmatprep.mubr.bf16.mxu0 %v1393
        %2124 = vmatmul.mubr.bf16.gmra.mxu0 %v1392
        %v2125 = vpop.f32.mrf.mxu0
        %v2126 = vadd.f32 %v1933, %v2125
        %v2127 = vpop.f32.mrf.mxu0
        %v2128 = vadd.f32 %v1935, %v2127
        %v2129 = vpop.f32.mrf.mxu0
        %v2130 = vadd.f32 %v1937, %v2129
        %v2131 = vpop.f32.mrf.mxu0
        %v2132 = vadd.f32 %v1939, %v2131
        %2133 = vmatprep.mubr.bf16.mxu0 %v1397
        %2134 = vmatmul.mubr.bf16.gmra.mxu0 %v1396
        %v2135 = vpop.f32.mrf.mxu0
        %v2136 = vadd.f32 %v1943, %v2135
        %v2137 = vpop.f32.mrf.mxu0
        %v2138 = vadd.f32 %v1945, %v2137
        %v2139 = vpop.f32.mrf.mxu0
        %v2140 = vadd.f32 %v1947, %v2139
        %v2141 = vpop.f32.mrf.mxu0
        %v2142 = vadd.f32 %v1949, %v2141
        %2143 = vmatprep.mubr.bf16.mxu0 %v1401
        %2144 = vmatmul.mubr.bf16.gmra.mxu0 %v1400
        %v2145 = vpop.f32.mrf.mxu0
        %v2146 = vadd.f32 %v1953, %v2145
        %v2147 = vpop.f32.mrf.mxu0
        %v2148 = vadd.f32 %v1955, %v2147
        %v2149 = vpop.f32.mrf.mxu0
        %v2150 = vadd.f32 %v1957, %v2149
        %v2151 = vpop.f32.mrf.mxu0
        %v2152 = vadd.f32 %v1959, %v2151
        %2153 = vmatprep.mubr.bf16.mxu0 %v1405
        %2154 = vmatmul.mubr.bf16.gmra.mxu0 %v1404
        %v2155 = vpop.f32.mrf.mxu0
        %v2156 = vadd.f32 %v1963, %v2155
        %v2157 = vpop.f32.mrf.mxu0
        %v2158 = vadd.f32 %v1965, %v2157
        %v2159 = vpop.f32.mrf.mxu0
        %v2160 = vadd.f32 %v1967, %v2159
        %v2161 = vpop.f32.mrf.mxu0
        %v2162 = vadd.f32 %v1969, %v2161
        %2163 = vmatprep.mubr.bf16.mxu0 %v1409
        %2164 = vmatmul.mubr.bf16.gmra.mxu0 %v1408
        %v2165 = vpop.f32.mrf.mxu0
        %v2166 = vadd.f32 %v1973, %v2165
        %v2167 = vpop.f32.mrf.mxu0
        %v2168 = vadd.f32 %v1975, %v2167
        %v2169 = vpop.f32.mrf.mxu0
        %v2170 = vadd.f32 %v1977, %v2169
        %v2171 = vpop.f32.mrf.mxu0
        %v2172 = vadd.f32 %v1979, %v2171
        %2173 = vmatprep.mubr.bf16.mxu0 %v1413
        %2174 = vmatmul.mubr.bf16.gmra.mxu0 %v1412
        %v2175 = vpop.f32.mrf.mxu0
        %v2176 = vadd.f32 %v1983, %v2175
        %v2177 = vpop.f32.mrf.mxu0
        %v2178 = vadd.f32 %v1985, %v2177
        %v2179 = vpop.f32.mrf.mxu0
        %v2180 = vadd.f32 %v1987, %v2179
        %v2181 = vpop.f32.mrf.mxu0
        %v2182 = vadd.f32 %v1989, %v2181
        %2183 = vmatprep.mubr.bf16.mxu0 %v1417
        %2184 = vmatmul.mubr.bf16.gmra.mxu0 %v1416
        %v2185 = vpop.f32.mrf.mxu0
        %v2186 = vadd.f32 %v1993, %v2185
        %v2187 = vpop.f32.mrf.mxu0
        %v2188 = vadd.f32 %v1995, %v2187
        %v2189 = vpop.f32.mrf.mxu0
        %v2190 = vadd.f32 %v1997, %v2189
        %v2191 = vpop.f32.mrf.mxu0
        %v2192 = vadd.f32 %v1999, %v2191
        %2193 = vmatprep.mubr.bf16.mxu0 %v1421
        %2194 = vmatmul.mubr.bf16.gmra.mxu0 %v1420
        %v2195 = vpop.f32.mrf.mxu0
        %v2196 = vadd.f32 %v2003, %v2195
        %v2197 = vpop.f32.mrf.mxu0
        %v2198 = vadd.f32 %v2005, %v2197
        %v2199 = vpop.f32.mrf.mxu0
        %v2200 = vadd.f32 %v2007, %v2199
        %v2201 = vpop.f32.mrf.mxu0
        %v2202 = vadd.f32 %v2009, %v2201
        %2203 = vdwg.mxu0
        %v2204 = vadd.f32 %v2046, %v342
        %v2205 = vadd.f32 %v2048, %v343
        %v2206 = vadd.f32 %v2050, %v344
        %v2207 = vadd.f32 %v2052, %v345
        %v2208 = vadd.f32 %v2056, %v346
        %v2209 = vadd.f32 %v2058, %v347
        %v2210 = vadd.f32 %v2060, %v348
        %v2211 = vadd.f32 %v2062, %v349
        %v2212 = vadd.f32 %v2066, %v350
        %v2213 = vadd.f32 %v2068, %v351
        %v2214 = vadd.f32 %v2070, %v352
        %v2215 = vadd.f32 %v2072, %v353
        %v2216 = vadd.f32 %v2076, %v354
        %v2217 = vadd.f32 %v2078, %v355
        %v2218 = vadd.f32 %v2080, %v356
        %v2219 = vadd.f32 %v2082, %v357
        %v2220 = vadd.f32 %v2086, %v358
        %v2221 = vadd.f32 %v2088, %v359
        %v2222 = vadd.f32 %v2090, %v360
        %v2223 = vadd.f32 %v2092, %v361
        %v2224 = vadd.f32 %v2096, %v362
        %v2225 = vadd.f32 %v2098, %v363
        %v2226 = vadd.f32 %v2100, %v364
        %v2227 = vadd.f32 %v2102, %v365
        %v2228 = vadd.f32 %v2106, %v366
        %v2229 = vadd.f32 %v2108, %v367
        %v2230 = vadd.f32 %v2110, %v368
        %v2231 = vadd.f32 %v2112, %v369
        %v2232 = vadd.f32 %v2116, %v370
        %v2233 = vadd.f32 %v2118, %v371
        %v2234 = vadd.f32 %v2120, %v372
        %v2235 = vadd.f32 %v2122, %v373
        %v2236 = vadd.f32 %v2126, %v374
        %v2237 = vadd.f32 %v2128, %v375
        %v2238 = vadd.f32 %v2130, %v376
        %v2239 = vadd.f32 %v2132, %v377
        %v2240 = vadd.f32 %v2136, %v378
        %v2241 = vadd.f32 %v2138, %v379
        %v2242 = vadd.f32 %v2140, %v380
        %v2243 = vadd.f32 %v2142, %v381
        %v2244 = vadd.f32 %v2146, %v382
        %v2245 = vadd.f32 %v2148, %v383
        %v2246 = vadd.f32 %v2150, %v384
        %v2247 = vadd.f32 %v2152, %v385
        %v2248 = vadd.f32 %v2156, %v386
        %v2249 = vadd.f32 %v2158, %v387
        %v2250 = vadd.f32 %v2160, %v388
        %v2251 = vadd.f32 %v2162, %v389
        %v2252 = vadd.f32 %v2166, %v390
        %v2253 = vadd.f32 %v2168, %v391
        %v2254 = vadd.f32 %v2170, %v392
        %v2255 = vadd.f32 %v2172, %v393
        %v2256 = vadd.f32 %v2176, %v394
        %v2257 = vadd.f32 %v2178, %v395
        %v2258 = vadd.f32 %v2180, %v396
        %v2259 = vadd.f32 %v2182, %v397
        %v2260 = vadd.f32 %v2186, %v398
        %v2261 = vadd.f32 %v2188, %v399
        %v2262 = vadd.f32 %v2190, %v400
        %v2263 = vadd.f32 %v2192, %v401
        %v2264 = vadd.f32 %v2196, %v402
        %v2265 = vadd.f32 %v2198, %v403
        %v2266 = vadd.f32 %v2200, %v404
        %v2267 = vadd.f32 %v2202, %v405
        %v2268 = vadd.f32 %v2204, %v2205
        %2269 = vadd.xlane.f32.xlu0 %v2268
        %v2270 = vpop.xlane.xlu0 %2269
        %v2271 = vadd.f32 %v2206, %v2207
        %2272 = vadd.xlane.f32.xlu0 %v2271
        %v2273 = vpop.xlane.xlu0 %2272
        %v2274 = vadd.f32 %v2208, %v2209
        %2275 = vadd.xlane.f32.xlu0 %v2274
        %v2276 = vpop.xlane.xlu0 %2275
        %v2277 = vadd.f32 %v2210, %v2211
        %2278 = vadd.xlane.f32.xlu0 %v2277
        %v2279 = vpop.xlane.xlu0 %2278
        %v2280 = vadd.f32 %v2212, %v2213
        %2281 = vadd.xlane.f32.xlu0 %v2280
        %v2282 = vpop.xlane.xlu0 %2281
        %v2283 = vadd.f32 %v2214, %v2215
        %2284 = vadd.xlane.f32.xlu0 %v2283
        %v2285 = vpop.xlane.xlu0 %2284
        %v2286 = vadd.f32 %v2216, %v2217
        %2287 = vadd.xlane.f32.xlu0 %v2286
        %v2288 = vpop.xlane.xlu0 %2287
        %v2289 = vadd.f32 %v2218, %v2219
        %2290 = vadd.xlane.f32.xlu0 %v2289
        %v2291 = vpop.xlane.xlu0 %2290
        %v2292 = vadd.f32 %v2220, %v2221
        %2293 = vadd.xlane.f32.xlu0 %v2292
        %v2294 = vpop.xlane.xlu0 %2293
        %v2295 = vadd.f32 %v2222, %v2223
        %2296 = vadd.xlane.f32.xlu0 %v2295
        %v2297 = vpop.xlane.xlu0 %2296
        %v2298 = vadd.f32 %v2224, %v2225
        %2299 = vadd.xlane.f32.xlu0 %v2298
        %v2300 = vpop.xlane.xlu0 %2299
        %v2301 = vadd.f32 %v2226, %v2227
        %2302 = vadd.xlane.f32.xlu0 %v2301
        %v2303 = vpop.xlane.xlu0 %2302
        %v2304 = vadd.f32 %v2228, %v2229
        %2305 = vadd.xlane.f32.xlu0 %v2304
        %v2306 = vpop.xlane.xlu0 %2305
        %v2307 = vadd.f32 %v2230, %v2231
        %2308 = vadd.xlane.f32.xlu0 %v2307
        %v2309 = vpop.xlane.xlu0 %2308
        %v2310 = vadd.f32 %v2232, %v2233
        %2311 = vadd.xlane.f32.xlu0 %v2310
        %v2312 = vpop.xlane.xlu0 %2311
        %v2313 = vadd.f32 %v2234, %v2235
        %2314 = vadd.xlane.f32.xlu0 %v2313
        %v2315 = vpop.xlane.xlu0 %2314
        %v2316 = vadd.f32 %v2236, %v2237
        %2317 = vadd.xlane.f32.xlu0 %v2316
        %v2318 = vpop.xlane.xlu0 %2317
        %v2319 = vadd.f32 %v2238, %v2239
        %2320 = vadd.xlane.f32.xlu0 %v2319
        %v2321 = vpop.xlane.xlu0 %2320
        %v2322 = vadd.f32 %v2240, %v2241
        %2323 = vadd.xlane.f32.xlu0 %v2322
        %v2324 = vpop.xlane.xlu0 %2323
        %v2325 = vadd.f32 %v2242, %v2243
        %2326 = vadd.xlane.f32.xlu0 %v2325
        %v2327 = vpop.xlane.xlu0 %2326
        %v2328 = vadd.f32 %v2244, %v2245
        %2329 = vadd.xlane.f32.xlu0 %v2328
        %v2330 = vpop.xlane.xlu0 %2329
        %v2331 = vadd.f32 %v2246, %v2247
        %2332 = vadd.xlane.f32.xlu0 %v2331
        %v2333 = vpop.xlane.xlu0 %2332
        %v2334 = vadd.f32 %v2248, %v2249
        %2335 = vadd.xlane.f32.xlu0 %v2334
        %v2336 = vpop.xlane.xlu0 %2335
        %v2337 = vadd.f32 %v2250, %v2251
        %2338 = vadd.xlane.f32.xlu0 %v2337
        %v2339 = vpop.xlane.xlu0 %2338
        %v2340 = vadd.f32 %v2252, %v2253
        %2341 = vadd.xlane.f32.xlu0 %v2340
        %v2342 = vpop.xlane.xlu0 %2341
        %v2343 = vadd.f32 %v2254, %v2255
        %2344 = vadd.xlane.f32.xlu0 %v2343
        %v2345 = vpop.xlane.xlu0 %2344
        %v2346 = vadd.f32 %v2256, %v2257
        %2347 = vadd.xlane.f32.xlu0 %v2346
        %v2348 = vpop.xlane.xlu0 %2347
        %v2349 = vadd.f32 %v2258, %v2259
        %2350 = vadd.xlane.f32.xlu0 %v2349
        %v2351 = vpop.xlane.xlu0 %2350
        %v2352 = vadd.f32 %v2260, %v2261
        %2353 = vadd.xlane.f32.xlu0 %v2352
        %v2354 = vpop.xlane.xlu0 %2353
        %v2355 = vadd.f32 %v2262, %v2263
        %2356 = vadd.xlane.f32.xlu0 %v2355
        %v2357 = vpop.xlane.xlu0 %2356
        %v2358 = vadd.f32 %v2264, %v2265
        %2359 = vadd.xlane.f32.xlu0 %v2358
        %v2360 = vpop.xlane.xlu0 %2359
        %v2361 = vadd.f32 %v2266, %v2267
        %2362 = vadd.xlane.f32.xlu0 %v2361
        %v2363 = vpop.xlane.xlu0 %2362
        %v2364 = vrcp.pop 256.0
        %v2365 = vmul.f32 %v2270, %v2364
        %v2366 = vmul.f32 %v2273, %v2364
        %v2367 = vmul.f32 %v2276, %v2364
        %v2368 = vmul.f32 %v2279, %v2364
        %v2369 = vmul.f32 %v2282, %v2364
        %v2370 = vmul.f32 %v2285, %v2364
        %v2371 = vmul.f32 %v2288, %v2364
        %v2372 = vmul.f32 %v2291, %v2364
        %v2373 = vmul.f32 %v2294, %v2364
        %v2374 = vmul.f32 %v2297, %v2364
        %v2375 = vmul.f32 %v2300, %v2364
        %v2376 = vmul.f32 %v2303, %v2364
        %v2377 = vmul.f32 %v2306, %v2364
        %v2378 = vmul.f32 %v2309, %v2364
        %v2379 = vmul.f32 %v2312, %v2364
        %v2380 = vmul.f32 %v2315, %v2364
        %v2381 = vmul.f32 %v2318, %v2364
        %v2382 = vmul.f32 %v2321, %v2364
        %v2383 = vmul.f32 %v2324, %v2364
        %v2384 = vmul.f32 %v2327, %v2364
        %v2385 = vmul.f32 %v2330, %v2364
        %v2386 = vmul.f32 %v2333, %v2364
        %v2387 = vmul.f32 %v2336, %v2364
        %v2388 = vmul.f32 %v2339, %v2364
        %v2389 = vmul.f32 %v2342, %v2364
        %v2390 = vmul.f32 %v2345, %v2364
        %v2391 = vmul.f32 %v2348, %v2364
        %v2392 = vmul.f32 %v2351, %v2364
        %v2393 = vmul.f32 %v2354, %v2364
        %v2394 = vmul.f32 %v2357, %v2364
        %v2395 = vmul.f32 %v2360, %v2364
        %v2396 = vmul.f32 %v2363, %v2364
        %v2397 = vsub.f32 %v2204, %v2365
        %v2398 = vsub.f32 %v2205, %v2365
        %v2399 = vsub.f32 %v2206, %v2366
        %v2400 = vsub.f32 %v2207, %v2366
        %v2401 = vsub.f32 %v2208, %v2367
        %v2402 = vsub.f32 %v2209, %v2367
        %v2403 = vsub.f32 %v2210, %v2368
        %v2404 = vsub.f32 %v2211, %v2368
        %v2405 = vsub.f32 %v2212, %v2369
        %v2406 = vsub.f32 %v2213, %v2369
        %v2407 = vsub.f32 %v2214, %v2370
        %v2408 = vsub.f32 %v2215, %v2370
        %v2409 = vsub.f32 %v2216, %v2371
        %v2410 = vsub.f32 %v2217, %v2371
        %v2411 = vsub.f32 %v2218, %v2372
        %v2412 = vsub.f32 %v2219, %v2372
        %v2413 = vsub.f32 %v2220, %v2373
        %v2414 = vsub.f32 %v2221, %v2373
        %v2415 = vsub.f32 %v2222, %v2374
        %v2416 = vsub.f32 %v2223, %v2374
        %v2417 = vsub.f32 %v2224, %v2375
        %v2418 = vsub.f32 %v2225, %v2375
        %v2419 = vsub.f32 %v2226, %v2376
        %v2420 = vsub.f32 %v2227, %v2376
        %v2421 = vsub.f32 %v2228, %v2377
        %v2422 = vsub.f32 %v2229, %v2377
        %v2423 = vsub.f32 %v2230, %v2378
        %v2424 = vsub.f32 %v2231, %v2378
        %v2425 = vsub.f32 %v2232, %v2379
        %v2426 = vsub.f32 %v2233, %v2379
        %v2427 = vsub.f32 %v2234, %v2380
        %v2428 = vsub.f32 %v2235, %v2380
        %v2429 = vsub.f32 %v2236, %v2381
        %v2430 = vsub.f32 %v2237, %v2381
        %v2431 = vsub.f32 %v2238, %v2382
        %v2432 = vsub.f32 %v2239, %v2382
        %v2433 = vsub.f32 %v2240, %v2383
        %v2434 = vsub.f32 %v2241, %v2383
        %v2435 = vsub.f32 %v2242, %v2384
        %v2436 = vsub.f32 %v2243, %v2384
        %v2437 = vsub.f32 %v2244, %v2385
        %v2438 = vsub.f32 %v2245, %v2385
        %v2439 = vsub.f32 %v2246, %v2386
        %v2440 = vsub.f32 %v2247, %v2386
        %v2441 = vsub.f32 %v2248, %v2387
        %v2442 = vsub.f32 %v2249, %v2387
        %v2443 = vsub.f32 %v2250, %v2388
        %v2444 = vsub.f32 %v2251, %v2388
        %v2445 = vsub.f32 %v2252, %v2389
        %v2446 = vsub.f32 %v2253, %v2389
        %v2447 = vsub.f32 %v2254, %v2390
        %v2448 = vsub.f32 %v2255, %v2390
        %v2449 = vsub.f32 %v2256, %v2391
        %v2450 = vsub.f32 %v2257, %v2391
        %v2451 = vsub.f32 %v2258, %v2392
        %v2452 = vsub.f32 %v2259, %v2392
        %v2453 = vsub.f32 %v2260, %v2393
        %v2454 = vsub.f32 %v2261, %v2393
        %v2455 = vsub.f32 %v2262, %v2394
        %v2456 = vsub.f32 %v2263, %v2394
        %v2457 = vsub.f32 %v2264, %v2395
        %v2458 = vsub.f32 %v2265, %v2395
        %v2459 = vsub.f32 %v2266, %v2396
        %v2460 = vsub.f32 %v2267, %v2396
        %v2461 = vmul.f32 %v2397, %v2397
        %v2462 = vmul.f32 %v2398, %v2398
        %v2463 = vmul.f32 %v2399, %v2399
        %v2464 = vmul.f32 %v2400, %v2400
        %v2465 = vmul.f32 %v2401, %v2401
        %v2466 = vmul.f32 %v2402, %v2402
        %v2467 = vmul.f32 %v2403, %v2403
        %v2468 = vmul.f32 %v2404, %v2404
        %v2469 = vmul.f32 %v2405, %v2405
        %v2470 = vmul.f32 %v2406, %v2406
        %v2471 = vmul.f32 %v2407, %v2407
        %v2472 = vmul.f32 %v2408, %v2408
        %v2473 = vmul.f32 %v2409, %v2409
        %v2474 = vmul.f32 %v2410, %v2410
        %v2475 = vmul.f32 %v2411, %v2411
        %v2476 = vmul.f32 %v2412, %v2412
        %v2477 = vmul.f32 %v2413, %v2413
        %v2478 = vmul.f32 %v2414, %v2414
        %v2479 = vmul.f32 %v2415, %v2415
        %v2480 = vmul.f32 %v2416, %v2416
        %v2481 = vmul.f32 %v2417, %v2417
        %v2482 = vmul.f32 %v2418, %v2418
        %v2483 = vmul.f32 %v2419, %v2419
        %v2484 = vmul.f32 %v2420, %v2420
        %v2485 = vmul.f32 %v2421, %v2421
        %v2486 = vmul.f32 %v2422, %v2422
        %v2487 = vmul.f32 %v2423, %v2423
        %v2488 = vmul.f32 %v2424, %v2424
        %v2489 = vmul.f32 %v2425, %v2425
        %v2490 = vmul.f32 %v2426, %v2426
        %v2491 = vmul.f32 %v2427, %v2427
        %v2492 = vmul.f32 %v2428, %v2428
        %v2493 = vmul.f32 %v2429, %v2429
        %v2494 = vmul.f32 %v2430, %v2430
        %v2495 = vmul.f32 %v2431, %v2431
        %v2496 = vmul.f32 %v2432, %v2432
        %v2497 = vmul.f32 %v2433, %v2433
        %v2498 = vmul.f32 %v2434, %v2434
        %v2499 = vmul.f32 %v2435, %v2435
        %v2500 = vmul.f32 %v2436, %v2436
        %v2501 = vmul.f32 %v2437, %v2437
        %v2502 = vmul.f32 %v2438, %v2438
        %v2503 = vmul.f32 %v2439, %v2439
        %v2504 = vmul.f32 %v2440, %v2440
        %v2505 = vmul.f32 %v2441, %v2441
        %v2506 = vmul.f32 %v2442, %v2442
        %v2507 = vmul.f32 %v2443, %v2443
        %v2508 = vmul.f32 %v2444, %v2444
        %v2509 = vmul.f32 %v2445, %v2445
        %v2510 = vmul.f32 %v2446, %v2446
        %v2511 = vmul.f32 %v2447, %v2447
        %v2512 = vmul.f32 %v2448, %v2448
        %v2513 = vmul.f32 %v2449, %v2449
        %v2514 = vmul.f32 %v2450, %v2450
        %v2515 = vmul.f32 %v2451, %v2451
        %v2516 = vmul.f32 %v2452, %v2452
        %v2517 = vmul.f32 %v2453, %v2453
        %v2518 = vmul.f32 %v2454, %v2454
        %v2519 = vmul.f32 %v2455, %v2455
        %v2520 = vmul.f32 %v2456, %v2456
        %v2521 = vmul.f32 %v2457, %v2457
        %v2522 = vmul.f32 %v2458, %v2458
        %v2523 = vmul.f32 %v2459, %v2459
        %v2524 = vmul.f32 %v2460, %v2460
        %v2525 = vadd.f32 %v2461, %v2462
        %2526 = vadd.xlane.f32.xlu0 %v2525
        %v2527 = vpop.xlane.xlu0 %2526
        %v2528 = vadd.f32 %v2463, %v2464
        %2529 = vadd.xlane.f32.xlu0 %v2528
        %v2530 = vpop.xlane.xlu0 %2529
        %v2531 = vadd.f32 %v2465, %v2466
        %2532 = vadd.xlane.f32.xlu0 %v2531
        %v2533 = vpop.xlane.xlu0 %2532
        %v2534 = vadd.f32 %v2467, %v2468
        %2535 = vadd.xlane.f32.xlu0 %v2534
        %v2536 = vpop.xlane.xlu0 %2535
        %v2537 = vadd.f32 %v2469, %v2470
        %2538 = vadd.xlane.f32.xlu0 %v2537
        %v2539 = vpop.xlane.xlu0 %2538
        %v2540 = vadd.f32 %v2471, %v2472
        %2541 = vadd.xlane.f32.xlu0 %v2540
        %v2542 = vpop.xlane.xlu0 %2541
        %v2543 = vadd.f32 %v2473, %v2474
        %2544 = vadd.xlane.f32.xlu0 %v2543
        %v2545 = vpop.xlane.xlu0 %2544
        %v2546 = vadd.f32 %v2475, %v2476
        %2547 = vadd.xlane.f32.xlu0 %v2546
        %v2548 = vpop.xlane.xlu0 %2547
        %v2549 = vadd.f32 %v2477, %v2478
        %2550 = vadd.xlane.f32.xlu0 %v2549
        %v2551 = vpop.xlane.xlu0 %2550
        %v2552 = vadd.f32 %v2479, %v2480
        %2553 = vadd.xlane.f32.xlu0 %v2552
        %v2554 = vpop.xlane.xlu0 %2553
        %v2555 = vadd.f32 %v2481, %v2482
        %2556 = vadd.xlane.f32.xlu0 %v2555
        %v2557 = vpop.xlane.xlu0 %2556
        %v2558 = vadd.f32 %v2483, %v2484
        %2559 = vadd.xlane.f32.xlu0 %v2558
        %v2560 = vpop.xlane.xlu0 %2559
        %v2561 = vadd.f32 %v2485, %v2486
        %2562 = vadd.xlane.f32.xlu0 %v2561
        %v2563 = vpop.xlane.xlu0 %2562
        %v2564 = vadd.f32 %v2487, %v2488
        %2565 = vadd.xlane.f32.xlu0 %v2564
        %v2566 = vpop.xlane.xlu0 %2565
        %v2567 = vadd.f32 %v2489, %v2490
        %2568 = vadd.xlane.f32.xlu0 %v2567
        %v2569 = vpop.xlane.xlu0 %2568
        %v2570 = vadd.f32 %v2491, %v2492
        %2571 = vadd.xlane.f32.xlu0 %v2570
        %v2572 = vpop.xlane.xlu0 %2571
        %v2573 = vadd.f32 %v2493, %v2494
        %2574 = vadd.xlane.f32.xlu0 %v2573
        %v2575 = vpop.xlane.xlu0 %2574
        %v2576 = vadd.f32 %v2495, %v2496
        %2577 = vadd.xlane.f32.xlu0 %v2576
        %v2578 = vpop.xlane.xlu0 %2577
        %v2579 = vadd.f32 %v2497, %v2498
        %2580 = vadd.xlane.f32.xlu0 %v2579
        %v2581 = vpop.xlane.xlu0 %2580
        %v2582 = vadd.f32 %v2499, %v2500
        %2583 = vadd.xlane.f32.xlu0 %v2582
        %v2584 = vpop.xlane.xlu0 %2583
        %v2585 = vadd.f32 %v2501, %v2502
        %2586 = vadd.xlane.f32.xlu0 %v2585
        %v2587 = vpop.xlane.xlu0 %2586
        %v2588 = vadd.f32 %v2503, %v2504
        %2589 = vadd.xlane.f32.xlu0 %v2588
        %v2590 = vpop.xlane.xlu0 %2589
        %v2591 = vadd.f32 %v2505, %v2506
        %2592 = vadd.xlane.f32.xlu0 %v2591
        %v2593 = vpop.xlane.xlu0 %2592
        %v2594 = vadd.f32 %v2507, %v2508
        %2595 = vadd.xlane.f32.xlu0 %v2594
        %v2596 = vpop.xlane.xlu0 %2595
        %v2597 = vadd.f32 %v2509, %v2510
        %2598 = vadd.xlane.f32.xlu0 %v2597
        %v2599 = vpop.xlane.xlu0 %2598
        %v2600 = vadd.f32 %v2511, %v2512
        %2601 = vadd.xlane.f32.xlu0 %v2600
        %v2602 = vpop.xlane.xlu0 %2601
        %v2603 = vadd.f32 %v2513, %v2514
        %2604 = vadd.xlane.f32.xlu0 %v2603
        %v2605 = vpop.xlane.xlu0 %2604
        %v2606 = vadd.f32 %v2515, %v2516
        %2607 = vadd.xlane.f32.xlu0 %v2606
        %v2608 = vpop.xlane.xlu0 %2607
        %v2609 = vadd.f32 %v2517, %v2518
        %2610 = vadd.xlane.f32.xlu0 %v2609
        %v2611 = vpop.xlane.xlu0 %2610
        %v2612 = vadd.f32 %v2519, %v2520
        %2613 = vadd.xlane.f32.xlu0 %v2612
        %v2614 = vpop.xlane.xlu0 %2613
        %v2615 = vadd.f32 %v2521, %v2522
        %2616 = vadd.xlane.f32.xlu0 %v2615
        %v2617 = vpop.xlane.xlu0 %2616
        %v2618 = vadd.f32 %v2523, %v2524
        %2619 = vadd.xlane.f32.xlu0 %v2618
        %v2620 = vpop.xlane.xlu0 %2619
        %v2621 = vmul.f32 %v2527, %v2364
        %v2622 = vmul.f32 %v2530, %v2364
        %v2623 = vmul.f32 %v2533, %v2364
        %v2624 = vmul.f32 %v2536, %v2364
        %v2625 = vmul.f32 %v2539, %v2364
        %v2626 = vmul.f32 %v2542, %v2364
        %v2627 = vmul.f32 %v2545, %v2364
        %v2628 = vmul.f32 %v2548, %v2364
        %v2629 = vmul.f32 %v2551, %v2364
        %v2630 = vmul.f32 %v2554, %v2364
        %v2631 = vmul.f32 %v2557, %v2364
        %v2632 = vmul.f32 %v2560, %v2364
        %v2633 = vmul.f32 %v2563, %v2364
        %v2634 = vmul.f32 %v2566, %v2364
        %v2635 = vmul.f32 %v2569, %v2364
        %v2636 = vmul.f32 %v2572, %v2364
        %v2637 = vmul.f32 %v2575, %v2364
        %v2638 = vmul.f32 %v2578, %v2364
        %v2639 = vmul.f32 %v2581, %v2364
        %v2640 = vmul.f32 %v2584, %v2364
        %v2641 = vmul.f32 %v2587, %v2364
        %v2642 = vmul.f32 %v2590, %v2364
        %v2643 = vmul.f32 %v2593, %v2364
        %v2644 = vmul.f32 %v2596, %v2364
        %v2645 = vmul.f32 %v2599, %v2364
        %v2646 = vmul.f32 %v2602, %v2364
        %v2647 = vmul.f32 %v2605, %v2364
        %v2648 = vmul.f32 %v2608, %v2364
        %v2649 = vmul.f32 %v2611, %v2364
        %v2650 = vmul.f32 %v2614, %v2364
        %v2651 = vmul.f32 %v2617, %v2364
        %v2652 = vmul.f32 %v2620, %v2364
        %v2653 = vadd.f32 %v2621, 1e-05
        %v2654 = vadd.f32 %v2622, 1e-05
        %v2655 = vadd.f32 %v2623, 1e-05
        %v2656 = vadd.f32 %v2624, 1e-05
        %v2657 = vadd.f32 %v2625, 1e-05
        %v2658 = vadd.f32 %v2626, 1e-05
        %v2659 = vadd.f32 %v2627, 1e-05
        %v2660 = vadd.f32 %v2628, 1e-05
        %v2661 = vadd.f32 %v2629, 1e-05
        %v2662 = vadd.f32 %v2630, 1e-05
        %v2663 = vadd.f32 %v2631, 1e-05
        %v2664 = vadd.f32 %v2632, 1e-05
        %v2665 = vadd.f32 %v2633, 1e-05
        %v2666 = vadd.f32 %v2634, 1e-05
        %v2667 = vadd.f32 %v2635, 1e-05
        %v2668 = vadd.f32 %v2636, 1e-05
        %v2669 = vadd.f32 %v2637, 1e-05
        %v2670 = vadd.f32 %v2638, 1e-05
        %v2671 = vadd.f32 %v2639, 1e-05
        %v2672 = vadd.f32 %v2640, 1e-05
        %v2673 = vadd.f32 %v2641, 1e-05
        %v2674 = vadd.f32 %v2642, 1e-05
        %v2675 = vadd.f32 %v2643, 1e-05
        %v2676 = vadd.f32 %v2644, 1e-05
        %v2677 = vadd.f32 %v2645, 1e-05
        %v2678 = vadd.f32 %v2646, 1e-05
        %v2679 = vadd.f32 %v2647, 1e-05
        %v2680 = vadd.f32 %v2648, 1e-05
        %v2681 = vadd.f32 %v2649, 1e-05
        %v2682 = vadd.f32 %v2650, 1e-05
        %v2683 = vadd.f32 %v2651, 1e-05
        %v2684 = vadd.f32 %v2652, 1e-05
        %v2685 = vrsqrt.pop %v2653
        %v2686 = vrsqrt.pop %v2654
        %v2687 = vrsqrt.pop %v2655
        %v2688 = vrsqrt.pop %v2656
        %v2689 = vrsqrt.pop %v2657
        %v2690 = vrsqrt.pop %v2658
        %v2691 = vrsqrt.pop %v2659
        %v2692 = vrsqrt.pop %v2660
        %v2693 = vrsqrt.pop %v2661
        %v2694 = vrsqrt.pop %v2662
        %v2695 = vrsqrt.pop %v2663
        %v2696 = vrsqrt.pop %v2664
        %v2697 = vrsqrt.pop %v2665
        %v2698 = vrsqrt.pop %v2666
        %v2699 = vrsqrt.pop %v2667
        %v2700 = vrsqrt.pop %v2668
        %v2701 = vrsqrt.pop %v2669
        %v2702 = vrsqrt.pop %v2670
        %v2703 = vrsqrt.pop %v2671
        %v2704 = vrsqrt.pop %v2672
        %v2705 = vrsqrt.pop %v2673
        %v2706 = vrsqrt.pop %v2674
        %v2707 = vrsqrt.pop %v2675
        %v2708 = vrsqrt.pop %v2676
        %v2709 = vrsqrt.pop %v2677
        %v2710 = vrsqrt.pop %v2678
        %v2711 = vrsqrt.pop %v2679
        %v2712 = vrsqrt.pop %v2680
        %v2713 = vrsqrt.pop %v2681
        %v2714 = vrsqrt.pop %v2682
        %v2715 = vrsqrt.pop %v2683
        %v2716 = vrsqrt.pop %v2684
        %v2717 = vmul.f32 %v2397, %v2685
        %v2718 = vmul.f32 %v2398, %v2685
        %v2719 = vmul.f32 %v2399, %v2686
        %v2720 = vmul.f32 %v2400, %v2686
        %v2721 = vmul.f32 %v2401, %v2687
        %v2722 = vmul.f32 %v2402, %v2687
        %v2723 = vmul.f32 %v2403, %v2688
        %v2724 = vmul.f32 %v2404, %v2688
        %v2725 = vmul.f32 %v2405, %v2689
        %v2726 = vmul.f32 %v2406, %v2689
        %v2727 = vmul.f32 %v2407, %v2690
        %v2728 = vmul.f32 %v2408, %v2690
        %v2729 = vmul.f32 %v2409, %v2691
        %v2730 = vmul.f32 %v2410, %v2691
        %v2731 = vmul.f32 %v2411, %v2692
        %v2732 = vmul.f32 %v2412, %v2692
        %v2733 = vmul.f32 %v2413, %v2693
        %v2734 = vmul.f32 %v2414, %v2693
        %v2735 = vmul.f32 %v2415, %v2694
        %v2736 = vmul.f32 %v2416, %v2694
        %v2737 = vmul.f32 %v2417, %v2695
        %v2738 = vmul.f32 %v2418, %v2695
        %v2739 = vmul.f32 %v2419, %v2696
        %v2740 = vmul.f32 %v2420, %v2696
        %v2741 = vmul.f32 %v2421, %v2697
        %v2742 = vmul.f32 %v2422, %v2697
        %v2743 = vmul.f32 %v2423, %v2698
        %v2744 = vmul.f32 %v2424, %v2698
        %v2745 = vmul.f32 %v2425, %v2699
        %v2746 = vmul.f32 %v2426, %v2699
        %v2747 = vmul.f32 %v2427, %v2700
        %v2748 = vmul.f32 %v2428, %v2700
        %v2749 = vmul.f32 %v2429, %v2701
        %v2750 = vmul.f32 %v2430, %v2701
        %v2751 = vmul.f32 %v2431, %v2702
        %v2752 = vmul.f32 %v2432, %v2702
        %v2753 = vmul.f32 %v2433, %v2703
        %v2754 = vmul.f32 %v2434, %v2703
        %v2755 = vmul.f32 %v2435, %v2704
        %v2756 = vmul.f32 %v2436, %v2704
        %v2757 = vmul.f32 %v2437, %v2705
        %v2758 = vmul.f32 %v2438, %v2705
        %v2759 = vmul.f32 %v2439, %v2706
        %v2760 = vmul.f32 %v2440, %v2706
        %v2761 = vmul.f32 %v2441, %v2707
        %v2762 = vmul.f32 %v2442, %v2707
        %v2763 = vmul.f32 %v2443, %v2708
        %v2764 = vmul.f32 %v2444, %v2708
        %v2765 = vmul.f32 %v2445, %v2709
        %v2766 = vmul.f32 %v2446, %v2709
        %v2767 = vmul.f32 %v2447, %v2710
        %v2768 = vmul.f32 %v2448, %v2710
        %v2769 = vmul.f32 %v2449, %v2711
        %v2770 = vmul.f32 %v2450, %v2711
        %v2771 = vmul.f32 %v2451, %v2712
        %v2772 = vmul.f32 %v2452, %v2712
        %v2773 = vmul.f32 %v2453, %v2713
        %v2774 = vmul.f32 %v2454, %v2713
        %v2775 = vmul.f32 %v2455, %v2714
        %v2776 = vmul.f32 %v2456, %v2714
        %v2777 = vmul.f32 %v2457, %v2715
        %v2778 = vmul.f32 %v2458, %v2715
        %v2779 = vmul.f32 %v2459, %v2716
        %v2780 = vmul.f32 %v2460, %v2716
        %v2781 = vld [vmem:[%s5] sm:$0x3]
        %v2783 = vlaneseq
        %v2784 = vshrl.u32 %v2783, 7
        %v2785 = vsub.s32 0, %v2784
        %v2786 = vrot.slane %v2781, %v2785
        %v2787 = vlaneseq
        %v2788 = vshrl.u32 %v2787, 7
        %v2789 = vsub.s32 1, %v2788
        %v2790 = vrot.slane %v2781, %v2789
        %v2793 = vmul.f32 %v2717, %v2786
        %v2794 = vmul.f32 %v2718, %v2790
        %v2795 = vmul.f32 %v2719, %v2786
        %v2796 = vmul.f32 %v2720, %v2790
        %v2797 = vmul.f32 %v2721, %v2786
        %v2798 = vmul.f32 %v2722, %v2790
        %v2799 = vmul.f32 %v2723, %v2786
        %v2800 = vmul.f32 %v2724, %v2790
        %v2801 = vmul.f32 %v2725, %v2786
        %v2802 = vmul.f32 %v2726, %v2790
        %v2803 = vmul.f32 %v2727, %v2786
        %v2804 = vmul.f32 %v2728, %v2790
        %v2805 = vmul.f32 %v2729, %v2786
        %v2806 = vmul.f32 %v2730, %v2790
        %v2807 = vmul.f32 %v2731, %v2786
        %v2808 = vmul.f32 %v2732, %v2790
        %v2809 = vmul.f32 %v2733, %v2786
        %v2810 = vmul.f32 %v2734, %v2790
        %v2811 = vmul.f32 %v2735, %v2786
        %v2812 = vmul.f32 %v2736, %v2790
        %v2813 = vmul.f32 %v2737, %v2786
        %v2814 = vmul.f32 %v2738, %v2790
        %v2815 = vmul.f32 %v2739, %v2786
        %v2816 = vmul.f32 %v2740, %v2790
        %v2817 = vmul.f32 %v2741, %v2786
        %v2818 = vmul.f32 %v2742, %v2790
        %v2819 = vmul.f32 %v2743, %v2786
        %v2820 = vmul.f32 %v2744, %v2790
        %v2821 = vmul.f32 %v2745, %v2786
        %v2822 = vmul.f32 %v2746, %v2790
        %v2823 = vmul.f32 %v2747, %v2786
        %v2824 = vmul.f32 %v2748, %v2790
        %v2825 = vmul.f32 %v2749, %v2786
        %v2826 = vmul.f32 %v2750, %v2790
        %v2827 = vmul.f32 %v2751, %v2786
        %v2828 = vmul.f32 %v2752, %v2790
        %v2829 = vmul.f32 %v2753, %v2786
        %v2830 = vmul.f32 %v2754, %v2790
        %v2831 = vmul.f32 %v2755, %v2786
        %v2832 = vmul.f32 %v2756, %v2790
        %v2833 = vmul.f32 %v2757, %v2786
        %v2834 = vmul.f32 %v2758, %v2790
        %v2835 = vmul.f32 %v2759, %v2786
        %v2836 = vmul.f32 %v2760, %v2790
        %v2837 = vmul.f32 %v2761, %v2786
        %v2838 = vmul.f32 %v2762, %v2790
        %v2839 = vmul.f32 %v2763, %v2786
        %v2840 = vmul.f32 %v2764, %v2790
        %v2841 = vmul.f32 %v2765, %v2786
        %v2842 = vmul.f32 %v2766, %v2790
        %v2843 = vmul.f32 %v2767, %v2786
        %v2844 = vmul.f32 %v2768, %v2790
        %v2845 = vmul.f32 %v2769, %v2786
        %v2846 = vmul.f32 %v2770, %v2790
        %v2847 = vmul.f32 %v2771, %v2786
        %v2848 = vmul.f32 %v2772, %v2790
        %v2849 = vmul.f32 %v2773, %v2786
        %v2850 = vmul.f32 %v2774, %v2790
        %v2851 = vmul.f32 %v2775, %v2786
        %v2852 = vmul.f32 %v2776, %v2790
        %v2853 = vmul.f32 %v2777, %v2786
        %v2854 = vmul.f32 %v2778, %v2790
        %v2855 = vmul.f32 %v2779, %v2786
        %v2856 = vmul.f32 %v2780, %v2790
        %v2857 = vld [vmem:[%s6] sm:$0x3]
        %v2859 = vlaneseq
        %v2860 = vshrl.u32 %v2859, 7
        %v2861 = vsub.s32 0, %v2860
        %v2862 = vrot.slane %v2857, %v2861
        %v2863 = vlaneseq
        %v2864 = vshrl.u32 %v2863, 7
        %v2865 = vsub.s32 1, %v2864
        %v2866 = vrot.slane %v2857, %v2865
        %v2869 = vadd.f32 %v2793, %v2862
        %v2870 = vadd.f32 %v2794, %v2866
        %v2871 = vadd.f32 %v2795, %v2862
        %v2872 = vadd.f32 %v2796, %v2866
        %v2873 = vadd.f32 %v2797, %v2862
        %v2874 = vadd.f32 %v2798, %v2866
        %v2875 = vadd.f32 %v2799, %v2862
        %v2876 = vadd.f32 %v2800, %v2866
        %v2877 = vadd.f32 %v2801, %v2862
        %v2878 = vadd.f32 %v2802, %v2866
        %v2879 = vadd.f32 %v2803, %v2862
        %v2880 = vadd.f32 %v2804, %v2866
        %v2881 = vadd.f32 %v2805, %v2862
        %v2882 = vadd.f32 %v2806, %v2866
        %v2883 = vadd.f32 %v2807, %v2862
        %v2884 = vadd.f32 %v2808, %v2866
        %v2885 = vadd.f32 %v2809, %v2862
        %v2886 = vadd.f32 %v2810, %v2866
        %v2887 = vadd.f32 %v2811, %v2862
        %v2888 = vadd.f32 %v2812, %v2866
        %v2889 = vadd.f32 %v2813, %v2862
        %v2890 = vadd.f32 %v2814, %v2866
        %v2891 = vadd.f32 %v2815, %v2862
        %v2892 = vadd.f32 %v2816, %v2866
        %v2893 = vadd.f32 %v2817, %v2862
        %v2894 = vadd.f32 %v2818, %v2866
        %v2895 = vadd.f32 %v2819, %v2862
        %v2896 = vadd.f32 %v2820, %v2866
        %v2897 = vadd.f32 %v2821, %v2862
        %v2898 = vadd.f32 %v2822, %v2866
        %v2899 = vadd.f32 %v2823, %v2862
        %v2900 = vadd.f32 %v2824, %v2866
        %v2901 = vadd.f32 %v2825, %v2862
        %v2902 = vadd.f32 %v2826, %v2866
        %v2903 = vadd.f32 %v2827, %v2862
        %v2904 = vadd.f32 %v2828, %v2866
        %v2905 = vadd.f32 %v2829, %v2862
        %v2906 = vadd.f32 %v2830, %v2866
        %v2907 = vadd.f32 %v2831, %v2862
        %v2908 = vadd.f32 %v2832, %v2866
        %v2909 = vadd.f32 %v2833, %v2862
        %v2910 = vadd.f32 %v2834, %v2866
        %v2911 = vadd.f32 %v2835, %v2862
        %v2912 = vadd.f32 %v2836, %v2866
        %v2913 = vadd.f32 %v2837, %v2862
        %v2914 = vadd.f32 %v2838, %v2866
        %v2915 = vadd.f32 %v2839, %v2862
        %v2916 = vadd.f32 %v2840, %v2866
        %v2917 = vadd.f32 %v2841, %v2862
        %v2918 = vadd.f32 %v2842, %v2866
        %v2919 = vadd.f32 %v2843, %v2862
        %v2920 = vadd.f32 %v2844, %v2866
        %v2921 = vadd.f32 %v2845, %v2862
        %v2922 = vadd.f32 %v2846, %v2866
        %v2923 = vadd.f32 %v2847, %v2862
        %v2924 = vadd.f32 %v2848, %v2866
        %v2925 = vadd.f32 %v2849, %v2862
        %v2926 = vadd.f32 %v2850, %v2866
        %v2927 = vadd.f32 %v2851, %v2862
        %v2928 = vadd.f32 %v2852, %v2866
        %v2929 = vadd.f32 %v2853, %v2862
        %v2930 = vadd.f32 %v2854, %v2866
        %v2931 = vadd.f32 %v2855, %v2862
        %v2932 = vadd.f32 %v2856, %v2866
        %2933 = vst [vmem:[%s339] sm:$0xff] %v2869
        %2934 = vst [vmem:[%s339 + $0x8] sm:$0xff] %v2870
        %2935 = vst [vmem:[%s339 + $0x10] sm:$0xff] %v2871
        %2936 = vst [vmem:[%s339 + $0x18] sm:$0xff] %v2872
        %2937 = vst [vmem:[%s339 + $0x20] sm:$0xff] %v2873
        %2938 = vst [vmem:[%s339 + $0x28] sm:$0xff] %v2874
        %2939 = vst [vmem:[%s339 + $0x30] sm:$0xff] %v2875
        %2940 = vst [vmem:[%s339 + $0x38] sm:$0xff] %v2876
        %2941 = vst [vmem:[%s339 + $0x40] sm:$0xff] %v2877
        %2942 = vst [vmem:[%s339 + $0x48] sm:$0xff] %v2878
        %2943 = vst [vmem:[%s339 + $0x50] sm:$0xff] %v2879
        %2944 = vst [vmem:[%s339 + $0x58] sm:$0xff] %v2880
        %2945 = vst [vmem:[%s339 + $0x60] sm:$0xff] %v2881
        %2946 = vst [vmem:[%s339 + $0x68] sm:$0xff] %v2882
        %2947 = vst [vmem:[%s339 + $0x70] sm:$0xff] %v2883
        %2948 = vst [vmem:[%s339 + $0x78] sm:$0xff] %v2884
        %2949 = vst [vmem:[%s339 + $0x80] sm:$0xff] %v2885
        %2950 = vst [vmem:[%s339 + $0x88] sm:$0xff] %v2886
        %2951 = vst [vmem:[%s339 + $0x90] sm:$0xff] %v2887
        %2952 = vst [vmem:[%s339 + $0x98] sm:$0xff] %v2888
        %2953 = vst [vmem:[%s339 + $0xa0] sm:$0xff] %v2889
        %2954 = vst [vmem:[%s339 + $0xa8] sm:$0xff] %v2890
        %2955 = vst [vmem:[%s339 + $0xb0] sm:$0xff] %v2891
        %2956 = vst [vmem:[%s339 + $0xb8] sm:$0xff] %v2892
        %2957 = vst [vmem:[%s339 + $0xc0] sm:$0xff] %v2893
        %2958 = vst [vmem:[%s339 + $0xc8] sm:$0xff] %v2894
        %2959 = vst [vmem:[%s339 + $0xd0] sm:$0xff] %v2895
        %2960 = vst [vmem:[%s339 + $0xd8] sm:$0xff] %v2896
        %2961 = vst [vmem:[%s339 + $0xe0] sm:$0xff] %v2897
        %2962 = vst [vmem:[%s339 + $0xe8] sm:$0xff] %v2898
        %2963 = vst [vmem:[%s339 + $0xf0] sm:$0xff] %v2899
        %2964 = vst [vmem:[%s339 + $0xf8] sm:$0xff] %v2900
        %2965 = vst [vmem:[%s339 + $0x100] sm:$0xff] %v2901
        %2966 = vst [vmem:[%s339 + $0x108] sm:$0xff] %v2902
        %2967 = vst [vmem:[%s339 + $0x110] sm:$0xff] %v2903
        %2968 = vst [vmem:[%s339 + $0x118] sm:$0xff] %v2904
        %2969 = vst [vmem:[%s339 + $0x120] sm:$0xff] %v2905
        %2970 = vst [vmem:[%s339 + $0x128] sm:$0xff] %v2906
        %2971 = vst [vmem:[%s339 + $0x130] sm:$0xff] %v2907
        %2972 = vst [vmem:[%s339 + $0x138] sm:$0xff] %v2908
        %2973 = vst [vmem:[%s339 + $0x140] sm:$0xff] %v2909
        %2974 = vst [vmem:[%s339 + $0x148] sm:$0xff] %v2910
        %2975 = vst [vmem:[%s339 + $0x150] sm:$0xff] %v2911
        %2976 = vst [vmem:[%s339 + $0x158] sm:$0xff] %v2912
        %2977 = vst [vmem:[%s339 + $0x160] sm:$0xff] %v2913
        %2978 = vst [vmem:[%s339 + $0x168] sm:$0xff] %v2914
        %2979 = vst [vmem:[%s339 + $0x170] sm:$0xff] %v2915
        %2980 = vst [vmem:[%s339 + $0x178] sm:$0xff] %v2916
        %2981 = vst [vmem:[%s339 + $0x180] sm:$0xff] %v2917
        %2982 = vst [vmem:[%s339 + $0x188] sm:$0xff] %v2918
        %2983 = vst [vmem:[%s339 + $0x190] sm:$0xff] %v2919
        %2984 = vst [vmem:[%s339 + $0x198] sm:$0xff] %v2920
        %2985 = vst [vmem:[%s339 + $0x1a0] sm:$0xff] %v2921
        %2986 = vst [vmem:[%s339 + $0x1a8] sm:$0xff] %v2922
        %2987 = vst [vmem:[%s339 + $0x1b0] sm:$0xff] %v2923
        %2988 = vst [vmem:[%s339 + $0x1b8] sm:$0xff] %v2924
        %2989 = vst [vmem:[%s339 + $0x1c0] sm:$0xff] %v2925
        %2990 = vst [vmem:[%s339 + $0x1c8] sm:$0xff] %v2926
        %2991 = vst [vmem:[%s339 + $0x1d0] sm:$0xff] %v2927
        %2992 = vst [vmem:[%s339 + $0x1d8] sm:$0xff] %v2928
        %2993 = vst [vmem:[%s339 + $0x1e0] sm:$0xff] %v2929
        %2994 = vst [vmem:[%s339 + $0x1e8] sm:$0xff] %v2930
        %2995 = vst [vmem:[%s339 + $0x1f0] sm:$0xff] %v2931
        %2996 = vst [vmem:[%s339 + $0x1f8] sm:$0xff] %v2932
        %s2997 = sand.u32 %s186, 1
        %s2998 = scalar_lea.sflag [#allocation4], %s2997
        %s2999 = sand.u32 %s186, 1
        %s3000 = smul.addr %s2999, 512
        %s3001 = scalar_lea.vmem [#allocation10], %s3000
        // Predicated region
        $region65: #{tpu_custom_call.1} parent=47 // pred_check
          %p3002 = pneg %p196
        $region66: #{tpu_custom_call.1} parent=47 // pred_check_branch
          %3004 = sbr.rel (%p3002) target = $region68
        $region67: #{tpu_custom_call.1} parent=47 // pred_region
          %s3005 = smul.u32 32, %s26
          %s3007 = ssub.s32 8192, 8192
          %3008 = vsyncadd %s2998, %s3007
          %s3009 = smul.addr %s3005, 2
          %s3010 = smul.addr %s3009, 128
          %s3011 = scalar_lea.hbm %s7, %s3010
          %s3012 = sshll.u32 %s3001, 4
          %s3013 = int_to_ptr.vmem [resolvable:$true] %s3012
          %3018 = dma.vmem_to_hbm [thread:$0]  %s3013, 8192, %s3011, %s2998, 256, 256, 16
        $region68: #{tpu_custom_call.1} parent=47 // pred_fallthru
          _
      $region48: #{tpu_custom_call.1} parent=5 // pred_fallthru
        _
      %p3019 = scmp.le.s32.totalorder 2, %s21
      // Predicated region
      $region69: #{tpu_custom_call.1} parent=5 // pred_check
        %p3020 = pneg %p3019
      $region70: #{tpu_custom_call.1} parent=5 // pred_check_branch
        %3022 = sbr.rel (%p3020) target = $region72
      $region71: #{tpu_custom_call.1} parent=5 // pred_region
        %s3023 = ssub.s32 %s21, 2
        // Predicated region
        $region73: #{tpu_custom_call.1} parent=71 // pred_check
          %p3024 = pneg %p202
        $region74: #{tpu_custom_call.1} parent=71 // pred_check_branch
          %3026 = sbr.rel (%p3024) target = $region76
        $region75: #{tpu_custom_call.1} parent=71 // pred_region
          %s3027 = sand.u32 %s187, 1
          %s3028 = scalar_lea.sflag [#allocation4], %s3027
          %s3029 = sand.u32 %s187, 1
          %s3030 = smul.addr %s3029, 512
          %s3031 = scalar_lea.vmem [#allocation10], %s3030
          %3032 = dma.done %s3028, 8192
        $region76: #{tpu_custom_call.1} parent=71 // pred_fallthru
          _
      $region72: #{tpu_custom_call.1} parent=5 // pred_fallthru
        _
    $region6: #{tpu_custom_call.1} parent=1 // loop_footer
      %s25 = sadd.s32 1, %s21
    $region7: #{tpu_custom_call.1} parent=1 // loop_footer_branch
      %20 = sbr.rel target = $region3
    $region8: #{tpu_custom_call.1} parent=1 // loop_exit
      _
    %3033 = vsyncpa [#allocation3], 1
    %s3034 = scalar_lea.sflag [#allocation3], 1
    %3035 = vsyncpa %s3034, 1
    %3036 = vsyncpa [#allocation6], 1
    %3037 = vsyncpa [#allocation9], 1
    %3038 = vsyncpa [#allocation4], 1
    %s3039 = scalar_lea.sflag [#allocation4], 1
    %3040 = vsyncpa %s3039, 1

</llo_original>
